<compile_context>
chip_gen: v6e
topology: v6e:2x2x1
jax: 0.10.0
libtpu: 0.0.40
codegen_flags: <defaults>
</compile_context>

<pallas_src>
import numpy as np
import jax
import jax.numpy as jnp
from jax import lax
from jax.experimental import pallas as pl
from jax.experimental.pallas import tpu as pltpu

# ----------------------------- configuration -----------------------------
IN_CHANNELS = 4
STEM_CH = 64
NUM_CLASSES = 10
CONV_K = 7
CONV_STRIDE = (1, 2, 2)
CONV_PAD = 3
POOL_K = 3
POOL_STRIDE = 2
POOL_PAD = 1
BN_EPS = 1e-5


# ----------------------------- kernel helpers -----------------------------
def _maxpool1d(x, axis):
    """MaxPool1d(k=3, s=2, p=1) along `axis` via elementwise maxima of shifted
    length-1 contiguous slices (VPU only, no axis reductions / window stacks).

    Every pool window contains at least one valid element, so the -inf padded
    taps of the PyTorch op can simply be omitted.
    """
    length = x.shape[axis]
    n_out = (length + 2 * POOL_PAD - POOL_K) // POOL_STRIDE + 1
    outs = []
    for p in range(n_out):
        lo = max(POOL_STRIDE * p - POOL_PAD, 0)
        hi = min(POOL_STRIDE * p - POOL_PAD + POOL_K, length)
        win = lax.slice_in_dim(x, lo, lo + 1, axis=axis)
        for q in range(lo + 1, hi):
            win = jnp.maximum(win, lax.slice_in_dim(x, q, q + 1, axis=axis))
        outs.append(win)
    return jnp.concatenate(outs, axis=axis)


def _pick_od_tile(do, hw_rows):
    """Smallest divisor of `do` such that matmul M = od_tile*hw_rows >= 256."""
    target = max(1, -(-256 // hw_rows))
    for t in range(1, do + 1):
        if do % t == 0 and t >= target:
            return t
    return do


def _tile_bytes(shape, dtype):
    """VMEM footprint of one buffer, padding the last two dims to (8,128)."""
    s = list(shape)
    s[-1] = -(-s[-1] // 128) * 128
    if len(s) >= 2:
        s[-2] = -(-s[-2] // 8) * 8
    return int(np.prod(s)) * np.dtype(dtype).itemsize


# ----------------------------- host-side prep ------------------------------
def _prep_input(x_ncdhw):
    """NCDHW -> fully H/W-unfolded, lane-dense bf16 patch rows.

    Output shape: (N, Dp, Ho*Wo, 16*4*Cin) where Dp = D + 2*pad and the minor
    axis is ordered (kh2, kw2, hp, wp, c) with kh = 2*kh2 + hp, kw = 2*kw2 + wp.
    Each depth tap's (Ho*Wo, 256) patch is then ONE contiguous slice in-kernel.
    """
    n, cin, d, h, w = x_ncdhw.shape
    x = jnp.transpose(x_ncdhw, (0, 2, 3, 4, 1))          # NDHWC
    do = (d + 2 * CONV_PAD - CONV_K) // CONV_STRIDE[0] + 1
    ho = (h + 2 * CONV_PAD - CONV_K) // CONV_STRIDE[1] + 1
    wo = (w + 2 * CONV_PAD - CONV_K) // CONV_STRIDE[2] + 1
    dp = d + 2 * CONV_PAD
    hq, wq = ho + 3, wo + 3
    x_pad = jnp.pad(
        x, ((0, 0), (CONV_PAD, CONV_PAD),
            (CONV_PAD, 2 * hq - h - CONV_PAD),
            (CONV_PAD, 2 * wq - w - CONV_PAD), (0, 0)))
    # space-to-depth (2,2) in H,W: merged channel = (hp, wp, c)
    x_s2d = x_pad.reshape(n, dp, hq, 2, wq, 2, cin)
    x_s2d = jnp.transpose(x_s2d, (0, 1, 2, 4, 3, 5, 6)).reshape(n, dp, hq, wq, 4 * cin)
    # full (kh2, kw2) unfold -> minor axis (kh2, kw2, hp, wp, c)
    pieces = [x_s2d[:, :, kh2:kh2 + ho, kw2:kw2 + wo, :]
              for kh2 in range(4) for kw2 in range(4)]
    x_unf = jnp.concatenate(pieces, axis=-1)             # (n, dp, ho, wo, 64*cin)
    x_unf = x_unf.reshape(n, dp, ho * wo, 16 * 4 * cin)
    return x_unf.astype(jnp.bfloat16), (do, ho, wo)


def _prep_weight(conv_w):
    """(7,7,7,Cin,Cout) -> (7, 16*4*Cin, Cout) bf16 per-kd tap weights.

    Contraction index = (kh2, kw2, hp, wp, c), matching _prep_input; the
    kh=7 / kw=7 slots are zero-padded.
    """
    k = conv_w.shape[0]
    cin, cout = conv_w.shape[3], conv_w.shape[4]
    wpad = jnp.pad(conv_w, ((0, 0), (0, 1), (0, 1), (0, 0), (0, 0)))  # (7,8,8,ci,co)
    w2 = wpad.reshape(k, 4, 2, 4, 2, cin, cout)          # kd,kh2,hp,kw2,wp,c,co
    w2 = jnp.transpose(w2, (0, 1, 3, 2, 4, 5, 6))        # kd,kh2,kw2,hp,wp,c,co
    w2 = w2.reshape(k, 16 * 4 * cin, cout)
    return w2.astype(jnp.bfloat16)


def _bn_fold(params):
    scale = params["bn_gamma"] / jnp.sqrt(params["bn_var"] + BN_EPS)
    shift = params["bn_beta"] - params["bn_mean"] * scale
    return scale, shift


# ----------------------------- pallas_call wrapper --------------------------
def stem_fused(x_unf, w_taps, bn_scale, bn_shift, fc_w, fc_b, conv_dims):
    n, dp, s, kp = x_unf.shape
    do, ho, wo = conv_dims
    assert s == ho * wo
    n_kd = w_taps.shape[0]
    c = w_taps.shape[-1]
    nc = fc_w.shape[-1]
    dpo = (do + 2 * POOL_PAD - POOL_K) // POOL_STRIDE + 1
    hpo = (ho + 2 * POOL_PAD - POOL_K) // POOL_STRIDE + 1
    wpo = (wo + 2 * POOL_PAD - POOL_K) // POOL_STRIDE + 1

    od_tile = _pick_od_tile(do, ho * wo)
    n_jd = do // od_tile
    m = od_tile * ho * wo                                # matmul M (>= 256 here)

    def kernel(x_ref, w_ref, scale_ref, shift_ref, fcw_ref, fcb_ref,
               pooled_ref, logits_ref, hwpool_ref):
        jd = pl.program_id(1)
        od0 = jd * od_tile

        # ---- conv1: n_kd accumulated bf16 MXU matmuls, K = 16*4*Cin -------
        def tap(kd, acc):
            patch = x_ref[0, pl.ds(od0 + kd, od_tile)]   # (od_tile, Ho*Wo, K) bf16
            patch = patch.reshape(m, kp)                 # contiguous, no concat
            return acc + jnp.dot(patch, w_ref[kd],
                                 preferred_element_type=jnp.float32)

        acc = lax.fori_loop(0, n_kd, tap, jnp.zeros((m, c), jnp.float32),
                            unroll=True)

        # ---- bn1 + relu (f32), per-step H/W maxpool into small scratch ----
        y = jnp.maximum(acc * scale_ref[...] + shift_ref[...], 0.0)
        y = y.reshape(od_tile, ho, wo, c)
        p = _maxpool1d(y, axis=1)
        p = _maxpool1d(p, axis=2)                        # (od_tile, hpo, wpo, c)
        hwpool_ref[pl.ds(od0, od_tile)] = p

        # ---- last depth step: depth maxpool + global avgpool + fc ---------
        @pl.when(jd == pl.num_programs(1) - 1)
        def _():
            z = _maxpool1d(hwpool_ref[...], axis=0)      # (dpo, hpo, wpo, c) f32
            # lane-dense output slab: (dpo, hpo, wpo*c)
            pooled_ref[0] = jnp.concatenate(
                [z[:, :, wv, :] for wv in range(wpo)], axis=-1)
            feat = jnp.mean(jnp.mean(jnp.mean(z, axis=0), axis=0), axis=0,
                            keepdims=True)               # (1, c) f32
            logits_ref[0] = (jnp.dot(feat, fcw_ref[...],
                                     preferred_element_type=jnp.float32)
                             + fcb_ref[...])

    # ---- vmem limit from actual block/scratch sizes (x2 double-buffering) --
    blocks = [((1, dp, s, kp), jnp.bfloat16),
              ((n_kd, kp, c), jnp.bfloat16),
              ((1, c), jnp.float32), ((1, c), jnp.float32),
              ((c, nc), jnp.float32), ((1, nc), jnp.float32),
              ((1, dpo, hpo, wpo * c), jnp.float32),
              ((1, 1, nc), jnp.float32)]
    vmem_need = (2 * sum(_tile_bytes(sh, dt) for sh, dt in blocks)
                 + _tile_bytes((do, hpo, wpo, c), jnp.float32))
    vmem_limit = int(min(max(int(vmem_need * 1.5) + (2 << 20), 8 << 20), 64 << 20))

    pooled_m, logits = pl.pallas_call(
        kernel,
        out_shape=(
            jax.ShapeDtypeStruct((n, dpo, hpo, wpo * c), jnp.float32),
            jax.ShapeDtypeStruct((n, 1, nc), jnp.float32),
        ),
        grid=(n, n_jd),
        in_specs=[
            # whole unfolded sample resident across the depth ('arbitrary') axis
            pl.BlockSpec((1, dp, s, kp), lambda i, j: (i, 0, 0, 0)),
            pl.BlockSpec((n_kd, kp, c), lambda i, j: (0, 0, 0)),
            pl.BlockSpec((1, c), lambda i, j: (0, 0)),
            pl.BlockSpec((1, c), lambda i, j: (0, 0)),
            pl.BlockSpec((c, nc), lambda i, j: (0, 0)),
            pl.BlockSpec((1, nc), lambda i, j: (0, 0)),
        ],
        out_specs=(
            pl.BlockSpec((1, dpo, hpo, wpo * c), lambda i, j: (i, 0, 0, 0)),
            pl.BlockSpec((1, 1, nc), lambda i, j: (i, 0, 0)),
        ),
        scratch_shapes=[pltpu.VMEM((do, hpo, wpo, c), jnp.float32)],
        compiler_params=pltpu.CompilerParams(
            dimension_semantics=("parallel", "arbitrary"),
            vmem_limit_bytes=vmem_limit,
        ),
    )(x_unf, w_taps, bn_scale, bn_shift, fc_w, fc_b)

    pooled = pooled_m.reshape(n, dpo, hpo, wpo, c)
    return pooled, logits.reshape(n, nc)


def base_resnet_stem(x_ncdhw, params):
    x_unf, dims = _prep_input(x_ncdhw)
    w_taps = _prep_weight(params["conv1_w"])
    scale, shift = _bn_fold(params)
    c = params["conv1_w"].shape[-1]
    nc = params["fc_w"].shape[-1]
    pooled, logits = stem_fused(
        x_unf, w_taps,
        scale.reshape(1, c).astype(jnp.float32),
        shift.reshape(1, c).astype(jnp.float32),
        params["fc_w"].astype(jnp.float32),
        params["fc_b"].reshape(1, nc).astype(jnp.float32),
        dims)
    return pooled, logits


def base_resnet_forward(x_ncdhw, params, features_only=False):
    pooled_ndhwc, logits = base_resnet_stem(x_ncdhw, params)
    if features_only:
        # TODO(synk): layer1..layer4 outputs (x1..x4) are abstract in BaseResNet;
        # only the post-maxpool stem feature map is produced here.
        return jnp.transpose(pooled_ndhwc, (0, 4, 1, 2, 3))  # back to NCDHW
    return logits


# ----------------------------- pure-JAX reference --------------------------
def reference_forward(x_ncdhw, params):
    x = jnp.transpose(x_ncdhw, (0, 2, 3, 4, 1)).astype(jnp.bfloat16)
    w = params["conv1_w"].astype(jnp.bfloat16)
    y = lax.conv_general_dilated(
        x, w, window_strides=CONV_STRIDE,
        padding=[(CONV_PAD, CONV_PAD)] * 3,
        dimension_numbers=("NDHWC", "DHWIO", "NDHWC"),
        preferred_element_type=jnp.float32)
    scale, shift = _bn_fold(params)
    y = jnp.maximum(y * scale + shift, 0.0)
    y = lax.reduce_window(
        y, -jnp.inf, lax.max,
        window_dimensions=(1, POOL_K, POOL_K, POOL_K, 1),
        window_strides=(1, POOL_STRIDE, POOL_STRIDE, POOL_STRIDE, 1),
        padding=((0, 0), (1, 1), (1, 1), (1, 1), (0, 0)))
    feat = jnp.mean(y, axis=(1, 2, 3))
    logits = (jnp.dot(feat, params["fc_w"], precision=lax.Precision.HIGHEST)
              + params["fc_b"])
    return y, logits


# ----------------------------- main ----------------------------------------
if __name__ == "__main__":
    key = jax.random.PRNGKey(0)
    k_x, k_w, k_fc, k_m, k_v = jax.random.split(key, 5)

    N, D, H, W = 2, 8, 16, 16  # small NCDHW input consistent with the Conv3d stem
    x = jax.random.normal(k_x, (N, IN_CHANNELS, D, H, W), jnp.float32)

    # kaiming-normal fan_out conv init; BN per init_weights (gamma=1, beta=0)
    # with mildly non-trivial running stats to exercise the BN fold.
    fan_out = STEM_CH * CONV_K ** 3
    params = dict(
        conv1_w=jax.random.normal(
            k_w, (CONV_K, CONV_K, CONV_K, IN_CHANNELS, STEM_CH), jnp.float32)
        * np.sqrt(2.0 / fan_out),
        bn_gamma=jnp.ones((STEM_CH,), jnp.float32),
        bn_beta=jnp.zeros((STEM_CH,), jnp.float32),
        bn_mean=0.05 * jax.random.normal(k_m, (STEM_CH,), jnp.float32),
        bn_var=1.0 + 0.1 * jnp.abs(jax.random.normal(k_v, (STEM_CH,), jnp.float32)),
        fc_w=jax.random.normal(k_fc, (STEM_CH, NUM_CLASSES), jnp.float32)
        * (1.0 / np.sqrt(STEM_CH)),
        fc_b=jnp.zeros((NUM_CLASSES,), jnp.float32),
    )

    pooled, logits = base_resnet_stem(x, params)
    pooled, logits = jax.block_until_ready((pooled, logits))

    # NOTE: conv operands are bf16 (f32 accumulate) in both kernel and reference;
    # this is lower precision than a true f32 PyTorch Conv3d stem.
    pooled_ref, logits_ref = reference_forward(x, params)
    np.testing.assert_allclose(np.asarray(pooled), np.asarray(pooled_ref),
                               rtol=2e-3, atol=2e-3)
    np.testing.assert_allclose(np.asarray(logits), np.asarray(logits_ref),
                               rtol=2e-3, atol=2e-3)

    # exercise the features_only path once as well
    feats = jax.block_until_ready(base_resnet_forward(x, params, features_only=True))
    assert feats.shape == (N, STEM_CH) + pooled.shape[1:4]

    print("KERNEL_OK")
</pallas_src>

<mosaic_0001>
module attributes {stable_mosaic.version = 11 : i64} {
  func.func @kernel(%arg0: i32, %arg1: i32, %arg2: memref<1x14x64x256xbf16, #tpu.memory_space<vmem>>, %arg3: memref<7x256x64xbf16, #tpu.memory_space<vmem>>, %arg4: memref<1x64xf32, #tpu.memory_space<vmem>>, %arg5: memref<1x64xf32, #tpu.memory_space<vmem>>, %arg6: memref<64x10xf32, #tpu.memory_space<vmem>>, %arg7: memref<1x10xf32, #tpu.memory_space<vmem>>, %arg8: memref<1x4x4x256xf32, #tpu.memory_space<vmem>>, %arg9: memref<1x1x10xf32, #tpu.memory_space<vmem>>, %arg10: memref<8x4x4x64xf32, #tpu.memory_space<vmem>>) attributes {dimension_semantics = [#tpu.dimension_semantics<parallel>, #tpu.dimension_semantics<arbitrary>], iteration_bounds = array<i64: 2, 2>, scalar_prefetch = 0 : i64, scratch_operands = 1 : i64, tpu.core_type = #tpu.core_type<tc>, window_params = [{transform_indices = @transform_0, window_bounds = array<i64: 1, 14, 64, 256>}, {pipeline_mode = #tpu.pipeline_mode<synchronous>, transform_indices = @transform_1, window_bounds = array<i64: 7, 256, 64>}, {pipeline_mode = #tpu.pipeline_mode<synchronous>, transform_indices = @transform_2, window_bounds = array<i64: 1, 64>}, {pipeline_mode = #tpu.pipeline_mode<synchronous>, transform_indices = @transform_3, window_bounds = array<i64: 1, 64>}, {pipeline_mode = #tpu.pipeline_mode<synchronous>, transform_indices = @transform_4, window_bounds = array<i64: 64, 10>}, {pipeline_mode = #tpu.pipeline_mode<synchronous>, transform_indices = @transform_5, window_bounds = array<i64: 1, 10>}, {transform_indices = @transform_6, window_bounds = array<i64: 1, 4, 4, 256>}, {transform_indices = @transform_7, window_bounds = array<i64: 1, 1, 10>}]} {
    %c4_i32 = arith.constant 4 : i32
    %0 = arith.muli %arg1, %c4_i32 : i32
    %cst = arith.constant 0.000000e+00 : f32
    %1 = vector.broadcast %cst : f32 to vector<256x64xf32>
    %c0_i32 = arith.constant 0 : i32
    %2 = arith.addi %0, %c0_i32 : i32
    %c0 = arith.constant 0 : index
    %3 = arith.index_cast %2 : i32 to index
    %c0_0 = arith.constant 0 : index
    %c0_1 = arith.constant 0 : index
    %4 = vector.load %arg2[%c0, %3, %c0_0, %c0_1] : memref<1x14x64x256xbf16, #tpu.memory_space<vmem>>, vector<1x4x64x256xbf16>
    %5 = vector.shape_cast %4 : vector<1x4x64x256xbf16> to vector<4x64x256xbf16>
    %6 = vector.shape_cast %5 : vector<4x64x256xbf16> to vector<256x256xbf16>
    %7 = arith.index_cast %c0_i32 : i32 to index
    %c0_2 = arith.constant 0 : index
    %c0_3 = arith.constant 0 : index
    %8 = vector.load %arg3[%7, %c0_2, %c0_3] : memref<7x256x64xbf16, #tpu.memory_space<vmem>>, vector<1x256x64xbf16>
    %9 = vector.shape_cast %8 : vector<1x256x64xbf16> to vector<256x64xbf16>
    %cst_4 = arith.constant dense<0.000000e+00> : vector<256x64xf32>
    %10 = tpu.matmul %6, %9, %cst_4 {dimension_numbers = #tpu.dot_dimension_numbers<[1], [0], [0], [1], [0, 0, 1, 1], [], []>} : vector<256x256xbf16>, vector<256x64xbf16>, vector<256x64xf32> -> vector<256x64xf32>
    %11 = arith.addf %1, %10 : vector<256x64xf32>
    %c1_i32 = arith.constant 1 : i32
    %12 = arith.addi %0, %c1_i32 : i32
    %c0_5 = arith.constant 0 : index
    %13 = arith.index_cast %12 : i32 to index
    %c0_6 = arith.constant 0 : index
    %c0_7 = arith.constant 0 : index
    %14 = vector.load %arg2[%c0_5, %13, %c0_6, %c0_7] : memref<1x14x64x256xbf16, #tpu.memory_space<vmem>>, vector<1x4x64x256xbf16>
    %15 = vector.shape_cast %14 : vector<1x4x64x256xbf16> to vector<4x64x256xbf16>
    %16 = vector.shape_cast %15 : vector<4x64x256xbf16> to vector<256x256xbf16>
    %17 = arith.index_cast %c1_i32 : i32 to index
    %c0_8 = arith.constant 0 : index
    %c0_9 = arith.constant 0 : index
    %18 = vector.load %arg3[%17, %c0_8, %c0_9] : memref<7x256x64xbf16, #tpu.memory_space<vmem>>, vector<1x256x64xbf16>
    %19 = vector.shape_cast %18 : vector<1x256x64xbf16> to vector<256x64xbf16>
    %cst_10 = arith.constant dense<0.000000e+00> : vector<256x64xf32>
    %20 = tpu.matmul %16, %19, %cst_10 {dimension_numbers = #tpu.dot_dimension_numbers<[1], [0], [0], [1], [0, 0, 1, 1], [], []>} : vector<256x256xbf16>, vector<256x64xbf16>, vector<256x64xf32> -> vector<256x64xf32>
    %21 = arith.addf %11, %20 : vector<256x64xf32>
    %c2_i32 = arith.constant 2 : i32
    %22 = arith.addi %0, %c2_i32 : i32
    %c0_11 = arith.constant 0 : index
    %23 = arith.index_cast %22 : i32 to index
    %c0_12 = arith.constant 0 : index
    %c0_13 = arith.constant 0 : index
    %24 = vector.load %arg2[%c0_11, %23, %c0_12, %c0_13] : memref<1x14x64x256xbf16, #tpu.memory_space<vmem>>, vector<1x4x64x256xbf16>
    %25 = vector.shape_cast %24 : vector<1x4x64x256xbf16> to vector<4x64x256xbf16>
    %26 = vector.shape_cast %25 : vector<4x64x256xbf16> to vector<256x256xbf16>
    %27 = arith.index_cast %c2_i32 : i32 to index
    %c0_14 = arith.constant 0 : index
    %c0_15 = arith.constant 0 : index
    %28 = vector.load %arg3[%27, %c0_14, %c0_15] : memref<7x256x64xbf16, #tpu.memory_space<vmem>>, vector<1x256x64xbf16>
    %29 = vector.shape_cast %28 : vector<1x256x64xbf16> to vector<256x64xbf16>
    %cst_16 = arith.constant dense<0.000000e+00> : vector<256x64xf32>
    %30 = tpu.matmul %26, %29, %cst_16 {dimension_numbers = #tpu.dot_dimension_numbers<[1], [0], [0], [1], [0, 0, 1, 1], [], []>} : vector<256x256xbf16>, vector<256x64xbf16>, vector<256x64xf32> -> vector<256x64xf32>
    %31 = arith.addf %21, %30 : vector<256x64xf32>
    %c3_i32 = arith.constant 3 : i32
    %32 = arith.addi %0, %c3_i32 : i32
    %c0_17 = arith.constant 0 : index
    %33 = arith.index_cast %32 : i32 to index
    %c0_18 = arith.constant 0 : index
    %c0_19 = arith.constant 0 : index
    %34 = vector.load %arg2[%c0_17, %33, %c0_18, %c0_19] : memref<1x14x64x256xbf16, #tpu.memory_space<vmem>>, vector<1x4x64x256xbf16>
    %35 = vector.shape_cast %34 : vector<1x4x64x256xbf16> to vector<4x64x256xbf16>
    %36 = vector.shape_cast %35 : vector<4x64x256xbf16> to vector<256x256xbf16>
    %37 = arith.index_cast %c3_i32 : i32 to index
    %c0_20 = arith.constant 0 : index
    %c0_21 = arith.constant 0 : index
    %38 = vector.load %arg3[%37, %c0_20, %c0_21] : memref<7x256x64xbf16, #tpu.memory_space<vmem>>, vector<1x256x64xbf16>
    %39 = vector.shape_cast %38 : vector<1x256x64xbf16> to vector<256x64xbf16>
    %cst_22 = arith.constant dense<0.000000e+00> : vector<256x64xf32>
    %40 = tpu.matmul %36, %39, %cst_22 {dimension_numbers = #tpu.dot_dimension_numbers<[1], [0], [0], [1], [0, 0, 1, 1], [], []>} : vector<256x256xbf16>, vector<256x64xbf16>, vector<256x64xf32> -> vector<256x64xf32>
    %41 = arith.addf %31, %40 : vector<256x64xf32>
    %c4_i32_23 = arith.constant 4 : i32
    %42 = arith.addi %0, %c4_i32_23 : i32
    %c0_24 = arith.constant 0 : index
    %43 = arith.index_cast %42 : i32 to index
    %c0_25 = arith.constant 0 : index
    %c0_26 = arith.constant 0 : index
    %44 = vector.load %arg2[%c0_24, %43, %c0_25, %c0_26] : memref<1x14x64x256xbf16, #tpu.memory_space<vmem>>, vector<1x4x64x256xbf16>
    %45 = vector.shape_cast %44 : vector<1x4x64x256xbf16> to vector<4x64x256xbf16>
    %46 = vector.shape_cast %45 : vector<4x64x256xbf16> to vector<256x256xbf16>
    %47 = arith.index_cast %c4_i32_23 : i32 to index
    %c0_27 = arith.constant 0 : index
    %c0_28 = arith.constant 0 : index
    %48 = vector.load %arg3[%47, %c0_27, %c0_28] : memref<7x256x64xbf16, #tpu.memory_space<vmem>>, vector<1x256x64xbf16>
    %49 = vector.shape_cast %48 : vector<1x256x64xbf16> to vector<256x64xbf16>
    %cst_29 = arith.constant dense<0.000000e+00> : vector<256x64xf32>
    %50 = tpu.matmul %46, %49, %cst_29 {dimension_numbers = #tpu.dot_dimension_numbers<[1], [0], [0], [1], [0, 0, 1, 1], [], []>} : vector<256x256xbf16>, vector<256x64xbf16>, vector<256x64xf32> -> vector<256x64xf32>
    %51 = arith.addf %41, %50 : vector<256x64xf32>
    %c5_i32 = arith.constant 5 : i32
    %52 = arith.addi %0, %c5_i32 : i32
    %c0_30 = arith.constant 0 : index
    %53 = arith.index_cast %52 : i32 to index
    %c0_31 = arith.constant 0 : index
    %c0_32 = arith.constant 0 : index
    %54 = vector.load %arg2[%c0_30, %53, %c0_31, %c0_32] : memref<1x14x64x256xbf16, #tpu.memory_space<vmem>>, vector<1x4x64x256xbf16>
    %55 = vector.shape_cast %54 : vector<1x4x64x256xbf16> to vector<4x64x256xbf16>
    %56 = vector.shape_cast %55 : vector<4x64x256xbf16> to vector<256x256xbf16>
    %57 = arith.index_cast %c5_i32 : i32 to index
    %c0_33 = arith.constant 0 : index
    %c0_34 = arith.constant 0 : index
    %58 = vector.load %arg3[%57, %c0_33, %c0_34] : memref<7x256x64xbf16, #tpu.memory_space<vmem>>, vector<1x256x64xbf16>
    %59 = vector.shape_cast %58 : vector<1x256x64xbf16> to vector<256x64xbf16>
    %cst_35 = arith.constant dense<0.000000e+00> : vector<256x64xf32>
    %60 = tpu.matmul %56, %59, %cst_35 {dimension_numbers = #tpu.dot_dimension_numbers<[1], [0], [0], [1], [0, 0, 1, 1], [], []>} : vector<256x256xbf16>, vector<256x64xbf16>, vector<256x64xf32> -> vector<256x64xf32>
    %61 = arith.addf %51, %60 : vector<256x64xf32>
    %c6_i32 = arith.constant 6 : i32
    %62 = arith.addi %0, %c6_i32 : i32
    %c0_36 = arith.constant 0 : index
    %63 = arith.index_cast %62 : i32 to index
    %c0_37 = arith.constant 0 : index
    %c0_38 = arith.constant 0 : index
    %64 = vector.load %arg2[%c0_36, %63, %c0_37, %c0_38] : memref<1x14x64x256xbf16, #tpu.memory_space<vmem>>, vector<1x4x64x256xbf16>
    %65 = vector.shape_cast %64 : vector<1x4x64x256xbf16> to vector<4x64x256xbf16>
    %66 = vector.shape_cast %65 : vector<4x64x256xbf16> to vector<256x256xbf16>
    %67 = arith.index_cast %c6_i32 : i32 to index
    %c0_39 = arith.constant 0 : index
    %c0_40 = arith.constant 0 : index
    %68 = vector.load %arg3[%67, %c0_39, %c0_40] : memref<7x256x64xbf16, #tpu.memory_space<vmem>>, vector<1x256x64xbf16>
    %69 = vector.shape_cast %68 : vector<1x256x64xbf16> to vector<256x64xbf16>
    %cst_41 = arith.constant dense<0.000000e+00> : vector<256x64xf32>
    %70 = tpu.matmul %66, %69, %cst_41 {dimension_numbers = #tpu.dot_dimension_numbers<[1], [0], [0], [1], [0, 0, 1, 1], [], []>} : vector<256x256xbf16>, vector<256x64xbf16>, vector<256x64xf32> -> vector<256x64xf32>
    %71 = arith.addf %61, %70 : vector<256x64xf32>
    %c7_i32 = arith.constant 7 : i32
    %c0_42 = arith.constant 0 : index
    %c0_43 = arith.constant 0 : index
    %72 = vector.load %arg4[%c0_42, %c0_43] : memref<1x64xf32, #tpu.memory_space<vmem>>, vector<1x64xf32>
    %73 = vector.broadcast %72 : vector<1x64xf32> to vector<256x64xf32>
    %74 = arith.mulf %71, %73 : vector<256x64xf32>
    %c0_44 = arith.constant 0 : index
    %c0_45 = arith.constant 0 : index
    %75 = vector.load %arg5[%c0_44, %c0_45] : memref<1x64xf32, #tpu.memory_space<vmem>>, vector<1x64xf32>
    %76 = vector.broadcast %75 : vector<1x64xf32> to vector<256x64xf32>
    %77 = arith.addf %74, %76 : vector<256x64xf32>
    %cst_46 = arith.constant 0.000000e+00 : f32
    %78 = vector.broadcast %cst_46 : f32 to vector<256x64xf32>
    %79 = arith.maximumf %77, %78 : vector<256x64xf32>
    %80 = vector.shape_cast %79 : vector<256x64xf32> to vector<4x8x8x64xf32>
    %81 = vector.extract_strided_slice %80 {offsets = [0, 0, 0, 0], sizes = [4, 1, 8, 64], strides = [1, 1, 1, 1]} : vector<4x8x8x64xf32> to vector<4x1x8x64xf32>
    %82 = vector.extract_strided_slice %80 {offsets = [0, 1, 0, 0], sizes = [4, 1, 8, 64], strides = [1, 1, 1, 1]} : vector<4x8x8x64xf32> to vector<4x1x8x64xf32>
    %83 = arith.maximumf %81, %82 : vector<4x1x8x64xf32>
    %84 = vector.extract_strided_slice %80 {offsets = [0, 1, 0, 0], sizes = [4, 1, 8, 64], strides = [1, 1, 1, 1]} : vector<4x8x8x64xf32> to vector<4x1x8x64xf32>
    %85 = vector.extract_strided_slice %80 {offsets = [0, 2, 0, 0], sizes = [4, 1, 8, 64], strides = [1, 1, 1, 1]} : vector<4x8x8x64xf32> to vector<4x1x8x64xf32>
    %86 = arith.maximumf %84, %85 : vector<4x1x8x64xf32>
    %87 = vector.extract_strided_slice %80 {offsets = [0, 3, 0, 0], sizes = [4, 1, 8, 64], strides = [1, 1, 1, 1]} : vector<4x8x8x64xf32> to vector<4x1x8x64xf32>
    %88 = arith.maximumf %86, %87 : vector<4x1x8x64xf32>
    %89 = vector.extract_strided_slice %80 {offsets = [0, 3, 0, 0], sizes = [4, 1, 8, 64], strides = [1, 1, 1, 1]} : vector<4x8x8x64xf32> to vector<4x1x8x64xf32>
    %90 = vector.extract_strided_slice %80 {offsets = [0, 4, 0, 0], sizes = [4, 1, 8, 64], strides = [1, 1, 1, 1]} : vector<4x8x8x64xf32> to vector<4x1x8x64xf32>
    %91 = arith.maximumf %89, %90 : vector<4x1x8x64xf32>
    %92 = vector.extract_strided_slice %80 {offsets = [0, 5, 0, 0], sizes = [4, 1, 8, 64], strides = [1, 1, 1, 1]} : vector<4x8x8x64xf32> to vector<4x1x8x64xf32>
    %93 = arith.maximumf %91, %92 : vector<4x1x8x64xf32>
    %94 = vector.extract_strided_slice %80 {offsets = [0, 5, 0, 0], sizes = [4, 1, 8, 64], strides = [1, 1, 1, 1]} : vector<4x8x8x64xf32> to vector<4x1x8x64xf32>
    %95 = vector.extract_strided_slice %80 {offsets = [0, 6, 0, 0], sizes = [4, 1, 8, 64], strides = [1, 1, 1, 1]} : vector<4x8x8x64xf32> to vector<4x1x8x64xf32>
    %96 = arith.maximumf %94, %95 : vector<4x1x8x64xf32>
    %97 = vector.extract_strided_slice %80 {offsets = [0, 7, 0, 0], sizes = [4, 1, 8, 64], strides = [1, 1, 1, 1]} : vector<4x8x8x64xf32> to vector<4x1x8x64xf32>
    %98 = arith.maximumf %96, %97 : vector<4x1x8x64xf32>
    %99 = tpu.concatenate %83, %88, %93, %98 in 1 : vector<4x1x8x64xf32>, vector<4x1x8x64xf32>, vector<4x1x8x64xf32>, vector<4x1x8x64xf32> -> vector<4x4x8x64xf32>
    %100 = vector.extract_strided_slice %99 {offsets = [0, 0, 0, 0], sizes = [4, 4, 1, 64], strides = [1, 1, 1, 1]} : vector<4x4x8x64xf32> to vector<4x4x1x64xf32>
    %101 = vector.extract_strided_slice %99 {offsets = [0, 0, 1, 0], sizes = [4, 4, 1, 64], strides = [1, 1, 1, 1]} : vector<4x4x8x64xf32> to vector<4x4x1x64xf32>
    %102 = arith.maximumf %100, %101 : vector<4x4x1x64xf32>
    %103 = vector.extract_strided_slice %99 {offsets = [0, 0, 1, 0], sizes = [4, 4, 1, 64], strides = [1, 1, 1, 1]} : vector<4x4x8x64xf32> to vector<4x4x1x64xf32>
    %104 = vector.extract_strided_slice %99 {offsets = [0, 0, 2, 0], sizes = [4, 4, 1, 64], strides = [1, 1, 1, 1]} : vector<4x4x8x64xf32> to vector<4x4x1x64xf32>
    %105 = arith.maximumf %103, %104 : vector<4x4x1x64xf32>
    %106 = vector.extract_strided_slice %99 {offsets = [0, 0, 3, 0], sizes = [4, 4, 1, 64], strides = [1, 1, 1, 1]} : vector<4x4x8x64xf32> to vector<4x4x1x64xf32>
    %107 = arith.maximumf %105, %106 : vector<4x4x1x64xf32>
    %108 = vector.extract_strided_slice %99 {offsets = [0, 0, 3, 0], sizes = [4, 4, 1, 64], strides = [1, 1, 1, 1]} : vector<4x4x8x64xf32> to vector<4x4x1x64xf32>
    %109 = vector.extract_strided_slice %99 {offsets = [0, 0, 4, 0], sizes = [4, 4, 1, 64], strides = [1, 1, 1, 1]} : vector<4x4x8x64xf32> to vector<4x4x1x64xf32>
    %110 = arith.maximumf %108, %109 : vector<4x4x1x64xf32>
    %111 = vector.extract_strided_slice %99 {offsets = [0, 0, 5, 0], sizes = [4, 4, 1, 64], strides = [1, 1, 1, 1]} : vector<4x4x8x64xf32> to vector<4x4x1x64xf32>
    %112 = arith.maximumf %110, %111 : vector<4x4x1x64xf32>
    %113 = vector.extract_strided_slice %99 {offsets = [0, 0, 5, 0], sizes = [4, 4, 1, 64], strides = [1, 1, 1, 1]} : vector<4x4x8x64xf32> to vector<4x4x1x64xf32>
    %114 = vector.extract_strided_slice %99 {offsets = [0, 0, 6, 0], sizes = [4, 4, 1, 64], strides = [1, 1, 1, 1]} : vector<4x4x8x64xf32> to vector<4x4x1x64xf32>
    %115 = arith.maximumf %113, %114 : vector<4x4x1x64xf32>
    %116 = vector.extract_strided_slice %99 {offsets = [0, 0, 7, 0], sizes = [4, 4, 1, 64], strides = [1, 1, 1, 1]} : vector<4x4x8x64xf32> to vector<4x4x1x64xf32>
    %117 = arith.maximumf %115, %116 : vector<4x4x1x64xf32>
    %118 = tpu.concatenate %102, %107, %112, %117 in 2 : vector<4x4x1x64xf32>, vector<4x4x1x64xf32>, vector<4x4x1x64xf32>, vector<4x4x1x64xf32> -> vector<4x4x4x64xf32>
    %119 = arith.index_cast %0 : i32 to index
    %c0_47 = arith.constant 0 : index
    %c0_48 = arith.constant 0 : index
    %c0_49 = arith.constant 0 : index
    %120 = vector.load %arg10[%119, %c0_47, %c0_48, %c0_49] : memref<8x4x4x64xf32, #tpu.memory_space<vmem>>, vector<4x4x4x64xf32>
    tpu.vector_store %arg10[%119, %c0_47, %c0_48, %c0_49], %118 {strides = array<i32>} : memref<8x4x4x64xf32, #tpu.memory_space<vmem>>, vector<4x4x4x64xf32>,
    %c1_i32_50 = arith.constant 1 : i32
    %121 = arith.cmpi eq, %arg1, %c1_i32_50 : i32
    %122 = arith.extui %121 : i1 to i32
    %c0_i32_51 = arith.constant 0 : i32
    %123 = arith.cmpi ne, %122, %c0_i32_51 : i32
    scf.if %123 {
      %c0_52 = arith.constant 0 : index
      %c0_53 = arith.constant 0 : index
      %c0_54 = arith.constant 0 : index
      %c0_55 = arith.constant 0 : index
      %124 = vector.load %arg10[%c0_52, %c0_53, %c0_54, %c0_55] : memref<8x4x4x64xf32, #tpu.memory_space<vmem>>, vector<8x4x4x64xf32>
      %125 = vector.extract_strided_slice %124 {offsets = [0, 0, 0, 0], sizes = [1, 4, 4, 64], strides = [1, 1, 1, 1]} : vector<8x4x4x64xf32> to vector<1x4x4x64xf32>
      %126 = vector.extract_strided_slice %124 {offsets = [1, 0, 0, 0], sizes = [1, 4, 4, 64], strides = [1, 1, 1, 1]} : vector<8x4x4x64xf32> to vector<1x4x4x64xf32>
      %127 = arith.maximumf %125, %126 : vector<1x4x4x64xf32>
      %128 = vector.extract_strided_slice %124 {offsets = [1, 0, 0, 0], sizes = [1, 4, 4, 64], strides = [1, 1, 1, 1]} : vector<8x4x4x64xf32> to vector<1x4x4x64xf32>
      %129 = vector.extract_strided_slice %124 {offsets = [2, 0, 0, 0], sizes = [1, 4, 4, 64], strides = [1, 1, 1, 1]} : vector<8x4x4x64xf32> to vector<1x4x4x64xf32>
      %130 = arith.maximumf %128, %129 : vector<1x4x4x64xf32>
      %131 = vector.extract_strided_slice %124 {offsets = [3, 0, 0, 0], sizes = [1, 4, 4, 64], strides = [1, 1, 1, 1]} : vector<8x4x4x64xf32> to vector<1x4x4x64xf32>
      %132 = arith.maximumf %130, %131 : vector<1x4x4x64xf32>
      %133 = vector.extract_strided_slice %124 {offsets = [3, 0, 0, 0], sizes = [1, 4, 4, 64], strides = [1, 1, 1, 1]} : vector<8x4x4x64xf32> to vector<1x4x4x64xf32>
      %134 = vector.extract_strided_slice %124 {offsets = [4, 0, 0, 0], sizes = [1, 4, 4, 64], strides = [1, 1, 1, 1]} : vector<8x4x4x64xf32> to vector<1x4x4x64xf32>
      %135 = arith.maximumf %133, %134 : vector<1x4x4x64xf32>
      %136 = vector.extract_strided_slice %124 {offsets = [5, 0, 0, 0], sizes = [1, 4, 4, 64], strides = [1, 1, 1, 1]} : vector<8x4x4x64xf32> to vector<1x4x4x64xf32>
      %137 = arith.maximumf %135, %136 : vector<1x4x4x64xf32>
      %138 = vector.extract_strided_slice %124 {offsets = [5, 0, 0, 0], sizes = [1, 4, 4, 64], strides = [1, 1, 1, 1]} : vector<8x4x4x64xf32> to vector<1x4x4x64xf32>
      %139 = vector.extract_strided_slice %124 {offsets = [6, 0, 0, 0], sizes = [1, 4, 4, 64], strides = [1, 1, 1, 1]} : vector<8x4x4x64xf32> to vector<1x4x4x64xf32>
      %140 = arith.maximumf %138, %139 : vector<1x4x4x64xf32>
      %141 = vector.extract_strided_slice %124 {offsets = [7, 0, 0, 0], sizes = [1, 4, 4, 64], strides = [1, 1, 1, 1]} : vector<8x4x4x64xf32> to vector<1x4x4x64xf32>
      %142 = arith.maximumf %140, %141 : vector<1x4x4x64xf32>
      %143 = tpu.concatenate %127, %132, %137, %142 in 0 : vector<1x4x4x64xf32>, vector<1x4x4x64xf32>, vector<1x4x4x64xf32>, vector<1x4x4x64xf32> -> vector<4x4x4x64xf32>
      %144 = vector.extract_strided_slice %143 {offsets = [0, 0, 0, 0], sizes = [4, 4, 1, 64], strides = [1, 1, 1, 1]} : vector<4x4x4x64xf32> to vector<4x4x1x64xf32>
      %145 = vector.shape_cast %144 : vector<4x4x1x64xf32> to vector<4x4x64xf32>
      %146 = vector.extract_strided_slice %143 {offsets = [0, 0, 1, 0], sizes = [4, 4, 1, 64], strides = [1, 1, 1, 1]} : vector<4x4x4x64xf32> to vector<4x4x1x64xf32>
      %147 = vector.shape_cast %146 : vector<4x4x1x64xf32> to vector<4x4x64xf32>
      %148 = vector.extract_strided_slice %143 {offsets = [0, 0, 2, 0], sizes = [4, 4, 1, 64], strides = [1, 1, 1, 1]} : vector<4x4x4x64xf32> to vector<4x4x1x64xf32>
      %149 = vector.shape_cast %148 : vector<4x4x1x64xf32> to vector<4x4x64xf32>
      %150 = vector.extract_strided_slice %143 {offsets = [0, 0, 3, 0], sizes = [4, 4, 1, 64], strides = [1, 1, 1, 1]} : vector<4x4x4x64xf32> to vector<4x4x1x64xf32>
      %151 = vector.shape_cast %150 : vector<4x4x1x64xf32> to vector<4x4x64xf32>
      %152 = tpu.concatenate %145, %147, %149, %151 in 2 : vector<4x4x64xf32>, vector<4x4x64xf32>, vector<4x4x64xf32>, vector<4x4x64xf32> -> vector<4x4x256xf32>
      %c0_56 = arith.constant 0 : index
      %c0_57 = arith.constant 0 : index
      %c0_58 = arith.constant 0 : index
      %c0_59 = arith.constant 0 : index
      %153 = vector.load %arg8[%c0_56, %c0_57, %c0_58, %c0_59] : memref<1x4x4x256xf32, #tpu.memory_space<vmem>>, vector<1x4x4x256xf32>
      %154 = vector.shape_cast %153 : vector<1x4x4x256xf32> to vector<4x4x256xf32>
      %155 = vector.shape_cast %152 : vector<4x4x256xf32> to vector<1x4x4x256xf32>
      tpu.vector_store %arg8[%c0_56, %c0_57, %c0_58, %c0_59], %155 {strides = array<i32>} : memref<1x4x4x256xf32, #tpu.memory_space<vmem>>, vector<1x4x4x256xf32>,
      %cst_60 = arith.constant dense<0.000000e+00> : vector<4x4x64xf32>
      %156 = vector.multi_reduction <add>, %143, %cst_60 [0] : vector<4x4x4x64xf32> to vector<4x4x64xf32>
      %cst_61 = arith.constant 4.000000e+00 : f32
      %157 = vector.broadcast %cst_61 : f32 to vector<4x4x64xf32>
      %158 = arith.divf %156, %157 : vector<4x4x64xf32>
      %cst_62 = arith.constant dense<0.000000e+00> : vector<4x64xf32>
      %159 = vector.multi_reduction <add>, %158, %cst_62 [0] : vector<4x4x64xf32> to vector<4x64xf32>
      %cst_63 = arith.constant 4.000000e+00 : f32
      %160 = vector.broadcast %cst_63 : f32 to vector<4x64xf32>
      %161 = arith.divf %159, %160 : vector<4x64xf32>
      %cst_64 = arith.constant dense<0.000000e+00> : vector<64xf32>
      %162 = vector.multi_reduction <add>, %161, %cst_64 [0] : vector<4x64xf32> to vector<64xf32>
      %163 = vector.shape_cast %162 : vector<64xf32> to vector<1x64xf32>
      %cst_65 = arith.constant 4.000000e+00 : f32
      %164 = vector.broadcast %cst_65 : f32 to vector<1x64xf32>
      %165 = arith.divf %163, %164 : vector<1x64xf32>
      %c0_66 = arith.constant 0 : index
      %c0_67 = arith.constant 0 : index
      %166 = vector.load %arg6[%c0_66, %c0_67] : memref<64x10xf32, #tpu.memory_space<vmem>>, vector<64x10xf32>
      %cst_68 = arith.constant dense<0.000000e+00> : vector<1x10xf32>
      %167 = tpu.matmul %165, %166, %cst_68 {dimension_numbers = #tpu.dot_dimension_numbers<[1], [0], [0], [1], [0, 0, 1, 1], [], []>} : vector<1x64xf32>, vector<64x10xf32>, vector<1x10xf32> -> vector<1x10xf32>
      %c0_69 = arith.constant 0 : index
      %c0_70 = arith.constant 0 : index
      %168 = vector.load %arg7[%c0_69, %c0_70] : memref<1x10xf32, #tpu.memory_space<vmem>>, vector<1x10xf32>
      %169 = arith.addf %167, %168 : vector<1x10xf32>
      %c0_71 = arith.constant 0 : index
      %c0_72 = arith.constant 0 : index
      %c0_73 = arith.constant 0 : index
      %170 = vector.load %arg9[%c0_71, %c0_72, %c0_73] : memref<1x1x10xf32, #tpu.memory_space<vmem>>, vector<1x1x10xf32>
      %171 = vector.shape_cast %170 : vector<1x1x10xf32> to vector<1x10xf32>
      %172 = vector.shape_cast %169 : vector<1x10xf32> to vector<1x1x10xf32>
      tpu.vector_store %arg9[%c0_71, %c0_72, %c0_73], %172 {strides = array<i32>} : memref<1x1x10xf32, #tpu.memory_space<vmem>>, vector<1x1x10xf32>,
    } else {
    }
    return
  }
  func.func @transform_0(%arg0: i32, %arg1: i32) -> (i32, i32, i32, i32) {
    %c0_i32 = arith.constant 0 : i32
    %c0_i32_0 = arith.constant 0 : i32
    %c0_i32_1 = arith.constant 0 : i32
    %c0_i32_2 = arith.constant 0 : i32
    return %arg0, %c0_i32, %c0_i32_0, %c0_i32_1 : i32, i32, i32, i32
  }
  func.func @transform_1(%arg0: i32, %arg1: i32) -> (i32, i32, i32) {
    %c0_i32 = arith.constant 0 : i32
    %c0_i32_0 = arith.constant 0 : i32
    %c0_i32_1 = arith.constant 0 : i32
    %c0_i32_2 = arith.constant 0 : i32
    return %c0_i32, %c0_i32_0, %c0_i32_1 : i32, i32, i32
  }
  func.func @transform_2(%arg0: i32, %arg1: i32) -> (i32, i32) {
    %c0_i32 = arith.constant 0 : i32
    %c0_i32_0 = arith.constant 0 : i32
    %c0_i32_1 = arith.constant 0 : i32
    return %c0_i32, %c0_i32_0 : i32, i32
  }
  func.func @transform_3(%arg0: i32, %arg1: i32) -> (i32, i32) {
    %c0_i32 = arith.constant 0 : i32
    %c0_i32_0 = arith.constant 0 : i32
    %c0_i32_1 = arith.constant 0 : i32
    return %c0_i32, %c0_i32_0 : i32, i32
  }
  func.func @transform_4(%arg0: i32, %arg1: i32) -> (i32, i32) {
    %c0_i32 = arith.constant 0 : i32
    %c0_i32_0 = arith.constant 0 : i32
    %c0_i32_1 = arith.constant 0 : i32
    return %c0_i32, %c0_i32_0 : i32, i32
  }
  func.func @transform_5(%arg0: i32, %arg1: i32) -> (i32, i32) {
    %c0_i32 = arith.constant 0 : i32
    %c0_i32_0 = arith.constant 0 : i32
    %c0_i32_1 = arith.constant 0 : i32
    return %c0_i32, %c0_i32_0 : i32, i32
  }
  func.func @transform_6(%arg0: i32, %arg1: i32) -> (i32, i32, i32, i32) {
    %c0_i32 = arith.constant 0 : i32
    %c0_i32_0 = arith.constant 0 : i32
    %c0_i32_1 = arith.constant 0 : i32
    %c0_i32_2 = arith.constant 0 : i32
    return %arg0, %c0_i32, %c0_i32_0, %c0_i32_1 : i32, i32, i32, i32
  }
  func.func @transform_7(%arg0: i32, %arg1: i32) -> (i32, i32, i32) {
    %c0_i32 = arith.constant 0 : i32
    %c0_i32_0 = arith.constant 0 : i32
    %c0_i32_1 = arith.constant 0 : i32
    return %arg0, %c0_i32, %c0_i32_0 : i32, i32, i32
  }
}

</mosaic_0001>

<llo_original>
// kernel: tpu_custom_call.1
$region0: #{tpu_custom_call.1}
  #allocation0 [shape = 'u32[]', space=smem, size = 0x4, offset = 0x4, fixed_abs, tag = 'smem constant byte address 0x4 - core index']
  #allocation1 [shape = 'u32[144,128]{1,0:T(1,128)}', space=vmem, size = 0x12000, scoped, tag = 'internal scratch']
  #allocation2 [shape = 'f32[8,4,4,64]{3,2,1,0:T(4,128)}', space=vmem, size = 0x10000, scoped, tag = 'scratch operand']
  %s0 = inlined_call_operand.hbm [shape: bf16[2,14,64,256], index: 0, kind: input, shape index: {}]
  %s1 = inlined_call_operand.vmem [shape: bf16[7,256,64], index: 1, kind: input, shape index: {}]
  %s2 = inlined_call_operand.vmem [shape: f32[1,64], index: 2, kind: input, shape index: {}]
  %s3 = inlined_call_operand.vmem [shape: f32[1,64], index: 3, kind: input, shape index: {}]
  %s4 = inlined_call_operand.vmem [shape: f32[64,10], index: 4, kind: input, shape index: {}]
  %s5 = inlined_call_operand.vmem [shape: f32[1,10], index: 5, kind: input, shape index: {}]
  %s6 = inlined_call_operand.hbm [shape: f32[2,4,4,256], index: 6, kind: output, shape index: {0}]
  %s7 = inlined_call_operand.hbm [shape: f32[2,1,10], index: 7, kind: output, shape index: {1}]
  %8 = xla_tuple %s6, %s7
  %s9 = sld [smem:[#allocation0]]
  $region73: #{tpu_custom_call.1} parent=0
    _
  %s11 = ssub.s32 1, %s9
  %s12 = scalar_select 0, %s11, %s9
  $region1: #{tpu_custom_call.1} parent=0
    #allocation3 [shape = 'u8[917504]{0}', space=vmem, size = 0xe0000, scoped, tag = 'input window, operand 0']
    #allocation4 [shape = 's32[2]{0}', space=sflag, size = 0x8, scoped, tag = 'scoped memory for tpu_custom_call.1']
    #allocation5 [shape = 's32[2]{0}', space=sflag, size = 0x8, scoped, tag = 'scoped memory for tpu_custom_call.1']
    #allocation6 [shape = 'u8[32768]{0}', space=vmem, size = 0x8000, scoped, tag = 'output window, operand 0']
    #allocation7 [shape = 'u8[1024]{0}', space=vmem, size = 0x400, scoped, tag = 'output window, operand 1']
    #allocation8 [shape = 's32[2]{0}', space=sflag, size = 0x8, scoped, tag = 'scoped memory for tpu_custom_call.1']
    %13 = vsyncpa [#allocation4], 0
    %s14 = scalar_lea.sflag [#allocation4], 1
    %15 = vsyncpa %s14, 0
    %16 = vsyncpa [#allocation5], 0
    %s17 = scalar_lea.sflag [#allocation5], 1
    %18 = vsyncpa %s17, 0
    %19 = vsyncpa [#allocation8], 0
    %s20 = scalar_lea.sflag [#allocation8], 1
    %21 = vsyncpa %s20, 0
    loop: start=0, step=1, limit=6
    $region2: #{tpu_custom_call.1} parent=1 // loop_pre_header
      _
    $region3: #{tpu_custom_call.1} parent=1 // loop_header
      %s23 = sphi 0, %s27
      %p24 = scmp.ge.s32.totalorder %s23, 6
      %s30 = sphi 0, %s42
      %s31 = sphi 0, %s38
      %s32 = sphi 0, %s30
      %s33 = sphi 0, %s31
      %s34 = sphi 0, %s32
      %s35 = sphi 0, %s33
      %s45 = sphi 0, %s47
      %s48 = sphi 0, %s45
      %s49 = sphi 0, %s48
      %s65 = sphi 0, %s49
      %s69 = sphi 0, %s69
      %s71 = sphi 0, %s69
      %s72 = sphi 0, %s71
      %s86 = sphi 0, %s72
      %s90 = sphi 0, %s90
      %s92 = sphi 0, %s90
      %s93 = sphi 0, %s92
      %s107 = sphi 0, %s93
      %s111 = sphi 0, %s111
      %s113 = sphi 0, %s111
      %s114 = sphi 0, %s113
      %s128 = sphi 0, %s114
      %s132 = sphi 0, %s132
      %s134 = sphi 0, %s132
      %s135 = sphi 0, %s134
      %s149 = sphi 0, %s135
      %s153 = sphi 0, %s153
      %s155 = sphi 0, %s153
      %s156 = sphi 0, %s155
      %s170 = sphi 0, %s156
      %s176 = sphi 0, %s178
      %s179 = sphi 0, %s176
      %s180 = sphi 0, %s179
      %s196 = sphi 0, %s180
      %s202 = sphi 0, %s204
      %s205 = sphi 0, %s202
      %s206 = sphi 0, %s205
      %s222 = sphi 0, %s206
    $region4: #{tpu_custom_call.1} parent=1 // loop_header_branch
      %26 = sbr.rel (%p24) target = $region8
    $region5: #{tpu_custom_call.1} parent=1 // loop_body
      %s28 = ssub.s32 %s23, 1
      %s29 = ssub.s32 %s23, 2
      %s36 = sadd.s32 1, %s31
      %p37 = scmp.ge.s32.totalorder %s36, 2
      %s38 = scalar_select %p37, 0, %s36
      %s39 = sadd.s32 1, %s30
      %s40 = scalar_select %p37, %s39, %s30
      %p41 = scmp.ge.s32.totalorder %s40, 2
      %s42 = scalar_select %p41, 0, %s40
      %s43 = ssub.s32 %s30, %s42
      %p44 = scmp.eq.s32.totalorder %s43, 0
      %s46 = sadd.s32 %s45, 1
      %s47 = scalar_select %p44, %s45, %s46
      %p50 = pneg %p44
      %p51 = scmp.eq.s32.totalorder %s23, 3
      %p52 = por %p50, %p51
      %p53 = scmp.ne.s32.totalorder %s45, %s48
      %p54 = scmp.eq.s32.totalorder %s23, 0
      %p55 = por %p53, %p54
      %p56 = scmp.ne.s32.totalorder %s45, %s48
      %p57 = scmp.eq.s32.totalorder %s28, 3
      %p58 = por %p56, %p57
      %p59 = scmp.ne.s32.totalorder %s48, %s49
      %p60 = scmp.eq.s32.totalorder %s28, 0
      %p61 = por %p59, %p60
      %p62 = scmp.ne.s32.totalorder %s48, %s49
      %p63 = scmp.eq.s32.totalorder %s29, 3
      %p64 = por %p62, %p63
      %p66 = scmp.ne.s32.totalorder %s49, %s65
      %p67 = scmp.eq.s32.totalorder %s29, 0
      %p68 = por %p66, %p67
      %s70 = sadd.s32 %s69, 1
      %p73 = scmp.eq.s32.totalorder %s23, 3
      %p74 = scmp.ne.s32.totalorder %s69, %s71
      %p75 = scmp.eq.s32.totalorder %s23, 0
      %p76 = por %p74, %p75
      %p77 = scmp.ne.s32.totalorder %s69, %s71
      %p78 = scmp.eq.s32.totalorder %s28, 3
      %p79 = por %p77, %p78
      %p80 = scmp.ne.s32.totalorder %s71, %s72
      %p81 = scmp.eq.s32.totalorder %s28, 0
      %p82 = por %p80, %p81
      %p83 = scmp.ne.s32.totalorder %s71, %s72
      %p84 = scmp.eq.s32.totalorder %s29, 3
      %p85 = por %p83, %p84
      %p87 = scmp.ne.s32.totalorder %s72, %s86
      %p88 = scmp.eq.s32.totalorder %s29, 0
      %p89 = por %p87, %p88
      %s91 = sadd.s32 %s90, 1
      %p94 = scmp.eq.s32.totalorder %s23, 3
      %p95 = scmp.ne.s32.totalorder %s90, %s92
      %p96 = scmp.eq.s32.totalorder %s23, 0
      %p97 = por %p95, %p96
      %p98 = scmp.ne.s32.totalorder %s90, %s92
      %p99 = scmp.eq.s32.totalorder %s28, 3
      %p100 = por %p98, %p99
      %p101 = scmp.ne.s32.totalorder %s92, %s93
      %p102 = scmp.eq.s32.totalorder %s28, 0
      %p103 = por %p101, %p102
      %p104 = scmp.ne.s32.totalorder %s92, %s93
      %p105 = scmp.eq.s32.totalorder %s29, 3
      %p106 = por %p104, %p105
      %p108 = scmp.ne.s32.totalorder %s93, %s107
      %p109 = scmp.eq.s32.totalorder %s29, 0
      %p110 = por %p108, %p109
      %s112 = sadd.s32 %s111, 1
      %p115 = scmp.eq.s32.totalorder %s23, 3
      %p116 = scmp.ne.s32.totalorder %s111, %s113
      %p117 = scmp.eq.s32.totalorder %s23, 0
      %p118 = por %p116, %p117
      %p119 = scmp.ne.s32.totalorder %s111, %s113
      %p120 = scmp.eq.s32.totalorder %s28, 3
      %p121 = por %p119, %p120
      %p122 = scmp.ne.s32.totalorder %s113, %s114
      %p123 = scmp.eq.s32.totalorder %s28, 0
      %p124 = por %p122, %p123
      %p125 = scmp.ne.s32.totalorder %s113, %s114
      %p126 = scmp.eq.s32.totalorder %s29, 3
      %p127 = por %p125, %p126
      %p129 = scmp.ne.s32.totalorder %s114, %s128
      %p130 = scmp.eq.s32.totalorder %s29, 0
      %p131 = por %p129, %p130
      %s133 = sadd.s32 %s132, 1
      %p136 = scmp.eq.s32.totalorder %s23, 3
      %p137 = scmp.ne.s32.totalorder %s132, %s134
      %p138 = scmp.eq.s32.totalorder %s23, 0
      %p139 = por %p137, %p138
      %p140 = scmp.ne.s32.totalorder %s132, %s134
      %p141 = scmp.eq.s32.totalorder %s28, 3
      %p142 = por %p140, %p141
      %p143 = scmp.ne.s32.totalorder %s134, %s135
      %p144 = scmp.eq.s32.totalorder %s28, 0
      %p145 = por %p143, %p144
      %p146 = scmp.ne.s32.totalorder %s134, %s135
      %p147 = scmp.eq.s32.totalorder %s29, 3
      %p148 = por %p146, %p147
      %p150 = scmp.ne.s32.totalorder %s135, %s149
      %p151 = scmp.eq.s32.totalorder %s29, 0
      %p152 = por %p150, %p151
      %s154 = sadd.s32 %s153, 1
      %p157 = scmp.eq.s32.totalorder %s23, 3
      %p158 = scmp.ne.s32.totalorder %s153, %s155
      %p159 = scmp.eq.s32.totalorder %s23, 0
      %p160 = por %p158, %p159
      %p161 = scmp.ne.s32.totalorder %s153, %s155
      %p162 = scmp.eq.s32.totalorder %s28, 3
      %p163 = por %p161, %p162
      %p164 = scmp.ne.s32.totalorder %s155, %s156
      %p165 = scmp.eq.s32.totalorder %s28, 0
      %p166 = por %p164, %p165
      %p167 = scmp.ne.s32.totalorder %s155, %s156
      %p168 = scmp.eq.s32.totalorder %s29, 3
      %p169 = por %p167, %p168
      %p171 = scmp.ne.s32.totalorder %s156, %s170
      %p172 = scmp.eq.s32.totalorder %s29, 0
      %p173 = por %p171, %p172
      %s174 = ssub.s32 %s30, %s42
      %p175 = scmp.eq.s32.totalorder %s174, 0
      %s177 = sadd.s32 %s176, 1
      %s178 = scalar_select %p175, %s176, %s177
      %p181 = pneg %p175
      %p182 = scmp.eq.s32.totalorder %s23, 3
      %p183 = por %p181, %p182
      %p184 = scmp.ne.s32.totalorder %s176, %s179
      %p185 = scmp.eq.s32.totalorder %s23, 0
      %p186 = por %p184, %p185
      %p187 = scmp.ne.s32.totalorder %s176, %s179
      %p188 = scmp.eq.s32.totalorder %s28, 3
      %p189 = por %p187, %p188
      %p190 = scmp.ne.s32.totalorder %s179, %s180
      %p191 = scmp.eq.s32.totalorder %s28, 0
      %p192 = por %p190, %p191
      %p193 = scmp.ne.s32.totalorder %s179, %s180
      %p194 = scmp.eq.s32.totalorder %s29, 3
      %p195 = por %p193, %p194
      %p197 = scmp.ne.s32.totalorder %s180, %s196
      %p198 = scmp.eq.s32.totalorder %s29, 0
      %p199 = por %p197, %p198
      %s200 = ssub.s32 %s30, %s42
      %p201 = scmp.eq.s32.totalorder %s200, 0
      %s203 = sadd.s32 %s202, 1
      %s204 = scalar_select %p201, %s202, %s203
      %p207 = pneg %p201
      %p208 = scmp.eq.s32.totalorder %s23, 3
      %p209 = por %p207, %p208
      %p210 = scmp.ne.s32.totalorder %s202, %s205
      %p211 = scmp.eq.s32.totalorder %s23, 0
      %p212 = por %p210, %p211
      %p213 = scmp.ne.s32.totalorder %s202, %s205
      %p214 = scmp.eq.s32.totalorder %s28, 3
      %p215 = por %p213, %p214
      %p216 = scmp.ne.s32.totalorder %s205, %s206
      %p217 = scmp.eq.s32.totalorder %s28, 0
      %p218 = por %p216, %p217
      %p219 = scmp.ne.s32.totalorder %s205, %s206
      %p220 = scmp.eq.s32.totalorder %s29, 3
      %p221 = por %p219, %p220
      %p223 = scmp.ne.s32.totalorder %s206, %s222
      %p224 = scmp.eq.s32.totalorder %s29, 0
      %p225 = por %p223, %p224
      %p226 = scmp.le.s32.totalorder 1, %s23
      %p227 = scmp.lt.s32.totalorder %s23, 5
      %p228 = pnand %p226, %p227
      %p229 = pneg %p228
      // Predicated region
      $region9: #{tpu_custom_call.1} parent=5 // pred_check
        _
      $region10: #{tpu_custom_call.1} parent=5 // pred_check_branch
        %231 = sbr.rel (%p228) target = $region12
      $region11: #{tpu_custom_call.1} parent=5 // pred_region
        %s232 = ssub.s32 %s23, 1
        // Predicated region
        $region13: #{tpu_custom_call.1} parent=11 // pred_check
          %p233 = pneg %p82
        $region14: #{tpu_custom_call.1} parent=11 // pred_check_branch
          %235 = sbr.rel (%p233) target = $region16
        $region15: #{tpu_custom_call.1} parent=11 // pred_region
          _
        $region16: #{tpu_custom_call.1} parent=11 // pred_fallthru
          _
        // Predicated region
        $region17: #{tpu_custom_call.1} parent=11 // pred_check
          %p236 = pneg %p103
        $region18: #{tpu_custom_call.1} parent=11 // pred_check_branch
          %238 = sbr.rel (%p236) target = $region20
        $region19: #{tpu_custom_call.1} parent=11 // pred_region
          _
        $region20: #{tpu_custom_call.1} parent=11 // pred_fallthru
          _
        // Predicated region
        $region21: #{tpu_custom_call.1} parent=11 // pred_check
          %p239 = pneg %p124
        $region22: #{tpu_custom_call.1} parent=11 // pred_check_branch
          %241 = sbr.rel (%p239) target = $region24
        $region23: #{tpu_custom_call.1} parent=11 // pred_region
          _
        $region24: #{tpu_custom_call.1} parent=11 // pred_fallthru
          _
        // Predicated region
        $region25: #{tpu_custom_call.1} parent=11 // pred_check
          %p242 = pneg %p145
        $region26: #{tpu_custom_call.1} parent=11 // pred_check_branch
          %244 = sbr.rel (%p242) target = $region28
        $region27: #{tpu_custom_call.1} parent=11 // pred_region
          _
        $region28: #{tpu_custom_call.1} parent=11 // pred_fallthru
          _
        // Predicated region
        $region29: #{tpu_custom_call.1} parent=11 // pred_check
          %p245 = pneg %p166
        $region30: #{tpu_custom_call.1} parent=11 // pred_check_branch
          %247 = sbr.rel (%p245) target = $region32
        $region31: #{tpu_custom_call.1} parent=11 // pred_region
          _
        $region32: #{tpu_custom_call.1} parent=11 // pred_fallthru
          _
      $region12: #{tpu_custom_call.1} parent=5 // pred_fallthru
        _
      %p248 = scmp.lt.s32.totalorder %s23, 4
      // Predicated region
      $region33: #{tpu_custom_call.1} parent=5 // pred_check
        %p249 = pneg %p248
      $region34: #{tpu_custom_call.1} parent=5 // pred_check_branch
        %251 = sbr.rel (%p249) target = $region36
      $region35: #{tpu_custom_call.1} parent=5 // pred_region
        // Predicated region
        $region37: #{tpu_custom_call.1} parent=35 // pred_check
          %p252 = pneg %p55
        $region38: #{tpu_custom_call.1} parent=35 // pred_check_branch
          %254 = sbr.rel (%p252) target = $region40
        $region39: #{tpu_custom_call.1} parent=35 // pred_region
          %s255 = sand.u32 %s45, 1
          %s256 = scalar_lea.sflag [#allocation4], %s255
          %s257 = sand.u32 %s45, 1
          %s258 = smul.addr %s257, 896
          %s259 = scalar_lea.vmem [#allocation3], %s258
          %s261 = ssub.s32 14336, 14336
          %262 = vsyncadd %s256, %s261
          %s263 = smul.addr %s30, 224
          %s264 = smul.addr %s263, 64
          %s265 = scalar_lea.hbm %s0, %s264
          %s266 = sshll.u32 %s259, 4
          %s267 = int_to_ptr.vmem [resolvable:$true] %s266
          %272 = dma.hbm_to_vmem [thread:$0]  %s265, 14336, %s267, %s256, 128, 128, 8
        $region40: #{tpu_custom_call.1} parent=35 // pred_fallthru
          _
      $region36: #{tpu_custom_call.1} parent=5 // pred_fallthru
        _
      %p273 = scmp.le.s32.totalorder 1, %s23
      %p274 = scmp.lt.s32.totalorder %s23, 5
      %p275 = pnand %p273, %p274
      %p276 = pneg %p275
      // Predicated region
      $region41: #{tpu_custom_call.1} parent=5 // pred_check
        _
      $region42: #{tpu_custom_call.1} parent=5 // pred_check_branch
        %278 = sbr.rel (%p275) target = $region44
      $region43: #{tpu_custom_call.1} parent=5 // pred_region
        %s279 = ssub.s32 %s23, 1
        %s280 = sand.u32 %s48, 1
        %s281 = scalar_lea.sflag [#allocation4], %s280
        %s282 = sand.u32 %s48, 1
        %s283 = smul.addr %s282, 896
        %s284 = scalar_lea.vmem [#allocation3], %s283
        // Predicated region
        $region45: #{tpu_custom_call.1} parent=43 // pred_check
          %p285 = pneg %p61
        $region46: #{tpu_custom_call.1} parent=43 // pred_check_branch
          %287 = sbr.rel (%p285) target = $region48
        $region47: #{tpu_custom_call.1} parent=43 // pred_region
          %288 = dma.done %s281, 14336
        $region48: #{tpu_custom_call.1} parent=43 // pred_fallthru
          _
        %s289 = sand.u32 %s48, 1
        %s290 = scalar_lea.sflag [#allocation4], %s289
        %s291 = sand.u32 %s48, 1
        %s292 = smul.addr %s291, 896
        %s293 = scalar_lea.vmem [#allocation3], %s292
        %p294 = pneg %p61
        %p295 = pneg %p58
        %p296 = pneg %p82
        %p297 = pneg %p79
        %p298 = pneg %p103
        %p299 = pneg %p100
        %p300 = pneg %p124
        %p301 = pneg %p121
        %p302 = pneg %p145
        %p303 = pneg %p142
        %p304 = pneg %p166
        %p305 = pneg %p163
        %p306 = pneg %p192
        %p307 = pneg %p189
        %s308 = sand.u32 %s179, 1
        %s309 = scalar_lea.sflag [#allocation5], %s308
        %s310 = sand.u32 %s179, 1
        %s311 = smul.addr %s310, 32
        %s312 = scalar_lea.vmem [#allocation6], %s311
        %p313 = pneg %p218
        %p314 = pneg %p215
        %s315 = sand.u32 %s205, 1
        %s316 = scalar_lea.sflag [#allocation8], %s315
        %s317 = sand.u32 %s205, 1
        %s318 = scalar_lea.vmem [#allocation7], %s317
        %s320 = smul.u32 %s33, 4
        %s321 = smul.u32 %s320, 16
        %s322 = smul.addr %s321, 4
        %s323 = scalar_lea.vmem %s284, %s322 [#allocation3]
        %v324 = vld [vmem:[%s323] sm:$0xff]
        %v325 = vld [vmem:[%s323 + $0x8] sm:$0xff]
        %v326 = vld [vmem:[%s323 + $0x10] sm:$0xff]
        %v327 = vld [vmem:[%s323 + $0x18] sm:$0xff]
        %v328 = vld [vmem:[%s323 + $0x20] sm:$0xff]
        %v329 = vld [vmem:[%s323 + $0x28] sm:$0xff]
        %v330 = vld [vmem:[%s323 + $0x30] sm:$0xff]
        %v331 = vld [vmem:[%s323 + $0x38] sm:$0xff]
        %v332 = vld [vmem:[%s323 + $0x40] sm:$0xff]
        %v333 = vld [vmem:[%s323 + $0x48] sm:$0xff]
        %v334 = vld [vmem:[%s323 + $0x50] sm:$0xff]
        %v335 = vld [vmem:[%s323 + $0x58] sm:$0xff]
        %v336 = vld [vmem:[%s323 + $0x60] sm:$0xff]
        %v337 = vld [vmem:[%s323 + $0x68] sm:$0xff]
        %v338 = vld [vmem:[%s323 + $0x70] sm:$0xff]
        %v339 = vld [vmem:[%s323 + $0x78] sm:$0xff]
        %v340 = vld [vmem:[%s323 + $0x80] sm:$0xff]
        %v341 = vld [vmem:[%s323 + $0x88] sm:$0xff]
        %v342 = vld [vmem:[%s323 + $0x90] sm:$0xff]
        %v343 = vld [vmem:[%s323 + $0x98] sm:$0xff]
        %v344 = vld [vmem:[%s323 + $0xa0] sm:$0xff]
        %v345 = vld [vmem:[%s323 + $0xa8] sm:$0xff]
        %v346 = vld [vmem:[%s323 + $0xb0] sm:$0xff]
        %v347 = vld [vmem:[%s323 + $0xb8] sm:$0xff]
        %v348 = vld [vmem:[%s323 + $0xc0] sm:$0xff]
        %v349 = vld [vmem:[%s323 + $0xc8] sm:$0xff]
        %v350 = vld [vmem:[%s323 + $0xd0] sm:$0xff]
        %v351 = vld [vmem:[%s323 + $0xd8] sm:$0xff]
        %v352 = vld [vmem:[%s323 + $0xe0] sm:$0xff]
        %v353 = vld [vmem:[%s323 + $0xe8] sm:$0xff]
        %v354 = vld [vmem:[%s323 + $0xf0] sm:$0xff]
        %v355 = vld [vmem:[%s323 + $0xf8] sm:$0xff]
        %v356 = vld [vmem:[%s1] sm:$0xf]
        %v357 = vld [vmem:[%s1 + $0x4] sm:$0xf]
        %v358 = vld [vmem:[%s1 + $0x8] sm:$0xf]
        %v359 = vld [vmem:[%s1 + $0xc] sm:$0xf]
        %v360 = vld [vmem:[%s1 + $0x10] sm:$0xf]
        %v361 = vld [vmem:[%s1 + $0x14] sm:$0xf]
        %v362 = vld [vmem:[%s1 + $0x18] sm:$0xf]
        %v363 = vld [vmem:[%s1 + $0x1c] sm:$0xf]
        %v364 = vld [vmem:[%s1 + $0x20] sm:$0xf]
        %v365 = vld [vmem:[%s1 + $0x24] sm:$0xf]
        %v366 = vld [vmem:[%s1 + $0x28] sm:$0xf]
        %v367 = vld [vmem:[%s1 + $0x2c] sm:$0xf]
        %v368 = vld [vmem:[%s1 + $0x30] sm:$0xf]
        %v369 = vld [vmem:[%s1 + $0x34] sm:$0xf]
        %v370 = vld [vmem:[%s1 + $0x38] sm:$0xf]
        %v371 = vld [vmem:[%s1 + $0x3c] sm:$0xf]
        %v372 = vld [vmem:[%s1 + $0x40] sm:$0xf]
        %v373 = vld [vmem:[%s1 + $0x44] sm:$0xf]
        %v374 = vld [vmem:[%s1 + $0x48] sm:$0xf]
        %v375 = vld [vmem:[%s1 + $0x4c] sm:$0xf]
        %v376 = vld [vmem:[%s1 + $0x50] sm:$0xf]
        %v377 = vld [vmem:[%s1 + $0x54] sm:$0xf]
        %v378 = vld [vmem:[%s1 + $0x58] sm:$0xf]
        %v379 = vld [vmem:[%s1 + $0x5c] sm:$0xf]
        %v380 = vld [vmem:[%s1 + $0x60] sm:$0xf]
        %v381 = vld [vmem:[%s1 + $0x64] sm:$0xf]
        %v382 = vld [vmem:[%s1 + $0x68] sm:$0xf]
        %v383 = vld [vmem:[%s1 + $0x6c] sm:$0xf]
        %v384 = vld [vmem:[%s1 + $0x70] sm:$0xf]
        %v385 = vld [vmem:[%s1 + $0x74] sm:$0xf]
        %v386 = vld [vmem:[%s1 + $0x78] sm:$0xf]
        %v387 = vld [vmem:[%s1 + $0x7c] sm:$0xf]
        %s388 = sadd.s32 %s320, 1
        %s389 = smul.u32 %s388, 16
        %s390 = smul.addr %s389, 4
        %s391 = scalar_lea.vmem %s284, %s390 [#allocation3]
        %v392 = vld [vmem:[%s391] sm:$0xff]
        %v393 = vld [vmem:[%s391 + $0x8] sm:$0xff]
        %v394 = vld [vmem:[%s391 + $0x10] sm:$0xff]
        %v395 = vld [vmem:[%s391 + $0x18] sm:$0xff]
        %v396 = vld [vmem:[%s391 + $0x20] sm:$0xff]
        %v397 = vld [vmem:[%s391 + $0x28] sm:$0xff]
        %v398 = vld [vmem:[%s391 + $0x30] sm:$0xff]
        %v399 = vld [vmem:[%s391 + $0x38] sm:$0xff]
        %v400 = vld [vmem:[%s391 + $0x40] sm:$0xff]
        %v401 = vld [vmem:[%s391 + $0x48] sm:$0xff]
        %v402 = vld [vmem:[%s391 + $0x50] sm:$0xff]
        %v403 = vld [vmem:[%s391 + $0x58] sm:$0xff]
        %v404 = vld [vmem:[%s391 + $0x60] sm:$0xff]
        %v405 = vld [vmem:[%s391 + $0x68] sm:$0xff]
        %v406 = vld [vmem:[%s391 + $0x70] sm:$0xff]
        %v407 = vld [vmem:[%s391 + $0x78] sm:$0xff]
        %v408 = vld [vmem:[%s391 + $0x80] sm:$0xff]
        %v409 = vld [vmem:[%s391 + $0x88] sm:$0xff]
        %v410 = vld [vmem:[%s391 + $0x90] sm:$0xff]
        %v411 = vld [vmem:[%s391 + $0x98] sm:$0xff]
        %v412 = vld [vmem:[%s391 + $0xa0] sm:$0xff]
        %v413 = vld [vmem:[%s391 + $0xa8] sm:$0xff]
        %v414 = vld [vmem:[%s391 + $0xb0] sm:$0xff]
        %v415 = vld [vmem:[%s391 + $0xb8] sm:$0xff]
        %v416 = vld [vmem:[%s391 + $0xc0] sm:$0xff]
        %v417 = vld [vmem:[%s391 + $0xc8] sm:$0xff]
        %v418 = vld [vmem:[%s391 + $0xd0] sm:$0xff]
        %v419 = vld [vmem:[%s391 + $0xd8] sm:$0xff]
        %v420 = vld [vmem:[%s391 + $0xe0] sm:$0xff]
        %v421 = vld [vmem:[%s391 + $0xe8] sm:$0xff]
        %v422 = vld [vmem:[%s391 + $0xf0] sm:$0xff]
        %v423 = vld [vmem:[%s391 + $0xf8] sm:$0xff]
        %s424 = scalar_lea.vmem %s1, 128
        %v425 = vld [vmem:[%s424] sm:$0xf]
        %v426 = vld [vmem:[%s424 + $0x4] sm:$0xf]
        %v427 = vld [vmem:[%s424 + $0x8] sm:$0xf]
        %v428 = vld [vmem:[%s424 + $0xc] sm:$0xf]
        %v429 = vld [vmem:[%s424 + $0x10] sm:$0xf]
        %v430 = vld [vmem:[%s424 + $0x14] sm:$0xf]
        %v431 = vld [vmem:[%s424 + $0x18] sm:$0xf]
        %v432 = vld [vmem:[%s424 + $0x1c] sm:$0xf]
        %v433 = vld [vmem:[%s424 + $0x20] sm:$0xf]
        %v434 = vld [vmem:[%s424 + $0x24] sm:$0xf]
        %v435 = vld [vmem:[%s424 + $0x28] sm:$0xf]
        %v436 = vld [vmem:[%s424 + $0x2c] sm:$0xf]
        %v437 = vld [vmem:[%s424 + $0x30] sm:$0xf]
        %v438 = vld [vmem:[%s424 + $0x34] sm:$0xf]
        %v439 = vld [vmem:[%s424 + $0x38] sm:$0xf]
        %v440 = vld [vmem:[%s424 + $0x3c] sm:$0xf]
        %v441 = vld [vmem:[%s424 + $0x40] sm:$0xf]
        %v442 = vld [vmem:[%s424 + $0x44] sm:$0xf]
        %v443 = vld [vmem:[%s424 + $0x48] sm:$0xf]
        %v444 = vld [vmem:[%s424 + $0x4c] sm:$0xf]
        %v445 = vld [vmem:[%s424 + $0x50] sm:$0xf]
        %v446 = vld [vmem:[%s424 + $0x54] sm:$0xf]
        %v447 = vld [vmem:[%s424 + $0x58] sm:$0xf]
        %v448 = vld [vmem:[%s424 + $0x5c] sm:$0xf]
        %v449 = vld [vmem:[%s424 + $0x60] sm:$0xf]
        %v450 = vld [vmem:[%s424 + $0x64] sm:$0xf]
        %v451 = vld [vmem:[%s424 + $0x68] sm:$0xf]
        %v452 = vld [vmem:[%s424 + $0x6c] sm:$0xf]
        %v453 = vld [vmem:[%s424 + $0x70] sm:$0xf]
        %v454 = vld [vmem:[%s424 + $0x74] sm:$0xf]
        %v455 = vld [vmem:[%s424 + $0x78] sm:$0xf]
        %v456 = vld [vmem:[%s424 + $0x7c] sm:$0xf]
        %v489 = vunpack.c.l.b16 %v392
        %v490 = vunpack.c.h.b16 %v392
        %v491 = vunpack.c.l.b16 %v393
        %v492 = vunpack.c.h.b16 %v393
        %v493 = vunpack.c.l.b16 %v394
        %v494 = vunpack.c.h.b16 %v394
        %v495 = vunpack.c.l.b16 %v395
        %v496 = vunpack.c.h.b16 %v395
        %v497 = vunpack.c.l.b16 %v396
        %v498 = vunpack.c.h.b16 %v396
        %v499 = vunpack.c.l.b16 %v397
        %v500 = vunpack.c.h.b16 %v397
        %v501 = vunpack.c.l.b16 %v398
        %v502 = vunpack.c.h.b16 %v398
        %v503 = vunpack.c.l.b16 %v399
        %v504 = vunpack.c.h.b16 %v399
        %v505 = vunpack.c.l.b16 %v400
        %v506 = vunpack.c.h.b16 %v400
        %v507 = vunpack.c.l.b16 %v401
        %v508 = vunpack.c.h.b16 %v401
        %v509 = vunpack.c.l.b16 %v402
        %v510 = vunpack.c.h.b16 %v402
        %v511 = vunpack.c.l.b16 %v403
        %v512 = vunpack.c.h.b16 %v403
        %v513 = vunpack.c.l.b16 %v404
        %v514 = vunpack.c.h.b16 %v404
        %v515 = vunpack.c.l.b16 %v405
        %v516 = vunpack.c.h.b16 %v405
        %v517 = vunpack.c.l.b16 %v406
        %v518 = vunpack.c.h.b16 %v406
        %v519 = vunpack.c.l.b16 %v407
        %v520 = vunpack.c.h.b16 %v407
        %v521 = vunpack.c.l.b16 %v408
        %v522 = vunpack.c.h.b16 %v408
        %v523 = vunpack.c.l.b16 %v409
        %v524 = vunpack.c.h.b16 %v409
        %v525 = vunpack.c.l.b16 %v410
        %v526 = vunpack.c.h.b16 %v410
        %v527 = vunpack.c.l.b16 %v411
        %v528 = vunpack.c.h.b16 %v411
        %v529 = vunpack.c.l.b16 %v412
        %v530 = vunpack.c.h.b16 %v412
        %v531 = vunpack.c.l.b16 %v413
        %v532 = vunpack.c.h.b16 %v413
        %v533 = vunpack.c.l.b16 %v414
        %v534 = vunpack.c.h.b16 %v414
        %v535 = vunpack.c.l.b16 %v415
        %v536 = vunpack.c.h.b16 %v415
        %v537 = vunpack.c.l.b16 %v416
        %v538 = vunpack.c.h.b16 %v416
        %v539 = vunpack.c.l.b16 %v417
        %v540 = vunpack.c.h.b16 %v417
        %v541 = vunpack.c.l.b16 %v418
        %v542 = vunpack.c.h.b16 %v418
        %v543 = vunpack.c.l.b16 %v419
        %v544 = vunpack.c.h.b16 %v419
        %v545 = vunpack.c.l.b16 %v420
        %v546 = vunpack.c.h.b16 %v420
        %v547 = vunpack.c.l.b16 %v421
        %v548 = vunpack.c.h.b16 %v421
        %v549 = vunpack.c.l.b16 %v422
        %v550 = vunpack.c.h.b16 %v422
        %v551 = vunpack.c.l.b16 %v423
        %v552 = vunpack.c.h.b16 %v423
        %v553 = vpack.c.b16 %v491, %v489
        %v554 = vpack.c.b16 %v492, %v490
        %v555 = vpack.c.b16 %v495, %v493
        %v556 = vpack.c.b16 %v496, %v494
        %v557 = vpack.c.b16 %v499, %v497
        %v558 = vpack.c.b16 %v500, %v498
        %v559 = vpack.c.b16 %v503, %v501
        %v560 = vpack.c.b16 %v504, %v502
        %v561 = vpack.c.b16 %v507, %v505
        %v562 = vpack.c.b16 %v508, %v506
        %v563 = vpack.c.b16 %v511, %v509
        %v564 = vpack.c.b16 %v512, %v510
        %v565 = vpack.c.b16 %v515, %v513
        %v566 = vpack.c.b16 %v516, %v514
        %v567 = vpack.c.b16 %v519, %v517
        %v568 = vpack.c.b16 %v520, %v518
        %v569 = vpack.c.b16 %v523, %v521
        %v570 = vpack.c.b16 %v524, %v522
        %v571 = vpack.c.b16 %v527, %v525
        %v572 = vpack.c.b16 %v528, %v526
        %v573 = vpack.c.b16 %v531, %v529
        %v574 = vpack.c.b16 %v532, %v530
        %v575 = vpack.c.b16 %v535, %v533
        %v576 = vpack.c.b16 %v536, %v534
        %v577 = vpack.c.b16 %v539, %v537
        %v578 = vpack.c.b16 %v540, %v538
        %v579 = vpack.c.b16 %v543, %v541
        %v580 = vpack.c.b16 %v544, %v542
        %v581 = vpack.c.b16 %v547, %v545
        %v582 = vpack.c.b16 %v548, %v546
        %v583 = vpack.c.b16 %v551, %v549
        %v584 = vpack.c.b16 %v552, %v550
        %v649 = vunpack.c.l.b16 %v425
        %v650 = vunpack.c.l.b16 %v426
        %v651 = vunpack.c.l.b16 %v427
        %v652 = vunpack.c.l.b16 %v428
        %v653 = vunpack.c.l.b16 %v429
        %v654 = vunpack.c.l.b16 %v430
        %v655 = vunpack.c.l.b16 %v431
        %v656 = vunpack.c.l.b16 %v432
        %v657 = vunpack.c.l.b16 %v433
        %v658 = vunpack.c.l.b16 %v434
        %v659 = vunpack.c.l.b16 %v435
        %v660 = vunpack.c.l.b16 %v436
        %v661 = vunpack.c.l.b16 %v437
        %v662 = vunpack.c.l.b16 %v438
        %v663 = vunpack.c.l.b16 %v439
        %v664 = vunpack.c.l.b16 %v440
        %v665 = vunpack.c.l.b16 %v441
        %v666 = vunpack.c.l.b16 %v442
        %v667 = vunpack.c.l.b16 %v443
        %v668 = vunpack.c.l.b16 %v444
        %v669 = vunpack.c.l.b16 %v445
        %v670 = vunpack.c.l.b16 %v446
        %v671 = vunpack.c.l.b16 %v447
        %v672 = vunpack.c.l.b16 %v448
        %v673 = vunpack.c.l.b16 %v449
        %v674 = vunpack.c.l.b16 %v450
        %v675 = vunpack.c.l.b16 %v451
        %v676 = vunpack.c.l.b16 %v452
        %v677 = vunpack.c.l.b16 %v453
        %v678 = vunpack.c.l.b16 %v454
        %v679 = vunpack.c.l.b16 %v455
        %v680 = vunpack.c.l.b16 %v456
        %v681 = vpack.c.b16 %v650, %v649
        %v682 = vpack.c.b16 %v652, %v651
        %v683 = vpack.c.b16 %v654, %v653
        %v684 = vpack.c.b16 %v656, %v655
        %v685 = vpack.c.b16 %v658, %v657
        %v686 = vpack.c.b16 %v660, %v659
        %v687 = vpack.c.b16 %v662, %v661
        %v688 = vpack.c.b16 %v664, %v663
        %v689 = vpack.c.b16 %v666, %v665
        %v690 = vpack.c.b16 %v668, %v667
        %v691 = vpack.c.b16 %v670, %v669
        %v692 = vpack.c.b16 %v672, %v671
        %v693 = vpack.c.b16 %v674, %v673
        %v694 = vpack.c.b16 %v676, %v675
        %v695 = vpack.c.b16 %v678, %v677
        %v696 = vpack.c.b16 %v680, %v679
        %713 = vmatprep.subr.bf16.mxu0 0
        %714 = vmatpush1.bf16.msra.mxu0 %v688
        %715 = vmatprep.subr.bf16.mxu0 0
        %716 = vmatpush1.bf16.msra.mxu0 %v687
        %717 = vmatprep.subr.bf16.mxu0 0
        %718 = vmatpush1.bf16.msra.mxu0 %v686
        %719 = vmatprep.subr.bf16.mxu0 0
        %720 = vmatpush1.bf16.msra.mxu0 %v685
        %721 = vmatprep.subr.bf16.mxu0 0
        %722 = vmatpush1.bf16.msra.mxu0 %v684
        %723 = vmatprep.subr.bf16.mxu0 0
        %724 = vmatpush1.bf16.msra.mxu0 %v683
        %725 = vmatprep.subr.bf16.mxu0 0
        %726 = vmatpush1.bf16.msra.mxu0 %v682
        %727 = vmatprep.subr.bf16.mxu0 0
        %728 = vmatpush1.bf16.msra.mxu0 %v681
        %729 = vmatprep.subr.bf16.mxu0 0
        %730 = vmatpush2.bf16.msra.mxu0 %v696
        %731 = vmatprep.subr.bf16.mxu0 0
        %732 = vmatpush2.bf16.msra.mxu0 %v695
        %733 = vmatprep.subr.bf16.mxu0 0
        %734 = vmatpush2.bf16.msra.mxu0 %v694
        %735 = vmatprep.subr.bf16.mxu0 0
        %736 = vmatpush2.bf16.msra.mxu0 %v693
        %737 = vmatprep.subr.bf16.mxu0 0
        %738 = vmatpush2.bf16.msra.mxu0 %v692
        %739 = vmatprep.subr.bf16.mxu0 0
        %740 = vmatpush2.bf16.msra.mxu0 %v691
        %741 = vmatprep.subr.bf16.mxu0 0
        %742 = vmatpush2.bf16.msra.mxu0 %v690
        %743 = vmatprep.subr.bf16.mxu0 0
        %744 = vmatpush2.bf16.msra.mxu0 %v689
        %745 = vmatprep.mubr.bf16.mxu0 %v554
        %746 = vmatmul.mubr.bf16.gmra.mxu0 %v553
        %v747 = vpop.f32.mrf.mxu0
        %v748 = vadd.f32 0.0, %v747
        %v749 = vpop.f32.mrf.mxu0
        %v750 = vpop.f32.mrf.mxu0
        %v751 = vadd.f32 0.0, %v750
        %v752 = vpop.f32.mrf.mxu0
        %753 = vmatprep.mubr.bf16.mxu0 %v556
        %754 = vmatmul.mubr.bf16.gmra.mxu0 %v555
        %v755 = vpop.f32.mrf.mxu0
        %v756 = vadd.f32 0.0, %v755
        %v757 = vpop.f32.mrf.mxu0
        %v758 = vpop.f32.mrf.mxu0
        %v759 = vadd.f32 0.0, %v758
        %v760 = vpop.f32.mrf.mxu0
        %761 = vmatprep.mubr.bf16.mxu0 %v558
        %762 = vmatmul.mubr.bf16.gmra.mxu0 %v557
        %v763 = vpop.f32.mrf.mxu0
        %v764 = vadd.f32 0.0, %v763
        %v765 = vpop.f32.mrf.mxu0
        %v766 = vpop.f32.mrf.mxu0
        %v767 = vadd.f32 0.0, %v766
        %v768 = vpop.f32.mrf.mxu0
        %769 = vmatprep.mubr.bf16.mxu0 %v560
        %770 = vmatmul.mubr.bf16.gmra.mxu0 %v559
        %v771 = vpop.f32.mrf.mxu0
        %v772 = vadd.f32 0.0, %v771
        %v773 = vpop.f32.mrf.mxu0
        %v774 = vpop.f32.mrf.mxu0
        %v775 = vadd.f32 0.0, %v774
        %v776 = vpop.f32.mrf.mxu0
        %777 = vmatprep.mubr.bf16.mxu0 %v562
        %778 = vmatmul.mubr.bf16.gmra.mxu0 %v561
        %v779 = vpop.f32.mrf.mxu0
        %v780 = vadd.f32 0.0, %v779
        %v781 = vpop.f32.mrf.mxu0
        %v782 = vpop.f32.mrf.mxu0
        %v783 = vadd.f32 0.0, %v782
        %v784 = vpop.f32.mrf.mxu0
        %785 = vmatprep.mubr.bf16.mxu0 %v564
        %786 = vmatmul.mubr.bf16.gmra.mxu0 %v563
        %v787 = vpop.f32.mrf.mxu0
        %v788 = vadd.f32 0.0, %v787
        %v789 = vpop.f32.mrf.mxu0
        %v790 = vpop.f32.mrf.mxu0
        %v791 = vadd.f32 0.0, %v790
        %v792 = vpop.f32.mrf.mxu0
        %793 = vmatprep.mubr.bf16.mxu0 %v566
        %794 = vmatmul.mubr.bf16.gmra.mxu0 %v565
        %v795 = vpop.f32.mrf.mxu0
        %v796 = vadd.f32 0.0, %v795
        %v797 = vpop.f32.mrf.mxu0
        %v798 = vpop.f32.mrf.mxu0
        %v799 = vadd.f32 0.0, %v798
        %v800 = vpop.f32.mrf.mxu0
        %801 = vmatprep.mubr.bf16.mxu0 %v568
        %802 = vmatmul.mubr.bf16.gmra.mxu0 %v567
        %v803 = vpop.f32.mrf.mxu0
        %v804 = vadd.f32 0.0, %v803
        %v805 = vpop.f32.mrf.mxu0
        %v806 = vpop.f32.mrf.mxu0
        %v807 = vadd.f32 0.0, %v806
        %v808 = vpop.f32.mrf.mxu0
        %809 = vmatprep.mubr.bf16.mxu0 %v570
        %810 = vmatmul.mubr.bf16.gmra.mxu0 %v569
        %v811 = vpop.f32.mrf.mxu0
        %v812 = vadd.f32 0.0, %v811
        %v813 = vpop.f32.mrf.mxu0
        %v814 = vpop.f32.mrf.mxu0
        %v815 = vadd.f32 0.0, %v814
        %v816 = vpop.f32.mrf.mxu0
        %817 = vmatprep.mubr.bf16.mxu0 %v572
        %818 = vmatmul.mubr.bf16.gmra.mxu0 %v571
        %v819 = vpop.f32.mrf.mxu0
        %v820 = vadd.f32 0.0, %v819
        %v821 = vpop.f32.mrf.mxu0
        %v822 = vpop.f32.mrf.mxu0
        %v823 = vadd.f32 0.0, %v822
        %v824 = vpop.f32.mrf.mxu0
        %825 = vmatprep.mubr.bf16.mxu0 %v574
        %826 = vmatmul.mubr.bf16.gmra.mxu0 %v573
        %v827 = vpop.f32.mrf.mxu0
        %v828 = vadd.f32 0.0, %v827
        %v829 = vpop.f32.mrf.mxu0
        %v830 = vpop.f32.mrf.mxu0
        %v831 = vadd.f32 0.0, %v830
        %v832 = vpop.f32.mrf.mxu0
        %833 = vmatprep.mubr.bf16.mxu0 %v576
        %834 = vmatmul.mubr.bf16.gmra.mxu0 %v575
        %v835 = vpop.f32.mrf.mxu0
        %v836 = vadd.f32 0.0, %v835
        %v837 = vpop.f32.mrf.mxu0
        %v838 = vpop.f32.mrf.mxu0
        %v839 = vadd.f32 0.0, %v838
        %v840 = vpop.f32.mrf.mxu0
        %841 = vmatprep.mubr.bf16.mxu0 %v578
        %842 = vmatmul.mubr.bf16.gmra.mxu0 %v577
        %v843 = vpop.f32.mrf.mxu0
        %v844 = vadd.f32 0.0, %v843
        %v845 = vpop.f32.mrf.mxu0
        %v846 = vpop.f32.mrf.mxu0
        %v847 = vadd.f32 0.0, %v846
        %v848 = vpop.f32.mrf.mxu0
        %849 = vmatprep.mubr.bf16.mxu0 %v580
        %850 = vmatmul.mubr.bf16.gmra.mxu0 %v579
        %v851 = vpop.f32.mrf.mxu0
        %v852 = vadd.f32 0.0, %v851
        %v853 = vpop.f32.mrf.mxu0
        %v854 = vpop.f32.mrf.mxu0
        %v855 = vadd.f32 0.0, %v854
        %v856 = vpop.f32.mrf.mxu0
        %857 = vmatprep.mubr.bf16.mxu0 %v582
        %858 = vmatmul.mubr.bf16.gmra.mxu0 %v581
        %v859 = vpop.f32.mrf.mxu0
        %v860 = vadd.f32 0.0, %v859
        %v861 = vpop.f32.mrf.mxu0
        %v862 = vpop.f32.mrf.mxu0
        %v863 = vadd.f32 0.0, %v862
        %v864 = vpop.f32.mrf.mxu0
        %865 = vmatprep.mubr.bf16.mxu0 %v584
        %866 = vmatmul.mubr.bf16.gmra.mxu0 %v583
        %v867 = vpop.f32.mrf.mxu0
        %v868 = vadd.f32 0.0, %v867
        %v869 = vpop.f32.mrf.mxu0
        %v870 = vpop.f32.mrf.mxu0
        %v871 = vadd.f32 0.0, %v870
        %v872 = vpop.f32.mrf.mxu0
        %873 = vdwg.mxu0
        %v906 = vunpack.c.l.b16 %v324
        %v907 = vunpack.c.h.b16 %v324
        %v908 = vunpack.c.l.b16 %v325
        %v909 = vunpack.c.h.b16 %v325
        %v910 = vunpack.c.l.b16 %v326
        %v911 = vunpack.c.h.b16 %v326
        %v912 = vunpack.c.l.b16 %v327
        %v913 = vunpack.c.h.b16 %v327
        %v914 = vunpack.c.l.b16 %v328
        %v915 = vunpack.c.h.b16 %v328
        %v916 = vunpack.c.l.b16 %v329
        %v917 = vunpack.c.h.b16 %v329
        %v918 = vunpack.c.l.b16 %v330
        %v919 = vunpack.c.h.b16 %v330
        %v920 = vunpack.c.l.b16 %v331
        %v921 = vunpack.c.h.b16 %v331
        %v922 = vunpack.c.l.b16 %v332
        %v923 = vunpack.c.h.b16 %v332
        %v924 = vunpack.c.l.b16 %v333
        %v925 = vunpack.c.h.b16 %v333
        %v926 = vunpack.c.l.b16 %v334
        %v927 = vunpack.c.h.b16 %v334
        %v928 = vunpack.c.l.b16 %v335
        %v929 = vunpack.c.h.b16 %v335
        %v930 = vunpack.c.l.b16 %v336
        %v931 = vunpack.c.h.b16 %v336
        %v932 = vunpack.c.l.b16 %v337
        %v933 = vunpack.c.h.b16 %v337
        %v934 = vunpack.c.l.b16 %v338
        %v935 = vunpack.c.h.b16 %v338
        %v936 = vunpack.c.l.b16 %v339
        %v937 = vunpack.c.h.b16 %v339
        %v938 = vunpack.c.l.b16 %v340
        %v939 = vunpack.c.h.b16 %v340
        %v940 = vunpack.c.l.b16 %v341
        %v941 = vunpack.c.h.b16 %v341
        %v942 = vunpack.c.l.b16 %v342
        %v943 = vunpack.c.h.b16 %v342
        %v944 = vunpack.c.l.b16 %v343
        %v945 = vunpack.c.h.b16 %v343
        %v946 = vunpack.c.l.b16 %v344
        %v947 = vunpack.c.h.b16 %v344
        %v948 = vunpack.c.l.b16 %v345
        %v949 = vunpack.c.h.b16 %v345
        %v950 = vunpack.c.l.b16 %v346
        %v951 = vunpack.c.h.b16 %v346
        %v952 = vunpack.c.l.b16 %v347
        %v953 = vunpack.c.h.b16 %v347
        %v954 = vunpack.c.l.b16 %v348
        %v955 = vunpack.c.h.b16 %v348
        %v956 = vunpack.c.l.b16 %v349
        %v957 = vunpack.c.h.b16 %v349
        %v958 = vunpack.c.l.b16 %v350
        %v959 = vunpack.c.h.b16 %v350
        %v960 = vunpack.c.l.b16 %v351
        %v961 = vunpack.c.h.b16 %v351
        %v962 = vunpack.c.l.b16 %v352
        %v963 = vunpack.c.h.b16 %v352
        %v964 = vunpack.c.l.b16 %v353
        %v965 = vunpack.c.h.b16 %v353
        %v966 = vunpack.c.l.b16 %v354
        %v967 = vunpack.c.h.b16 %v354
        %v968 = vunpack.c.l.b16 %v355
        %v969 = vunpack.c.h.b16 %v355
        %v970 = vpack.c.b16 %v908, %v906
        %v971 = vpack.c.b16 %v909, %v907
        %v972 = vpack.c.b16 %v912, %v910
        %v973 = vpack.c.b16 %v913, %v911
        %v974 = vpack.c.b16 %v916, %v914
        %v975 = vpack.c.b16 %v917, %v915
        %v976 = vpack.c.b16 %v920, %v918
        %v977 = vpack.c.b16 %v921, %v919
        %v978 = vpack.c.b16 %v924, %v922
        %v979 = vpack.c.b16 %v925, %v923
        %v980 = vpack.c.b16 %v928, %v926
        %v981 = vpack.c.b16 %v929, %v927
        %v982 = vpack.c.b16 %v932, %v930
        %v983 = vpack.c.b16 %v933, %v931
        %v984 = vpack.c.b16 %v936, %v934
        %v985 = vpack.c.b16 %v937, %v935
        %v986 = vpack.c.b16 %v940, %v938
        %v987 = vpack.c.b16 %v941, %v939
        %v988 = vpack.c.b16 %v944, %v942
        %v989 = vpack.c.b16 %v945, %v943
        %v990 = vpack.c.b16 %v948, %v946
        %v991 = vpack.c.b16 %v949, %v947
        %v992 = vpack.c.b16 %v952, %v950
        %v993 = vpack.c.b16 %v953, %v951
        %v994 = vpack.c.b16 %v956, %v954
        %v995 = vpack.c.b16 %v957, %v955
        %v996 = vpack.c.b16 %v960, %v958
        %v997 = vpack.c.b16 %v961, %v959
        %v998 = vpack.c.b16 %v964, %v962
        %v999 = vpack.c.b16 %v965, %v963
        %v1000 = vpack.c.b16 %v968, %v966
        %v1001 = vpack.c.b16 %v969, %v967
        %v1066 = vunpack.c.l.b16 %v356
        %v1067 = vunpack.c.l.b16 %v357
        %v1068 = vunpack.c.l.b16 %v358
        %v1069 = vunpack.c.l.b16 %v359
        %v1070 = vunpack.c.l.b16 %v360
        %v1071 = vunpack.c.l.b16 %v361
        %v1072 = vunpack.c.l.b16 %v362
        %v1073 = vunpack.c.l.b16 %v363
        %v1074 = vunpack.c.l.b16 %v364
        %v1075 = vunpack.c.l.b16 %v365
        %v1076 = vunpack.c.l.b16 %v366
        %v1077 = vunpack.c.l.b16 %v367
        %v1078 = vunpack.c.l.b16 %v368
        %v1079 = vunpack.c.l.b16 %v369
        %v1080 = vunpack.c.l.b16 %v370
        %v1081 = vunpack.c.l.b16 %v371
        %v1082 = vunpack.c.l.b16 %v372
        %v1083 = vunpack.c.l.b16 %v373
        %v1084 = vunpack.c.l.b16 %v374
        %v1085 = vunpack.c.l.b16 %v375
        %v1086 = vunpack.c.l.b16 %v376
        %v1087 = vunpack.c.l.b16 %v377
        %v1088 = vunpack.c.l.b16 %v378
        %v1089 = vunpack.c.l.b16 %v379
        %v1090 = vunpack.c.l.b16 %v380
        %v1091 = vunpack.c.l.b16 %v381
        %v1092 = vunpack.c.l.b16 %v382
        %v1093 = vunpack.c.l.b16 %v383
        %v1094 = vunpack.c.l.b16 %v384
        %v1095 = vunpack.c.l.b16 %v385
        %v1096 = vunpack.c.l.b16 %v386
        %v1097 = vunpack.c.l.b16 %v387
        %v1098 = vpack.c.b16 %v1067, %v1066
        %v1099 = vpack.c.b16 %v1069, %v1068
        %v1100 = vpack.c.b16 %v1071, %v1070
        %v1101 = vpack.c.b16 %v1073, %v1072
        %v1102 = vpack.c.b16 %v1075, %v1074
        %v1103 = vpack.c.b16 %v1077, %v1076
        %v1104 = vpack.c.b16 %v1079, %v1078
        %v1105 = vpack.c.b16 %v1081, %v1080
        %v1106 = vpack.c.b16 %v1083, %v1082
        %v1107 = vpack.c.b16 %v1085, %v1084
        %v1108 = vpack.c.b16 %v1087, %v1086
        %v1109 = vpack.c.b16 %v1089, %v1088
        %v1110 = vpack.c.b16 %v1091, %v1090
        %v1111 = vpack.c.b16 %v1093, %v1092
        %v1112 = vpack.c.b16 %v1095, %v1094
        %v1113 = vpack.c.b16 %v1097, %v1096
        %1130 = vmatprep.subr.bf16.mxu0 0
        %1131 = vmatpush1.bf16.msra.mxu0 %v1105
        %1132 = vmatprep.subr.bf16.mxu0 0
        %1133 = vmatpush1.bf16.msra.mxu0 %v1104
        %1134 = vmatprep.subr.bf16.mxu0 0
        %1135 = vmatpush1.bf16.msra.mxu0 %v1103
        %1136 = vmatprep.subr.bf16.mxu0 0
        %1137 = vmatpush1.bf16.msra.mxu0 %v1102
        %1138 = vmatprep.subr.bf16.mxu0 0
        %1139 = vmatpush1.bf16.msra.mxu0 %v1101
        %1140 = vmatprep.subr.bf16.mxu0 0
        %1141 = vmatpush1.bf16.msra.mxu0 %v1100
        %1142 = vmatprep.subr.bf16.mxu0 0
        %1143 = vmatpush1.bf16.msra.mxu0 %v1099
        %1144 = vmatprep.subr.bf16.mxu0 0
        %1145 = vmatpush1.bf16.msra.mxu0 %v1098
        %1146 = vmatprep.subr.bf16.mxu0 0
        %1147 = vmatpush2.bf16.msra.mxu0 %v1113
        %1148 = vmatprep.subr.bf16.mxu0 0
        %1149 = vmatpush2.bf16.msra.mxu0 %v1112
        %1150 = vmatprep.subr.bf16.mxu0 0
        %1151 = vmatpush2.bf16.msra.mxu0 %v1111
        %1152 = vmatprep.subr.bf16.mxu0 0
        %1153 = vmatpush2.bf16.msra.mxu0 %v1110
        %1154 = vmatprep.subr.bf16.mxu0 0
        %1155 = vmatpush2.bf16.msra.mxu0 %v1109
        %1156 = vmatprep.subr.bf16.mxu0 0
        %1157 = vmatpush2.bf16.msra.mxu0 %v1108
        %1158 = vmatprep.subr.bf16.mxu0 0
        %1159 = vmatpush2.bf16.msra.mxu0 %v1107
        %1160 = vmatprep.subr.bf16.mxu0 0
        %1161 = vmatpush2.bf16.msra.mxu0 %v1106
        %1162 = vmatprep.mubr.bf16.mxu0 %v971
        %1163 = vmatmul.mubr.bf16.gmra.mxu0 %v970
        %v1164 = vpop.f32.mrf.mxu0
        %v1165 = vadd.f32 %v748, %v1164
        %v1166 = vpop.f32.mrf.mxu0
        %v1167 = vpop.f32.mrf.mxu0
        %v1168 = vadd.f32 %v751, %v1167
        %v1169 = vpop.f32.mrf.mxu0
        %1170 = vmatprep.mubr.bf16.mxu0 %v973
        %1171 = vmatmul.mubr.bf16.gmra.mxu0 %v972
        %v1172 = vpop.f32.mrf.mxu0
        %v1173 = vadd.f32 %v756, %v1172
        %v1174 = vpop.f32.mrf.mxu0
        %v1175 = vpop.f32.mrf.mxu0
        %v1176 = vadd.f32 %v759, %v1175
        %v1177 = vpop.f32.mrf.mxu0
        %1178 = vmatprep.mubr.bf16.mxu0 %v975
        %1179 = vmatmul.mubr.bf16.gmra.mxu0 %v974
        %v1180 = vpop.f32.mrf.mxu0
        %v1181 = vadd.f32 %v764, %v1180
        %v1182 = vpop.f32.mrf.mxu0
        %v1183 = vpop.f32.mrf.mxu0
        %v1184 = vadd.f32 %v767, %v1183
        %v1185 = vpop.f32.mrf.mxu0
        %1186 = vmatprep.mubr.bf16.mxu0 %v977
        %1187 = vmatmul.mubr.bf16.gmra.mxu0 %v976
        %v1188 = vpop.f32.mrf.mxu0
        %v1189 = vadd.f32 %v772, %v1188
        %v1190 = vpop.f32.mrf.mxu0
        %v1191 = vpop.f32.mrf.mxu0
        %v1192 = vadd.f32 %v775, %v1191
        %v1193 = vpop.f32.mrf.mxu0
        %1194 = vmatprep.mubr.bf16.mxu0 %v979
        %1195 = vmatmul.mubr.bf16.gmra.mxu0 %v978
        %v1196 = vpop.f32.mrf.mxu0
        %v1197 = vadd.f32 %v780, %v1196
        %v1198 = vpop.f32.mrf.mxu0
        %v1199 = vpop.f32.mrf.mxu0
        %v1200 = vadd.f32 %v783, %v1199
        %v1201 = vpop.f32.mrf.mxu0
        %1202 = vmatprep.mubr.bf16.mxu0 %v981
        %1203 = vmatmul.mubr.bf16.gmra.mxu0 %v980
        %v1204 = vpop.f32.mrf.mxu0
        %v1205 = vadd.f32 %v788, %v1204
        %v1206 = vpop.f32.mrf.mxu0
        %v1207 = vpop.f32.mrf.mxu0
        %v1208 = vadd.f32 %v791, %v1207
        %v1209 = vpop.f32.mrf.mxu0
        %1210 = vmatprep.mubr.bf16.mxu0 %v983
        %1211 = vmatmul.mubr.bf16.gmra.mxu0 %v982
        %v1212 = vpop.f32.mrf.mxu0
        %v1213 = vadd.f32 %v796, %v1212
        %v1214 = vpop.f32.mrf.mxu0
        %v1215 = vpop.f32.mrf.mxu0
        %v1216 = vadd.f32 %v799, %v1215
        %v1217 = vpop.f32.mrf.mxu0
        %1218 = vmatprep.mubr.bf16.mxu0 %v985
        %1219 = vmatmul.mubr.bf16.gmra.mxu0 %v984
        %v1220 = vpop.f32.mrf.mxu0
        %v1221 = vadd.f32 %v804, %v1220
        %v1222 = vpop.f32.mrf.mxu0
        %v1223 = vpop.f32.mrf.mxu0
        %v1224 = vadd.f32 %v807, %v1223
        %v1225 = vpop.f32.mrf.mxu0
        %1226 = vmatprep.mubr.bf16.mxu0 %v987
        %1227 = vmatmul.mubr.bf16.gmra.mxu0 %v986
        %v1228 = vpop.f32.mrf.mxu0
        %v1229 = vadd.f32 %v812, %v1228
        %v1230 = vpop.f32.mrf.mxu0
        %v1231 = vpop.f32.mrf.mxu0
        %v1232 = vadd.f32 %v815, %v1231
        %v1233 = vpop.f32.mrf.mxu0
        %1234 = vmatprep.mubr.bf16.mxu0 %v989
        %1235 = vmatmul.mubr.bf16.gmra.mxu0 %v988
        %v1236 = vpop.f32.mrf.mxu0
        %v1237 = vadd.f32 %v820, %v1236
        %v1238 = vpop.f32.mrf.mxu0
        %v1239 = vpop.f32.mrf.mxu0
        %v1240 = vadd.f32 %v823, %v1239
        %v1241 = vpop.f32.mrf.mxu0
        %1242 = vmatprep.mubr.bf16.mxu0 %v991
        %1243 = vmatmul.mubr.bf16.gmra.mxu0 %v990
        %v1244 = vpop.f32.mrf.mxu0
        %v1245 = vadd.f32 %v828, %v1244
        %v1246 = vpop.f32.mrf.mxu0
        %v1247 = vpop.f32.mrf.mxu0
        %v1248 = vadd.f32 %v831, %v1247
        %v1249 = vpop.f32.mrf.mxu0
        %1250 = vmatprep.mubr.bf16.mxu0 %v993
        %1251 = vmatmul.mubr.bf16.gmra.mxu0 %v992
        %v1252 = vpop.f32.mrf.mxu0
        %v1253 = vadd.f32 %v836, %v1252
        %v1254 = vpop.f32.mrf.mxu0
        %v1255 = vpop.f32.mrf.mxu0
        %v1256 = vadd.f32 %v839, %v1255
        %v1257 = vpop.f32.mrf.mxu0
        %1258 = vmatprep.mubr.bf16.mxu0 %v995
        %1259 = vmatmul.mubr.bf16.gmra.mxu0 %v994
        %v1260 = vpop.f32.mrf.mxu0
        %v1261 = vadd.f32 %v844, %v1260
        %v1262 = vpop.f32.mrf.mxu0
        %v1263 = vpop.f32.mrf.mxu0
        %v1264 = vadd.f32 %v847, %v1263
        %v1265 = vpop.f32.mrf.mxu0
        %1266 = vmatprep.mubr.bf16.mxu0 %v997
        %1267 = vmatmul.mubr.bf16.gmra.mxu0 %v996
        %v1268 = vpop.f32.mrf.mxu0
        %v1269 = vadd.f32 %v852, %v1268
        %v1270 = vpop.f32.mrf.mxu0
        %v1271 = vpop.f32.mrf.mxu0
        %v1272 = vadd.f32 %v855, %v1271
        %v1273 = vpop.f32.mrf.mxu0
        %1274 = vmatprep.mubr.bf16.mxu0 %v999
        %1275 = vmatmul.mubr.bf16.gmra.mxu0 %v998
        %v1276 = vpop.f32.mrf.mxu0
        %v1277 = vadd.f32 %v860, %v1276
        %v1278 = vpop.f32.mrf.mxu0
        %v1279 = vpop.f32.mrf.mxu0
        %v1280 = vadd.f32 %v863, %v1279
        %v1281 = vpop.f32.mrf.mxu0
        %1282 = vmatprep.mubr.bf16.mxu0 %v1001
        %1283 = vmatmul.mubr.bf16.gmra.mxu0 %v1000
        %v1284 = vpop.f32.mrf.mxu0
        %v1285 = vadd.f32 %v868, %v1284
        %v1286 = vpop.f32.mrf.mxu0
        %v1287 = vpop.f32.mrf.mxu0
        %v1288 = vadd.f32 %v871, %v1287
        %v1289 = vpop.f32.mrf.mxu0
        %1290 = vdwg.mxu0
        %s1291 = sadd.s32 %s320, 2
        %s1292 = smul.u32 %s1291, 16
        %s1293 = smul.addr %s1292, 4
        %s1294 = scalar_lea.vmem %s284, %s1293 [#allocation3]
        %v1295 = vld [vmem:[%s1294] sm:$0xff]
        %v1296 = vld [vmem:[%s1294 + $0x8] sm:$0xff]
        %v1297 = vld [vmem:[%s1294 + $0x10] sm:$0xff]
        %v1298 = vld [vmem:[%s1294 + $0x18] sm:$0xff]
        %v1299 = vld [vmem:[%s1294 + $0x20] sm:$0xff]
        %v1300 = vld [vmem:[%s1294 + $0x28] sm:$0xff]
        %v1301 = vld [vmem:[%s1294 + $0x30] sm:$0xff]
        %v1302 = vld [vmem:[%s1294 + $0x38] sm:$0xff]
        %v1303 = vld [vmem:[%s1294 + $0x40] sm:$0xff]
        %v1304 = vld [vmem:[%s1294 + $0x48] sm:$0xff]
        %v1305 = vld [vmem:[%s1294 + $0x50] sm:$0xff]
        %v1306 = vld [vmem:[%s1294 + $0x58] sm:$0xff]
        %v1307 = vld [vmem:[%s1294 + $0x60] sm:$0xff]
        %v1308 = vld [vmem:[%s1294 + $0x68] sm:$0xff]
        %v1309 = vld [vmem:[%s1294 + $0x70] sm:$0xff]
        %v1310 = vld [vmem:[%s1294 + $0x78] sm:$0xff]
        %v1311 = vld [vmem:[%s1294 + $0x80] sm:$0xff]
        %v1312 = vld [vmem:[%s1294 + $0x88] sm:$0xff]
        %v1313 = vld [vmem:[%s1294 + $0x90] sm:$0xff]
        %v1314 = vld [vmem:[%s1294 + $0x98] sm:$0xff]
        %v1315 = vld [vmem:[%s1294 + $0xa0] sm:$0xff]
        %v1316 = vld [vmem:[%s1294 + $0xa8] sm:$0xff]
        %v1317 = vld [vmem:[%s1294 + $0xb0] sm:$0xff]
        %v1318 = vld [vmem:[%s1294 + $0xb8] sm:$0xff]
        %v1319 = vld [vmem:[%s1294 + $0xc0] sm:$0xff]
        %v1320 = vld [vmem:[%s1294 + $0xc8] sm:$0xff]
        %v1321 = vld [vmem:[%s1294 + $0xd0] sm:$0xff]
        %v1322 = vld [vmem:[%s1294 + $0xd8] sm:$0xff]
        %v1323 = vld [vmem:[%s1294 + $0xe0] sm:$0xff]
        %v1324 = vld [vmem:[%s1294 + $0xe8] sm:$0xff]
        %v1325 = vld [vmem:[%s1294 + $0xf0] sm:$0xff]
        %v1326 = vld [vmem:[%s1294 + $0xf8] sm:$0xff]
        %s1327 = scalar_lea.vmem %s1, 256
        %v1328 = vld [vmem:[%s1327] sm:$0xf]
        %v1329 = vld [vmem:[%s1327 + $0x4] sm:$0xf]
        %v1330 = vld [vmem:[%s1327 + $0x8] sm:$0xf]
        %v1331 = vld [vmem:[%s1327 + $0xc] sm:$0xf]
        %v1332 = vld [vmem:[%s1327 + $0x10] sm:$0xf]
        %v1333 = vld [vmem:[%s1327 + $0x14] sm:$0xf]
        %v1334 = vld [vmem:[%s1327 + $0x18] sm:$0xf]
        %v1335 = vld [vmem:[%s1327 + $0x1c] sm:$0xf]
        %v1336 = vld [vmem:[%s1327 + $0x20] sm:$0xf]
        %v1337 = vld [vmem:[%s1327 + $0x24] sm:$0xf]
        %v1338 = vld [vmem:[%s1327 + $0x28] sm:$0xf]
        %v1339 = vld [vmem:[%s1327 + $0x2c] sm:$0xf]
        %v1340 = vld [vmem:[%s1327 + $0x30] sm:$0xf]
        %v1341 = vld [vmem:[%s1327 + $0x34] sm:$0xf]
        %v1342 = vld [vmem:[%s1327 + $0x38] sm:$0xf]
        %v1343 = vld [vmem:[%s1327 + $0x3c] sm:$0xf]
        %v1344 = vld [vmem:[%s1327 + $0x40] sm:$0xf]
        %v1345 = vld [vmem:[%s1327 + $0x44] sm:$0xf]
        %v1346 = vld [vmem:[%s1327 + $0x48] sm:$0xf]
        %v1347 = vld [vmem:[%s1327 + $0x4c] sm:$0xf]
        %v1348 = vld [vmem:[%s1327 + $0x50] sm:$0xf]
        %v1349 = vld [vmem:[%s1327 + $0x54] sm:$0xf]
        %v1350 = vld [vmem:[%s1327 + $0x58] sm:$0xf]
        %v1351 = vld [vmem:[%s1327 + $0x5c] sm:$0xf]
        %v1352 = vld [vmem:[%s1327 + $0x60] sm:$0xf]
        %v1353 = vld [vmem:[%s1327 + $0x64] sm:$0xf]
        %v1354 = vld [vmem:[%s1327 + $0x68] sm:$0xf]
        %v1355 = vld [vmem:[%s1327 + $0x6c] sm:$0xf]
        %v1356 = vld [vmem:[%s1327 + $0x70] sm:$0xf]
        %v1357 = vld [vmem:[%s1327 + $0x74] sm:$0xf]
        %v1358 = vld [vmem:[%s1327 + $0x78] sm:$0xf]
        %v1359 = vld [vmem:[%s1327 + $0x7c] sm:$0xf]
        %v1392 = vunpack.c.l.b16 %v1295
        %v1393 = vunpack.c.h.b16 %v1295
        %v1394 = vunpack.c.l.b16 %v1296
        %v1395 = vunpack.c.h.b16 %v1296
        %v1396 = vunpack.c.l.b16 %v1297
        %v1397 = vunpack.c.h.b16 %v1297
        %v1398 = vunpack.c.l.b16 %v1298
        %v1399 = vunpack.c.h.b16 %v1298
        %v1400 = vunpack.c.l.b16 %v1299
        %v1401 = vunpack.c.h.b16 %v1299
        %v1402 = vunpack.c.l.b16 %v1300
        %v1403 = vunpack.c.h.b16 %v1300
        %v1404 = vunpack.c.l.b16 %v1301
        %v1405 = vunpack.c.h.b16 %v1301
        %v1406 = vunpack.c.l.b16 %v1302
        %v1407 = vunpack.c.h.b16 %v1302
        %v1408 = vunpack.c.l.b16 %v1303
        %v1409 = vunpack.c.h.b16 %v1303
        %v1410 = vunpack.c.l.b16 %v1304
        %v1411 = vunpack.c.h.b16 %v1304
        %v1412 = vunpack.c.l.b16 %v1305
        %v1413 = vunpack.c.h.b16 %v1305
        %v1414 = vunpack.c.l.b16 %v1306
        %v1415 = vunpack.c.h.b16 %v1306
        %v1416 = vunpack.c.l.b16 %v1307
        %v1417 = vunpack.c.h.b16 %v1307
        %v1418 = vunpack.c.l.b16 %v1308
        %v1419 = vunpack.c.h.b16 %v1308
        %v1420 = vunpack.c.l.b16 %v1309
        %v1421 = vunpack.c.h.b16 %v1309
        %v1422 = vunpack.c.l.b16 %v1310
        %v1423 = vunpack.c.h.b16 %v1310
        %v1424 = vunpack.c.l.b16 %v1311
        %v1425 = vunpack.c.h.b16 %v1311
        %v1426 = vunpack.c.l.b16 %v1312
        %v1427 = vunpack.c.h.b16 %v1312
        %v1428 = vunpack.c.l.b16 %v1313
        %v1429 = vunpack.c.h.b16 %v1313
        %v1430 = vunpack.c.l.b16 %v1314
        %v1431 = vunpack.c.h.b16 %v1314
        %v1432 = vunpack.c.l.b16 %v1315
        %v1433 = vunpack.c.h.b16 %v1315
        %v1434 = vunpack.c.l.b16 %v1316
        %v1435 = vunpack.c.h.b16 %v1316
        %v1436 = vunpack.c.l.b16 %v1317
        %v1437 = vunpack.c.h.b16 %v1317
        %v1438 = vunpack.c.l.b16 %v1318
        %v1439 = vunpack.c.h.b16 %v1318
        %v1440 = vunpack.c.l.b16 %v1319
        %v1441 = vunpack.c.h.b16 %v1319
        %v1442 = vunpack.c.l.b16 %v1320
        %v1443 = vunpack.c.h.b16 %v1320
        %v1444 = vunpack.c.l.b16 %v1321
        %v1445 = vunpack.c.h.b16 %v1321
        %v1446 = vunpack.c.l.b16 %v1322
        %v1447 = vunpack.c.h.b16 %v1322
        %v1448 = vunpack.c.l.b16 %v1323
        %v1449 = vunpack.c.h.b16 %v1323
        %v1450 = vunpack.c.l.b16 %v1324
        %v1451 = vunpack.c.h.b16 %v1324
        %v1452 = vunpack.c.l.b16 %v1325
        %v1453 = vunpack.c.h.b16 %v1325
        %v1454 = vunpack.c.l.b16 %v1326
        %v1455 = vunpack.c.h.b16 %v1326
        %v1456 = vpack.c.b16 %v1394, %v1392
        %v1457 = vpack.c.b16 %v1395, %v1393
        %v1458 = vpack.c.b16 %v1398, %v1396
        %v1459 = vpack.c.b16 %v1399, %v1397
        %v1460 = vpack.c.b16 %v1402, %v1400
        %v1461 = vpack.c.b16 %v1403, %v1401
        %v1462 = vpack.c.b16 %v1406, %v1404
        %v1463 = vpack.c.b16 %v1407, %v1405
        %v1464 = vpack.c.b16 %v1410, %v1408
        %v1465 = vpack.c.b16 %v1411, %v1409
        %v1466 = vpack.c.b16 %v1414, %v1412
        %v1467 = vpack.c.b16 %v1415, %v1413
        %v1468 = vpack.c.b16 %v1418, %v1416
        %v1469 = vpack.c.b16 %v1419, %v1417
        %v1470 = vpack.c.b16 %v1422, %v1420
        %v1471 = vpack.c.b16 %v1423, %v1421
        %v1472 = vpack.c.b16 %v1426, %v1424
        %v1473 = vpack.c.b16 %v1427, %v1425
        %v1474 = vpack.c.b16 %v1430, %v1428
        %v1475 = vpack.c.b16 %v1431, %v1429
        %v1476 = vpack.c.b16 %v1434, %v1432
        %v1477 = vpack.c.b16 %v1435, %v1433
        %v1478 = vpack.c.b16 %v1438, %v1436
        %v1479 = vpack.c.b16 %v1439, %v1437
        %v1480 = vpack.c.b16 %v1442, %v1440
        %v1481 = vpack.c.b16 %v1443, %v1441
        %v1482 = vpack.c.b16 %v1446, %v1444
        %v1483 = vpack.c.b16 %v1447, %v1445
        %v1484 = vpack.c.b16 %v1450, %v1448
        %v1485 = vpack.c.b16 %v1451, %v1449
        %v1486 = vpack.c.b16 %v1454, %v1452
        %v1487 = vpack.c.b16 %v1455, %v1453
        %v1552 = vunpack.c.l.b16 %v1328
        %v1553 = vunpack.c.l.b16 %v1329
        %v1554 = vunpack.c.l.b16 %v1330
        %v1555 = vunpack.c.l.b16 %v1331
        %v1556 = vunpack.c.l.b16 %v1332
        %v1557 = vunpack.c.l.b16 %v1333
        %v1558 = vunpack.c.l.b16 %v1334
        %v1559 = vunpack.c.l.b16 %v1335
        %v1560 = vunpack.c.l.b16 %v1336
        %v1561 = vunpack.c.l.b16 %v1337
        %v1562 = vunpack.c.l.b16 %v1338
        %v1563 = vunpack.c.l.b16 %v1339
        %v1564 = vunpack.c.l.b16 %v1340
        %v1565 = vunpack.c.l.b16 %v1341
        %v1566 = vunpack.c.l.b16 %v1342
        %v1567 = vunpack.c.l.b16 %v1343
        %v1568 = vunpack.c.l.b16 %v1344
        %v1569 = vunpack.c.l.b16 %v1345
        %v1570 = vunpack.c.l.b16 %v1346
        %v1571 = vunpack.c.l.b16 %v1347
        %v1572 = vunpack.c.l.b16 %v1348
        %v1573 = vunpack.c.l.b16 %v1349
        %v1574 = vunpack.c.l.b16 %v1350
        %v1575 = vunpack.c.l.b16 %v1351
        %v1576 = vunpack.c.l.b16 %v1352
        %v1577 = vunpack.c.l.b16 %v1353
        %v1578 = vunpack.c.l.b16 %v1354
        %v1579 = vunpack.c.l.b16 %v1355
        %v1580 = vunpack.c.l.b16 %v1356
        %v1581 = vunpack.c.l.b16 %v1357
        %v1582 = vunpack.c.l.b16 %v1358
        %v1583 = vunpack.c.l.b16 %v1359
        %v1584 = vpack.c.b16 %v1553, %v1552
        %v1585 = vpack.c.b16 %v1555, %v1554
        %v1586 = vpack.c.b16 %v1557, %v1556
        %v1587 = vpack.c.b16 %v1559, %v1558
        %v1588 = vpack.c.b16 %v1561, %v1560
        %v1589 = vpack.c.b16 %v1563, %v1562
        %v1590 = vpack.c.b16 %v1565, %v1564
        %v1591 = vpack.c.b16 %v1567, %v1566
        %v1592 = vpack.c.b16 %v1569, %v1568
        %v1593 = vpack.c.b16 %v1571, %v1570
        %v1594 = vpack.c.b16 %v1573, %v1572
        %v1595 = vpack.c.b16 %v1575, %v1574
        %v1596 = vpack.c.b16 %v1577, %v1576
        %v1597 = vpack.c.b16 %v1579, %v1578
        %v1598 = vpack.c.b16 %v1581, %v1580
        %v1599 = vpack.c.b16 %v1583, %v1582
        %1616 = vmatprep.subr.bf16.mxu0 0
        %1617 = vmatpush1.bf16.msra.mxu0 %v1591
        %1618 = vmatprep.subr.bf16.mxu0 0
        %1619 = vmatpush1.bf16.msra.mxu0 %v1590
        %1620 = vmatprep.subr.bf16.mxu0 0
        %1621 = vmatpush1.bf16.msra.mxu0 %v1589
        %1622 = vmatprep.subr.bf16.mxu0 0
        %1623 = vmatpush1.bf16.msra.mxu0 %v1588
        %1624 = vmatprep.subr.bf16.mxu0 0
        %1625 = vmatpush1.bf16.msra.mxu0 %v1587
        %1626 = vmatprep.subr.bf16.mxu0 0
        %1627 = vmatpush1.bf16.msra.mxu0 %v1586
        %1628 = vmatprep.subr.bf16.mxu0 0
        %1629 = vmatpush1.bf16.msra.mxu0 %v1585
        %1630 = vmatprep.subr.bf16.mxu0 0
        %1631 = vmatpush1.bf16.msra.mxu0 %v1584
        %1632 = vmatprep.subr.bf16.mxu0 0
        %1633 = vmatpush2.bf16.msra.mxu0 %v1599
        %1634 = vmatprep.subr.bf16.mxu0 0
        %1635 = vmatpush2.bf16.msra.mxu0 %v1598
        %1636 = vmatprep.subr.bf16.mxu0 0
        %1637 = vmatpush2.bf16.msra.mxu0 %v1597
        %1638 = vmatprep.subr.bf16.mxu0 0
        %1639 = vmatpush2.bf16.msra.mxu0 %v1596
        %1640 = vmatprep.subr.bf16.mxu0 0
        %1641 = vmatpush2.bf16.msra.mxu0 %v1595
        %1642 = vmatprep.subr.bf16.mxu0 0
        %1643 = vmatpush2.bf16.msra.mxu0 %v1594
        %1644 = vmatprep.subr.bf16.mxu0 0
        %1645 = vmatpush2.bf16.msra.mxu0 %v1593
        %1646 = vmatprep.subr.bf16.mxu0 0
        %1647 = vmatpush2.bf16.msra.mxu0 %v1592
        %1648 = vmatprep.mubr.bf16.mxu0 %v1457
        %1649 = vmatmul.mubr.bf16.gmra.mxu0 %v1456
        %v1650 = vpop.f32.mrf.mxu0
        %v1651 = vadd.f32 0.0, %v1650
        %v1652 = vpop.f32.mrf.mxu0
        %v1653 = vpop.f32.mrf.mxu0
        %v1654 = vadd.f32 0.0, %v1653
        %v1655 = vpop.f32.mrf.mxu0
        %1656 = vmatprep.mubr.bf16.mxu0 %v1459
        %1657 = vmatmul.mubr.bf16.gmra.mxu0 %v1458
        %v1658 = vpop.f32.mrf.mxu0
        %v1659 = vadd.f32 0.0, %v1658
        %v1660 = vpop.f32.mrf.mxu0
        %v1661 = vpop.f32.mrf.mxu0
        %v1662 = vadd.f32 0.0, %v1661
        %v1663 = vpop.f32.mrf.mxu0
        %1664 = vmatprep.mubr.bf16.mxu0 %v1461
        %1665 = vmatmul.mubr.bf16.gmra.mxu0 %v1460
        %v1666 = vpop.f32.mrf.mxu0
        %v1667 = vadd.f32 0.0, %v1666
        %v1668 = vpop.f32.mrf.mxu0
        %v1669 = vpop.f32.mrf.mxu0
        %v1670 = vadd.f32 0.0, %v1669
        %v1671 = vpop.f32.mrf.mxu0
        %1672 = vmatprep.mubr.bf16.mxu0 %v1463
        %1673 = vmatmul.mubr.bf16.gmra.mxu0 %v1462
        %v1674 = vpop.f32.mrf.mxu0
        %v1675 = vadd.f32 0.0, %v1674
        %v1676 = vpop.f32.mrf.mxu0
        %v1677 = vpop.f32.mrf.mxu0
        %v1678 = vadd.f32 0.0, %v1677
        %v1679 = vpop.f32.mrf.mxu0
        %1680 = vmatprep.mubr.bf16.mxu0 %v1465
        %1681 = vmatmul.mubr.bf16.gmra.mxu0 %v1464
        %v1682 = vpop.f32.mrf.mxu0
        %v1683 = vadd.f32 0.0, %v1682
        %v1684 = vpop.f32.mrf.mxu0
        %v1685 = vpop.f32.mrf.mxu0
        %v1686 = vadd.f32 0.0, %v1685
        %v1687 = vpop.f32.mrf.mxu0
        %1688 = vmatprep.mubr.bf16.mxu0 %v1467
        %1689 = vmatmul.mubr.bf16.gmra.mxu0 %v1466
        %v1690 = vpop.f32.mrf.mxu0
        %v1691 = vadd.f32 0.0, %v1690
        %v1692 = vpop.f32.mrf.mxu0
        %v1693 = vpop.f32.mrf.mxu0
        %v1694 = vadd.f32 0.0, %v1693
        %v1695 = vpop.f32.mrf.mxu0
        %1696 = vmatprep.mubr.bf16.mxu0 %v1469
        %1697 = vmatmul.mubr.bf16.gmra.mxu0 %v1468
        %v1698 = vpop.f32.mrf.mxu0
        %v1699 = vadd.f32 0.0, %v1698
        %v1700 = vpop.f32.mrf.mxu0
        %v1701 = vpop.f32.mrf.mxu0
        %v1702 = vadd.f32 0.0, %v1701
        %v1703 = vpop.f32.mrf.mxu0
        %1704 = vmatprep.mubr.bf16.mxu0 %v1471
        %1705 = vmatmul.mubr.bf16.gmra.mxu0 %v1470
        %v1706 = vpop.f32.mrf.mxu0
        %v1707 = vadd.f32 0.0, %v1706
        %v1708 = vpop.f32.mrf.mxu0
        %v1709 = vpop.f32.mrf.mxu0
        %v1710 = vadd.f32 0.0, %v1709
        %v1711 = vpop.f32.mrf.mxu0
        %1712 = vmatprep.mubr.bf16.mxu0 %v1473
        %1713 = vmatmul.mubr.bf16.gmra.mxu0 %v1472
        %v1714 = vpop.f32.mrf.mxu0
        %v1715 = vadd.f32 0.0, %v1714
        %v1716 = vpop.f32.mrf.mxu0
        %v1717 = vpop.f32.mrf.mxu0
        %v1718 = vadd.f32 0.0, %v1717
        %v1719 = vpop.f32.mrf.mxu0
        %1720 = vmatprep.mubr.bf16.mxu0 %v1475
        %1721 = vmatmul.mubr.bf16.gmra.mxu0 %v1474
        %v1722 = vpop.f32.mrf.mxu0
        %v1723 = vadd.f32 0.0, %v1722
        %v1724 = vpop.f32.mrf.mxu0
        %v1725 = vpop.f32.mrf.mxu0
        %v1726 = vadd.f32 0.0, %v1725
        %v1727 = vpop.f32.mrf.mxu0
        %1728 = vmatprep.mubr.bf16.mxu0 %v1477
        %1729 = vmatmul.mubr.bf16.gmra.mxu0 %v1476
        %v1730 = vpop.f32.mrf.mxu0
        %v1731 = vadd.f32 0.0, %v1730
        %v1732 = vpop.f32.mrf.mxu0
        %v1733 = vpop.f32.mrf.mxu0
        %v1734 = vadd.f32 0.0, %v1733
        %v1735 = vpop.f32.mrf.mxu0
        %1736 = vmatprep.mubr.bf16.mxu0 %v1479
        %1737 = vmatmul.mubr.bf16.gmra.mxu0 %v1478
        %v1738 = vpop.f32.mrf.mxu0
        %v1739 = vadd.f32 0.0, %v1738
        %v1740 = vpop.f32.mrf.mxu0
        %v1741 = vpop.f32.mrf.mxu0
        %v1742 = vadd.f32 0.0, %v1741
        %v1743 = vpop.f32.mrf.mxu0
        %1744 = vmatprep.mubr.bf16.mxu0 %v1481
        %1745 = vmatmul.mubr.bf16.gmra.mxu0 %v1480
        %v1746 = vpop.f32.mrf.mxu0
        %v1747 = vadd.f32 0.0, %v1746
        %v1748 = vpop.f32.mrf.mxu0
        %v1749 = vpop.f32.mrf.mxu0
        %v1750 = vadd.f32 0.0, %v1749
        %v1751 = vpop.f32.mrf.mxu0
        %1752 = vmatprep.mubr.bf16.mxu0 %v1483
        %1753 = vmatmul.mubr.bf16.gmra.mxu0 %v1482
        %v1754 = vpop.f32.mrf.mxu0
        %v1755 = vadd.f32 0.0, %v1754
        %v1756 = vpop.f32.mrf.mxu0
        %v1757 = vpop.f32.mrf.mxu0
        %v1758 = vadd.f32 0.0, %v1757
        %v1759 = vpop.f32.mrf.mxu0
        %1760 = vmatprep.mubr.bf16.mxu0 %v1485
        %1761 = vmatmul.mubr.bf16.gmra.mxu0 %v1484
        %v1762 = vpop.f32.mrf.mxu0
        %v1763 = vadd.f32 0.0, %v1762
        %v1764 = vpop.f32.mrf.mxu0
        %v1765 = vpop.f32.mrf.mxu0
        %v1766 = vadd.f32 0.0, %v1765
        %v1767 = vpop.f32.mrf.mxu0
        %1768 = vmatprep.mubr.bf16.mxu0 %v1487
        %1769 = vmatmul.mubr.bf16.gmra.mxu0 %v1486
        %v1770 = vpop.f32.mrf.mxu0
        %v1771 = vadd.f32 0.0, %v1770
        %v1772 = vpop.f32.mrf.mxu0
        %v1773 = vpop.f32.mrf.mxu0
        %v1774 = vadd.f32 0.0, %v1773
        %v1775 = vpop.f32.mrf.mxu0
        %1776 = vdwg.mxu0
        %v1777 = vadd.f32 %v1165, %v1651
        %v1778 = vadd.f32 %v1168, %v1654
        %v1779 = vadd.f32 %v1173, %v1659
        %v1780 = vadd.f32 %v1176, %v1662
        %v1781 = vadd.f32 %v1181, %v1667
        %v1782 = vadd.f32 %v1184, %v1670
        %v1783 = vadd.f32 %v1189, %v1675
        %v1784 = vadd.f32 %v1192, %v1678
        %v1785 = vadd.f32 %v1197, %v1683
        %v1786 = vadd.f32 %v1200, %v1686
        %v1787 = vadd.f32 %v1205, %v1691
        %v1788 = vadd.f32 %v1208, %v1694
        %v1789 = vadd.f32 %v1213, %v1699
        %v1790 = vadd.f32 %v1216, %v1702
        %v1791 = vadd.f32 %v1221, %v1707
        %v1792 = vadd.f32 %v1224, %v1710
        %v1793 = vadd.f32 %v1229, %v1715
        %v1794 = vadd.f32 %v1232, %v1718
        %v1795 = vadd.f32 %v1237, %v1723
        %v1796 = vadd.f32 %v1240, %v1726
        %v1797 = vadd.f32 %v1245, %v1731
        %v1798 = vadd.f32 %v1248, %v1734
        %v1799 = vadd.f32 %v1253, %v1739
        %v1800 = vadd.f32 %v1256, %v1742
        %v1801 = vadd.f32 %v1261, %v1747
        %v1802 = vadd.f32 %v1264, %v1750
        %v1803 = vadd.f32 %v1269, %v1755
        %v1804 = vadd.f32 %v1272, %v1758
        %v1805 = vadd.f32 %v1277, %v1763
        %v1806 = vadd.f32 %v1280, %v1766
        %v1807 = vadd.f32 %v1285, %v1771
        %v1808 = vadd.f32 %v1288, %v1774
        %s1809 = sadd.s32 %s320, 3
        %s1810 = smul.u32 %s1809, 16
        %s1811 = smul.addr %s1810, 4
        %s1812 = scalar_lea.vmem %s284, %s1811 [#allocation3]
        %v1813 = vld [vmem:[%s1812] sm:$0xff]
        %v1814 = vld [vmem:[%s1812 + $0x8] sm:$0xff]
        %v1815 = vld [vmem:[%s1812 + $0x10] sm:$0xff]
        %v1816 = vld [vmem:[%s1812 + $0x18] sm:$0xff]
        %v1817 = vld [vmem:[%s1812 + $0x20] sm:$0xff]
        %v1818 = vld [vmem:[%s1812 + $0x28] sm:$0xff]
        %v1819 = vld [vmem:[%s1812 + $0x30] sm:$0xff]
        %v1820 = vld [vmem:[%s1812 + $0x38] sm:$0xff]
        %v1821 = vld [vmem:[%s1812 + $0x40] sm:$0xff]
        %v1822 = vld [vmem:[%s1812 + $0x48] sm:$0xff]
        %v1823 = vld [vmem:[%s1812 + $0x50] sm:$0xff]
        %v1824 = vld [vmem:[%s1812 + $0x58] sm:$0xff]
        %v1825 = vld [vmem:[%s1812 + $0x60] sm:$0xff]
        %v1826 = vld [vmem:[%s1812 + $0x68] sm:$0xff]
        %v1827 = vld [vmem:[%s1812 + $0x70] sm:$0xff]
        %v1828 = vld [vmem:[%s1812 + $0x78] sm:$0xff]
        %v1829 = vld [vmem:[%s1812 + $0x80] sm:$0xff]
        %v1830 = vld [vmem:[%s1812 + $0x88] sm:$0xff]
        %v1831 = vld [vmem:[%s1812 + $0x90] sm:$0xff]
        %v1832 = vld [vmem:[%s1812 + $0x98] sm:$0xff]
        %v1833 = vld [vmem:[%s1812 + $0xa0] sm:$0xff]
        %v1834 = vld [vmem:[%s1812 + $0xa8] sm:$0xff]
        %v1835 = vld [vmem:[%s1812 + $0xb0] sm:$0xff]
        %v1836 = vld [vmem:[%s1812 + $0xb8] sm:$0xff]
        %v1837 = vld [vmem:[%s1812 + $0xc0] sm:$0xff]
        %v1838 = vld [vmem:[%s1812 + $0xc8] sm:$0xff]
        %v1839 = vld [vmem:[%s1812 + $0xd0] sm:$0xff]
        %v1840 = vld [vmem:[%s1812 + $0xd8] sm:$0xff]
        %v1841 = vld [vmem:[%s1812 + $0xe0] sm:$0xff]
        %v1842 = vld [vmem:[%s1812 + $0xe8] sm:$0xff]
        %v1843 = vld [vmem:[%s1812 + $0xf0] sm:$0xff]
        %v1844 = vld [vmem:[%s1812 + $0xf8] sm:$0xff]
        %s1845 = scalar_lea.vmem %s1, 384
        %v1846 = vld [vmem:[%s1845] sm:$0xf]
        %v1847 = vld [vmem:[%s1845 + $0x4] sm:$0xf]
        %v1848 = vld [vmem:[%s1845 + $0x8] sm:$0xf]
        %v1849 = vld [vmem:[%s1845 + $0xc] sm:$0xf]
        %v1850 = vld [vmem:[%s1845 + $0x10] sm:$0xf]
        %v1851 = vld [vmem:[%s1845 + $0x14] sm:$0xf]
        %v1852 = vld [vmem:[%s1845 + $0x18] sm:$0xf]
        %v1853 = vld [vmem:[%s1845 + $0x1c] sm:$0xf]
        %v1854 = vld [vmem:[%s1845 + $0x20] sm:$0xf]
        %v1855 = vld [vmem:[%s1845 + $0x24] sm:$0xf]
        %v1856 = vld [vmem:[%s1845 + $0x28] sm:$0xf]
        %v1857 = vld [vmem:[%s1845 + $0x2c] sm:$0xf]
        %v1858 = vld [vmem:[%s1845 + $0x30] sm:$0xf]
        %v1859 = vld [vmem:[%s1845 + $0x34] sm:$0xf]
        %v1860 = vld [vmem:[%s1845 + $0x38] sm:$0xf]
        %v1861 = vld [vmem:[%s1845 + $0x3c] sm:$0xf]
        %v1862 = vld [vmem:[%s1845 + $0x40] sm:$0xf]
        %v1863 = vld [vmem:[%s1845 + $0x44] sm:$0xf]
        %v1864 = vld [vmem:[%s1845 + $0x48] sm:$0xf]
        %v1865 = vld [vmem:[%s1845 + $0x4c] sm:$0xf]
        %v1866 = vld [vmem:[%s1845 + $0x50] sm:$0xf]
        %v1867 = vld [vmem:[%s1845 + $0x54] sm:$0xf]
        %v1868 = vld [vmem:[%s1845 + $0x58] sm:$0xf]
        %v1869 = vld [vmem:[%s1845 + $0x5c] sm:$0xf]
        %v1870 = vld [vmem:[%s1845 + $0x60] sm:$0xf]
        %v1871 = vld [vmem:[%s1845 + $0x64] sm:$0xf]
        %v1872 = vld [vmem:[%s1845 + $0x68] sm:$0xf]
        %v1873 = vld [vmem:[%s1845 + $0x6c] sm:$0xf]
        %v1874 = vld [vmem:[%s1845 + $0x70] sm:$0xf]
        %v1875 = vld [vmem:[%s1845 + $0x74] sm:$0xf]
        %v1876 = vld [vmem:[%s1845 + $0x78] sm:$0xf]
        %v1877 = vld [vmem:[%s1845 + $0x7c] sm:$0xf]
        %v1910 = vunpack.c.l.b16 %v1813
        %v1911 = vunpack.c.h.b16 %v1813
        %v1912 = vunpack.c.l.b16 %v1814
        %v1913 = vunpack.c.h.b16 %v1814
        %v1914 = vunpack.c.l.b16 %v1815
        %v1915 = vunpack.c.h.b16 %v1815
        %v1916 = vunpack.c.l.b16 %v1816
        %v1917 = vunpack.c.h.b16 %v1816
        %v1918 = vunpack.c.l.b16 %v1817
        %v1919 = vunpack.c.h.b16 %v1817
        %v1920 = vunpack.c.l.b16 %v1818
        %v1921 = vunpack.c.h.b16 %v1818
        %v1922 = vunpack.c.l.b16 %v1819
        %v1923 = vunpack.c.h.b16 %v1819
        %v1924 = vunpack.c.l.b16 %v1820
        %v1925 = vunpack.c.h.b16 %v1820
        %v1926 = vunpack.c.l.b16 %v1821
        %v1927 = vunpack.c.h.b16 %v1821
        %v1928 = vunpack.c.l.b16 %v1822
        %v1929 = vunpack.c.h.b16 %v1822
        %v1930 = vunpack.c.l.b16 %v1823
        %v1931 = vunpack.c.h.b16 %v1823
        %v1932 = vunpack.c.l.b16 %v1824
        %v1933 = vunpack.c.h.b16 %v1824
        %v1934 = vunpack.c.l.b16 %v1825
        %v1935 = vunpack.c.h.b16 %v1825
        %v1936 = vunpack.c.l.b16 %v1826
        %v1937 = vunpack.c.h.b16 %v1826
        %v1938 = vunpack.c.l.b16 %v1827
        %v1939 = vunpack.c.h.b16 %v1827
        %v1940 = vunpack.c.l.b16 %v1828
        %v1941 = vunpack.c.h.b16 %v1828
        %v1942 = vunpack.c.l.b16 %v1829
        %v1943 = vunpack.c.h.b16 %v1829
        %v1944 = vunpack.c.l.b16 %v1830
        %v1945 = vunpack.c.h.b16 %v1830
        %v1946 = vunpack.c.l.b16 %v1831
        %v1947 = vunpack.c.h.b16 %v1831
        %v1948 = vunpack.c.l.b16 %v1832
        %v1949 = vunpack.c.h.b16 %v1832
        %v1950 = vunpack.c.l.b16 %v1833
        %v1951 = vunpack.c.h.b16 %v1833
        %v1952 = vunpack.c.l.b16 %v1834
        %v1953 = vunpack.c.h.b16 %v1834
        %v1954 = vunpack.c.l.b16 %v1835
        %v1955 = vunpack.c.h.b16 %v1835
        %v1956 = vunpack.c.l.b16 %v1836
        %v1957 = vunpack.c.h.b16 %v1836
        %v1958 = vunpack.c.l.b16 %v1837
        %v1959 = vunpack.c.h.b16 %v1837
        %v1960 = vunpack.c.l.b16 %v1838
        %v1961 = vunpack.c.h.b16 %v1838
        %v1962 = vunpack.c.l.b16 %v1839
        %v1963 = vunpack.c.h.b16 %v1839
        %v1964 = vunpack.c.l.b16 %v1840
        %v1965 = vunpack.c.h.b16 %v1840
        %v1966 = vunpack.c.l.b16 %v1841
        %v1967 = vunpack.c.h.b16 %v1841
        %v1968 = vunpack.c.l.b16 %v1842
        %v1969 = vunpack.c.h.b16 %v1842
        %v1970 = vunpack.c.l.b16 %v1843
        %v1971 = vunpack.c.h.b16 %v1843
        %v1972 = vunpack.c.l.b16 %v1844
        %v1973 = vunpack.c.h.b16 %v1844
        %v1974 = vpack.c.b16 %v1912, %v1910
        %v1975 = vpack.c.b16 %v1913, %v1911
        %v1976 = vpack.c.b16 %v1916, %v1914
        %v1977 = vpack.c.b16 %v1917, %v1915
        %v1978 = vpack.c.b16 %v1920, %v1918
        %v1979 = vpack.c.b16 %v1921, %v1919
        %v1980 = vpack.c.b16 %v1924, %v1922
        %v1981 = vpack.c.b16 %v1925, %v1923
        %v1982 = vpack.c.b16 %v1928, %v1926
        %v1983 = vpack.c.b16 %v1929, %v1927
        %v1984 = vpack.c.b16 %v1932, %v1930
        %v1985 = vpack.c.b16 %v1933, %v1931
        %v1986 = vpack.c.b16 %v1936, %v1934
        %v1987 = vpack.c.b16 %v1937, %v1935
        %v1988 = vpack.c.b16 %v1940, %v1938
        %v1989 = vpack.c.b16 %v1941, %v1939
        %v1990 = vpack.c.b16 %v1944, %v1942
        %v1991 = vpack.c.b16 %v1945, %v1943
        %v1992 = vpack.c.b16 %v1948, %v1946
        %v1993 = vpack.c.b16 %v1949, %v1947
        %v1994 = vpack.c.b16 %v1952, %v1950
        %v1995 = vpack.c.b16 %v1953, %v1951
        %v1996 = vpack.c.b16 %v1956, %v1954
        %v1997 = vpack.c.b16 %v1957, %v1955
        %v1998 = vpack.c.b16 %v1960, %v1958
        %v1999 = vpack.c.b16 %v1961, %v1959
        %v2000 = vpack.c.b16 %v1964, %v1962
        %v2001 = vpack.c.b16 %v1965, %v1963
        %v2002 = vpack.c.b16 %v1968, %v1966
        %v2003 = vpack.c.b16 %v1969, %v1967
        %v2004 = vpack.c.b16 %v1972, %v1970
        %v2005 = vpack.c.b16 %v1973, %v1971
        %v2070 = vunpack.c.l.b16 %v1846
        %v2071 = vunpack.c.l.b16 %v1847
        %v2072 = vunpack.c.l.b16 %v1848
        %v2073 = vunpack.c.l.b16 %v1849
        %v2074 = vunpack.c.l.b16 %v1850
        %v2075 = vunpack.c.l.b16 %v1851
        %v2076 = vunpack.c.l.b16 %v1852
        %v2077 = vunpack.c.l.b16 %v1853
        %v2078 = vunpack.c.l.b16 %v1854
        %v2079 = vunpack.c.l.b16 %v1855
        %v2080 = vunpack.c.l.b16 %v1856
        %v2081 = vunpack.c.l.b16 %v1857
        %v2082 = vunpack.c.l.b16 %v1858
        %v2083 = vunpack.c.l.b16 %v1859
        %v2084 = vunpack.c.l.b16 %v1860
        %v2085 = vunpack.c.l.b16 %v1861
        %v2086 = vunpack.c.l.b16 %v1862
        %v2087 = vunpack.c.l.b16 %v1863
        %v2088 = vunpack.c.l.b16 %v1864
        %v2089 = vunpack.c.l.b16 %v1865
        %v2090 = vunpack.c.l.b16 %v1866
        %v2091 = vunpack.c.l.b16 %v1867
        %v2092 = vunpack.c.l.b16 %v1868
        %v2093 = vunpack.c.l.b16 %v1869
        %v2094 = vunpack.c.l.b16 %v1870
        %v2095 = vunpack.c.l.b16 %v1871
        %v2096 = vunpack.c.l.b16 %v1872
        %v2097 = vunpack.c.l.b16 %v1873
        %v2098 = vunpack.c.l.b16 %v1874
        %v2099 = vunpack.c.l.b16 %v1875
        %v2100 = vunpack.c.l.b16 %v1876
        %v2101 = vunpack.c.l.b16 %v1877
        %v2102 = vpack.c.b16 %v2071, %v2070
        %v2103 = vpack.c.b16 %v2073, %v2072
        %v2104 = vpack.c.b16 %v2075, %v2074
        %v2105 = vpack.c.b16 %v2077, %v2076
        %v2106 = vpack.c.b16 %v2079, %v2078
        %v2107 = vpack.c.b16 %v2081, %v2080
        %v2108 = vpack.c.b16 %v2083, %v2082
        %v2109 = vpack.c.b16 %v2085, %v2084
        %v2110 = vpack.c.b16 %v2087, %v2086
        %v2111 = vpack.c.b16 %v2089, %v2088
        %v2112 = vpack.c.b16 %v2091, %v2090
        %v2113 = vpack.c.b16 %v2093, %v2092
        %v2114 = vpack.c.b16 %v2095, %v2094
        %v2115 = vpack.c.b16 %v2097, %v2096
        %v2116 = vpack.c.b16 %v2099, %v2098
        %v2117 = vpack.c.b16 %v2101, %v2100
        %2134 = vmatprep.subr.bf16.mxu0 0
        %2135 = vmatpush1.bf16.msra.mxu0 %v2109
        %2136 = vmatprep.subr.bf16.mxu0 0
        %2137 = vmatpush1.bf16.msra.mxu0 %v2108
        %2138 = vmatprep.subr.bf16.mxu0 0
        %2139 = vmatpush1.bf16.msra.mxu0 %v2107
        %2140 = vmatprep.subr.bf16.mxu0 0
        %2141 = vmatpush1.bf16.msra.mxu0 %v2106
        %2142 = vmatprep.subr.bf16.mxu0 0
        %2143 = vmatpush1.bf16.msra.mxu0 %v2105
        %2144 = vmatprep.subr.bf16.mxu0 0
        %2145 = vmatpush1.bf16.msra.mxu0 %v2104
        %2146 = vmatprep.subr.bf16.mxu0 0
        %2147 = vmatpush1.bf16.msra.mxu0 %v2103
        %2148 = vmatprep.subr.bf16.mxu0 0
        %2149 = vmatpush1.bf16.msra.mxu0 %v2102
        %2150 = vmatprep.subr.bf16.mxu0 0
        %2151 = vmatpush2.bf16.msra.mxu0 %v2117
        %2152 = vmatprep.subr.bf16.mxu0 0
        %2153 = vmatpush2.bf16.msra.mxu0 %v2116
        %2154 = vmatprep.subr.bf16.mxu0 0
        %2155 = vmatpush2.bf16.msra.mxu0 %v2115
        %2156 = vmatprep.subr.bf16.mxu0 0
        %2157 = vmatpush2.bf16.msra.mxu0 %v2114
        %2158 = vmatprep.subr.bf16.mxu0 0
        %2159 = vmatpush2.bf16.msra.mxu0 %v2113
        %2160 = vmatprep.subr.bf16.mxu0 0
        %2161 = vmatpush2.bf16.msra.mxu0 %v2112
        %2162 = vmatprep.subr.bf16.mxu0 0
        %2163 = vmatpush2.bf16.msra.mxu0 %v2111
        %2164 = vmatprep.subr.bf16.mxu0 0
        %2165 = vmatpush2.bf16.msra.mxu0 %v2110
        %2166 = vmatprep.mubr.bf16.mxu0 %v1975
        %2167 = vmatmul.mubr.bf16.gmra.mxu0 %v1974
        %v2168 = vpop.f32.mrf.mxu0
        %v2169 = vadd.f32 0.0, %v2168
        %v2170 = vpop.f32.mrf.mxu0
        %v2171 = vpop.f32.mrf.mxu0
        %v2172 = vadd.f32 0.0, %v2171
        %v2173 = vpop.f32.mrf.mxu0
        %2174 = vmatprep.mubr.bf16.mxu0 %v1977
        %2175 = vmatmul.mubr.bf16.gmra.mxu0 %v1976
        %v2176 = vpop.f32.mrf.mxu0
        %v2177 = vadd.f32 0.0, %v2176
        %v2178 = vpop.f32.mrf.mxu0
        %v2179 = vpop.f32.mrf.mxu0
        %v2180 = vadd.f32 0.0, %v2179
        %v2181 = vpop.f32.mrf.mxu0
        %2182 = vmatprep.mubr.bf16.mxu0 %v1979
        %2183 = vmatmul.mubr.bf16.gmra.mxu0 %v1978
        %v2184 = vpop.f32.mrf.mxu0
        %v2185 = vadd.f32 0.0, %v2184
        %v2186 = vpop.f32.mrf.mxu0
        %v2187 = vpop.f32.mrf.mxu0
        %v2188 = vadd.f32 0.0, %v2187
        %v2189 = vpop.f32.mrf.mxu0
        %2190 = vmatprep.mubr.bf16.mxu0 %v1981
        %2191 = vmatmul.mubr.bf16.gmra.mxu0 %v1980
        %v2192 = vpop.f32.mrf.mxu0
        %v2193 = vadd.f32 0.0, %v2192
        %v2194 = vpop.f32.mrf.mxu0
        %v2195 = vpop.f32.mrf.mxu0
        %v2196 = vadd.f32 0.0, %v2195
        %v2197 = vpop.f32.mrf.mxu0
        %2198 = vmatprep.mubr.bf16.mxu0 %v1983
        %2199 = vmatmul.mubr.bf16.gmra.mxu0 %v1982
        %v2200 = vpop.f32.mrf.mxu0
        %v2201 = vadd.f32 0.0, %v2200
        %v2202 = vpop.f32.mrf.mxu0
        %v2203 = vpop.f32.mrf.mxu0
        %v2204 = vadd.f32 0.0, %v2203
        %v2205 = vpop.f32.mrf.mxu0
        %2206 = vmatprep.mubr.bf16.mxu0 %v1985
        %2207 = vmatmul.mubr.bf16.gmra.mxu0 %v1984
        %v2208 = vpop.f32.mrf.mxu0
        %v2209 = vadd.f32 0.0, %v2208
        %v2210 = vpop.f32.mrf.mxu0
        %v2211 = vpop.f32.mrf.mxu0
        %v2212 = vadd.f32 0.0, %v2211
        %v2213 = vpop.f32.mrf.mxu0
        %2214 = vmatprep.mubr.bf16.mxu0 %v1987
        %2215 = vmatmul.mubr.bf16.gmra.mxu0 %v1986
        %v2216 = vpop.f32.mrf.mxu0
        %v2217 = vadd.f32 0.0, %v2216
        %v2218 = vpop.f32.mrf.mxu0
        %v2219 = vpop.f32.mrf.mxu0
        %v2220 = vadd.f32 0.0, %v2219
        %v2221 = vpop.f32.mrf.mxu0
        %2222 = vmatprep.mubr.bf16.mxu0 %v1989
        %2223 = vmatmul.mubr.bf16.gmra.mxu0 %v1988
        %v2224 = vpop.f32.mrf.mxu0
        %v2225 = vadd.f32 0.0, %v2224
        %v2226 = vpop.f32.mrf.mxu0
        %v2227 = vpop.f32.mrf.mxu0
        %v2228 = vadd.f32 0.0, %v2227
        %v2229 = vpop.f32.mrf.mxu0
        %2230 = vmatprep.mubr.bf16.mxu0 %v1991
        %2231 = vmatmul.mubr.bf16.gmra.mxu0 %v1990
        %v2232 = vpop.f32.mrf.mxu0
        %v2233 = vadd.f32 0.0, %v2232
        %v2234 = vpop.f32.mrf.mxu0
        %v2235 = vpop.f32.mrf.mxu0
        %v2236 = vadd.f32 0.0, %v2235
        %v2237 = vpop.f32.mrf.mxu0
        %2238 = vmatprep.mubr.bf16.mxu0 %v1993
        %2239 = vmatmul.mubr.bf16.gmra.mxu0 %v1992
        %v2240 = vpop.f32.mrf.mxu0
        %v2241 = vadd.f32 0.0, %v2240
        %v2242 = vpop.f32.mrf.mxu0
        %v2243 = vpop.f32.mrf.mxu0
        %v2244 = vadd.f32 0.0, %v2243
        %v2245 = vpop.f32.mrf.mxu0
        %2246 = vmatprep.mubr.bf16.mxu0 %v1995
        %2247 = vmatmul.mubr.bf16.gmra.mxu0 %v1994
        %v2248 = vpop.f32.mrf.mxu0
        %v2249 = vadd.f32 0.0, %v2248
        %v2250 = vpop.f32.mrf.mxu0
        %v2251 = vpop.f32.mrf.mxu0
        %v2252 = vadd.f32 0.0, %v2251
        %v2253 = vpop.f32.mrf.mxu0
        %2254 = vmatprep.mubr.bf16.mxu0 %v1997
        %2255 = vmatmul.mubr.bf16.gmra.mxu0 %v1996
        %v2256 = vpop.f32.mrf.mxu0
        %v2257 = vadd.f32 0.0, %v2256
        %v2258 = vpop.f32.mrf.mxu0
        %v2259 = vpop.f32.mrf.mxu0
        %v2260 = vadd.f32 0.0, %v2259
        %v2261 = vpop.f32.mrf.mxu0
        %2262 = vmatprep.mubr.bf16.mxu0 %v1999
        %2263 = vmatmul.mubr.bf16.gmra.mxu0 %v1998
        %v2264 = vpop.f32.mrf.mxu0
        %v2265 = vadd.f32 0.0, %v2264
        %v2266 = vpop.f32.mrf.mxu0
        %v2267 = vpop.f32.mrf.mxu0
        %v2268 = vadd.f32 0.0, %v2267
        %v2269 = vpop.f32.mrf.mxu0
        %2270 = vmatprep.mubr.bf16.mxu0 %v2001
        %2271 = vmatmul.mubr.bf16.gmra.mxu0 %v2000
        %v2272 = vpop.f32.mrf.mxu0
        %v2273 = vadd.f32 0.0, %v2272
        %v2274 = vpop.f32.mrf.mxu0
        %v2275 = vpop.f32.mrf.mxu0
        %v2276 = vadd.f32 0.0, %v2275
        %v2277 = vpop.f32.mrf.mxu0
        %2278 = vmatprep.mubr.bf16.mxu0 %v2003
        %2279 = vmatmul.mubr.bf16.gmra.mxu0 %v2002
        %v2280 = vpop.f32.mrf.mxu0
        %v2281 = vadd.f32 0.0, %v2280
        %v2282 = vpop.f32.mrf.mxu0
        %v2283 = vpop.f32.mrf.mxu0
        %v2284 = vadd.f32 0.0, %v2283
        %v2285 = vpop.f32.mrf.mxu0
        %2286 = vmatprep.mubr.bf16.mxu0 %v2005
        %2287 = vmatmul.mubr.bf16.gmra.mxu0 %v2004
        %v2288 = vpop.f32.mrf.mxu0
        %v2289 = vadd.f32 0.0, %v2288
        %v2290 = vpop.f32.mrf.mxu0
        %v2291 = vpop.f32.mrf.mxu0
        %v2292 = vadd.f32 0.0, %v2291
        %v2293 = vpop.f32.mrf.mxu0
        %2294 = vdwg.mxu0
        %v2295 = vadd.f32 %v1777, %v2169
        %v2296 = vadd.f32 %v1778, %v2172
        %v2297 = vadd.f32 %v1779, %v2177
        %v2298 = vadd.f32 %v1780, %v2180
        %v2299 = vadd.f32 %v1781, %v2185
        %v2300 = vadd.f32 %v1782, %v2188
        %v2301 = vadd.f32 %v1783, %v2193
        %v2302 = vadd.f32 %v1784, %v2196
        %v2303 = vadd.f32 %v1785, %v2201
        %v2304 = vadd.f32 %v1786, %v2204
        %v2305 = vadd.f32 %v1787, %v2209
        %v2306 = vadd.f32 %v1788, %v2212
        %v2307 = vadd.f32 %v1789, %v2217
        %v2308 = vadd.f32 %v1790, %v2220
        %v2309 = vadd.f32 %v1791, %v2225
        %v2310 = vadd.f32 %v1792, %v2228
        %v2311 = vadd.f32 %v1793, %v2233
        %v2312 = vadd.f32 %v1794, %v2236
        %v2313 = vadd.f32 %v1795, %v2241
        %v2314 = vadd.f32 %v1796, %v2244
        %v2315 = vadd.f32 %v1797, %v2249
        %v2316 = vadd.f32 %v1798, %v2252
        %v2317 = vadd.f32 %v1799, %v2257
        %v2318 = vadd.f32 %v1800, %v2260
        %v2319 = vadd.f32 %v1801, %v2265
        %v2320 = vadd.f32 %v1802, %v2268
        %v2321 = vadd.f32 %v1803, %v2273
        %v2322 = vadd.f32 %v1804, %v2276
        %v2323 = vadd.f32 %v1805, %v2281
        %v2324 = vadd.f32 %v1806, %v2284
        %v2325 = vadd.f32 %v1807, %v2289
        %v2326 = vadd.f32 %v1808, %v2292
        %s2327 = sadd.s32 %s320, 4
        %s2328 = smul.u32 %s2327, 16
        %s2329 = smul.addr %s2328, 4
        %s2330 = scalar_lea.vmem %s284, %s2329 [#allocation3]
        %v2331 = vld [vmem:[%s2330] sm:$0xff]
        %v2332 = vld [vmem:[%s2330 + $0x8] sm:$0xff]
        %v2333 = vld [vmem:[%s2330 + $0x10] sm:$0xff]
        %v2334 = vld [vmem:[%s2330 + $0x18] sm:$0xff]
        %v2335 = vld [vmem:[%s2330 + $0x20] sm:$0xff]
        %v2336 = vld [vmem:[%s2330 + $0x28] sm:$0xff]
        %v2337 = vld [vmem:[%s2330 + $0x30] sm:$0xff]
        %v2338 = vld [vmem:[%s2330 + $0x38] sm:$0xff]
        %v2339 = vld [vmem:[%s2330 + $0x40] sm:$0xff]
        %v2340 = vld [vmem:[%s2330 + $0x48] sm:$0xff]
        %v2341 = vld [vmem:[%s2330 + $0x50] sm:$0xff]
        %v2342 = vld [vmem:[%s2330 + $0x58] sm:$0xff]
        %v2343 = vld [vmem:[%s2330 + $0x60] sm:$0xff]
        %v2344 = vld [vmem:[%s2330 + $0x68] sm:$0xff]
        %v2345 = vld [vmem:[%s2330 + $0x70] sm:$0xff]
        %v2346 = vld [vmem:[%s2330 + $0x78] sm:$0xff]
        %v2347 = vld [vmem:[%s2330 + $0x80] sm:$0xff]
        %v2348 = vld [vmem:[%s2330 + $0x88] sm:$0xff]
        %v2349 = vld [vmem:[%s2330 + $0x90] sm:$0xff]
        %v2350 = vld [vmem:[%s2330 + $0x98] sm:$0xff]
        %v2351 = vld [vmem:[%s2330 + $0xa0] sm:$0xff]
        %v2352 = vld [vmem:[%s2330 + $0xa8] sm:$0xff]
        %v2353 = vld [vmem:[%s2330 + $0xb0] sm:$0xff]
        %v2354 = vld [vmem:[%s2330 + $0xb8] sm:$0xff]
        %v2355 = vld [vmem:[%s2330 + $0xc0] sm:$0xff]
        %v2356 = vld [vmem:[%s2330 + $0xc8] sm:$0xff]
        %v2357 = vld [vmem:[%s2330 + $0xd0] sm:$0xff]
        %v2358 = vld [vmem:[%s2330 + $0xd8] sm:$0xff]
        %v2359 = vld [vmem:[%s2330 + $0xe0] sm:$0xff]
        %v2360 = vld [vmem:[%s2330 + $0xe8] sm:$0xff]
        %v2361 = vld [vmem:[%s2330 + $0xf0] sm:$0xff]
        %v2362 = vld [vmem:[%s2330 + $0xf8] sm:$0xff]
        %s2363 = scalar_lea.vmem %s1, 512
        %v2364 = vld [vmem:[%s2363] sm:$0xf]
        %v2365 = vld [vmem:[%s2363 + $0x4] sm:$0xf]
        %v2366 = vld [vmem:[%s2363 + $0x8] sm:$0xf]
        %v2367 = vld [vmem:[%s2363 + $0xc] sm:$0xf]
        %v2368 = vld [vmem:[%s2363 + $0x10] sm:$0xf]
        %v2369 = vld [vmem:[%s2363 + $0x14] sm:$0xf]
        %v2370 = vld [vmem:[%s2363 + $0x18] sm:$0xf]
        %v2371 = vld [vmem:[%s2363 + $0x1c] sm:$0xf]
        %v2372 = vld [vmem:[%s2363 + $0x20] sm:$0xf]
        %v2373 = vld [vmem:[%s2363 + $0x24] sm:$0xf]
        %v2374 = vld [vmem:[%s2363 + $0x28] sm:$0xf]
        %v2375 = vld [vmem:[%s2363 + $0x2c] sm:$0xf]
        %v2376 = vld [vmem:[%s2363 + $0x30] sm:$0xf]
        %v2377 = vld [vmem:[%s2363 + $0x34] sm:$0xf]
        %v2378 = vld [vmem:[%s2363 + $0x38] sm:$0xf]
        %v2379 = vld [vmem:[%s2363 + $0x3c] sm:$0xf]
        %v2380 = vld [vmem:[%s2363 + $0x40] sm:$0xf]
        %v2381 = vld [vmem:[%s2363 + $0x44] sm:$0xf]
        %v2382 = vld [vmem:[%s2363 + $0x48] sm:$0xf]
        %v2383 = vld [vmem:[%s2363 + $0x4c] sm:$0xf]
        %v2384 = vld [vmem:[%s2363 + $0x50] sm:$0xf]
        %v2385 = vld [vmem:[%s2363 + $0x54] sm:$0xf]
        %v2386 = vld [vmem:[%s2363 + $0x58] sm:$0xf]
        %v2387 = vld [vmem:[%s2363 + $0x5c] sm:$0xf]
        %v2388 = vld [vmem:[%s2363 + $0x60] sm:$0xf]
        %v2389 = vld [vmem:[%s2363 + $0x64] sm:$0xf]
        %v2390 = vld [vmem:[%s2363 + $0x68] sm:$0xf]
        %v2391 = vld [vmem:[%s2363 + $0x6c] sm:$0xf]
        %v2392 = vld [vmem:[%s2363 + $0x70] sm:$0xf]
        %v2393 = vld [vmem:[%s2363 + $0x74] sm:$0xf]
        %v2394 = vld [vmem:[%s2363 + $0x78] sm:$0xf]
        %v2395 = vld [vmem:[%s2363 + $0x7c] sm:$0xf]
        %v2428 = vunpack.c.l.b16 %v2331
        %v2429 = vunpack.c.h.b16 %v2331
        %v2430 = vunpack.c.l.b16 %v2332
        %v2431 = vunpack.c.h.b16 %v2332
        %v2432 = vunpack.c.l.b16 %v2333
        %v2433 = vunpack.c.h.b16 %v2333
        %v2434 = vunpack.c.l.b16 %v2334
        %v2435 = vunpack.c.h.b16 %v2334
        %v2436 = vunpack.c.l.b16 %v2335
        %v2437 = vunpack.c.h.b16 %v2335
        %v2438 = vunpack.c.l.b16 %v2336
        %v2439 = vunpack.c.h.b16 %v2336
        %v2440 = vunpack.c.l.b16 %v2337
        %v2441 = vunpack.c.h.b16 %v2337
        %v2442 = vunpack.c.l.b16 %v2338
        %v2443 = vunpack.c.h.b16 %v2338
        %v2444 = vunpack.c.l.b16 %v2339
        %v2445 = vunpack.c.h.b16 %v2339
        %v2446 = vunpack.c.l.b16 %v2340
        %v2447 = vunpack.c.h.b16 %v2340
        %v2448 = vunpack.c.l.b16 %v2341
        %v2449 = vunpack.c.h.b16 %v2341
        %v2450 = vunpack.c.l.b16 %v2342
        %v2451 = vunpack.c.h.b16 %v2342
        %v2452 = vunpack.c.l.b16 %v2343
        %v2453 = vunpack.c.h.b16 %v2343
        %v2454 = vunpack.c.l.b16 %v2344
        %v2455 = vunpack.c.h.b16 %v2344
        %v2456 = vunpack.c.l.b16 %v2345
        %v2457 = vunpack.c.h.b16 %v2345
        %v2458 = vunpack.c.l.b16 %v2346
        %v2459 = vunpack.c.h.b16 %v2346
        %v2460 = vunpack.c.l.b16 %v2347
        %v2461 = vunpack.c.h.b16 %v2347
        %v2462 = vunpack.c.l.b16 %v2348
        %v2463 = vunpack.c.h.b16 %v2348
        %v2464 = vunpack.c.l.b16 %v2349
        %v2465 = vunpack.c.h.b16 %v2349
        %v2466 = vunpack.c.l.b16 %v2350
        %v2467 = vunpack.c.h.b16 %v2350
        %v2468 = vunpack.c.l.b16 %v2351
        %v2469 = vunpack.c.h.b16 %v2351
        %v2470 = vunpack.c.l.b16 %v2352
        %v2471 = vunpack.c.h.b16 %v2352
        %v2472 = vunpack.c.l.b16 %v2353
        %v2473 = vunpack.c.h.b16 %v2353
        %v2474 = vunpack.c.l.b16 %v2354
        %v2475 = vunpack.c.h.b16 %v2354
        %v2476 = vunpack.c.l.b16 %v2355
        %v2477 = vunpack.c.h.b16 %v2355
        %v2478 = vunpack.c.l.b16 %v2356
        %v2479 = vunpack.c.h.b16 %v2356
        %v2480 = vunpack.c.l.b16 %v2357
        %v2481 = vunpack.c.h.b16 %v2357
        %v2482 = vunpack.c.l.b16 %v2358
        %v2483 = vunpack.c.h.b16 %v2358
        %v2484 = vunpack.c.l.b16 %v2359
        %v2485 = vunpack.c.h.b16 %v2359
        %v2486 = vunpack.c.l.b16 %v2360
        %v2487 = vunpack.c.h.b16 %v2360
        %v2488 = vunpack.c.l.b16 %v2361
        %v2489 = vunpack.c.h.b16 %v2361
        %v2490 = vunpack.c.l.b16 %v2362
        %v2491 = vunpack.c.h.b16 %v2362
        %v2492 = vpack.c.b16 %v2430, %v2428
        %v2493 = vpack.c.b16 %v2431, %v2429
        %v2494 = vpack.c.b16 %v2434, %v2432
        %v2495 = vpack.c.b16 %v2435, %v2433
        %v2496 = vpack.c.b16 %v2438, %v2436
        %v2497 = vpack.c.b16 %v2439, %v2437
        %v2498 = vpack.c.b16 %v2442, %v2440
        %v2499 = vpack.c.b16 %v2443, %v2441
        %v2500 = vpack.c.b16 %v2446, %v2444
        %v2501 = vpack.c.b16 %v2447, %v2445
        %v2502 = vpack.c.b16 %v2450, %v2448
        %v2503 = vpack.c.b16 %v2451, %v2449
        %v2504 = vpack.c.b16 %v2454, %v2452
        %v2505 = vpack.c.b16 %v2455, %v2453
        %v2506 = vpack.c.b16 %v2458, %v2456
        %v2507 = vpack.c.b16 %v2459, %v2457
        %v2508 = vpack.c.b16 %v2462, %v2460
        %v2509 = vpack.c.b16 %v2463, %v2461
        %v2510 = vpack.c.b16 %v2466, %v2464
        %v2511 = vpack.c.b16 %v2467, %v2465
        %v2512 = vpack.c.b16 %v2470, %v2468
        %v2513 = vpack.c.b16 %v2471, %v2469
        %v2514 = vpack.c.b16 %v2474, %v2472
        %v2515 = vpack.c.b16 %v2475, %v2473
        %v2516 = vpack.c.b16 %v2478, %v2476
        %v2517 = vpack.c.b16 %v2479, %v2477
        %v2518 = vpack.c.b16 %v2482, %v2480
        %v2519 = vpack.c.b16 %v2483, %v2481
        %v2520 = vpack.c.b16 %v2486, %v2484
        %v2521 = vpack.c.b16 %v2487, %v2485
        %v2522 = vpack.c.b16 %v2490, %v2488
        %v2523 = vpack.c.b16 %v2491, %v2489
        %v2588 = vunpack.c.l.b16 %v2364
        %v2589 = vunpack.c.l.b16 %v2365
        %v2590 = vunpack.c.l.b16 %v2366
        %v2591 = vunpack.c.l.b16 %v2367
        %v2592 = vunpack.c.l.b16 %v2368
        %v2593 = vunpack.c.l.b16 %v2369
        %v2594 = vunpack.c.l.b16 %v2370
        %v2595 = vunpack.c.l.b16 %v2371
        %v2596 = vunpack.c.l.b16 %v2372
        %v2597 = vunpack.c.l.b16 %v2373
        %v2598 = vunpack.c.l.b16 %v2374
        %v2599 = vunpack.c.l.b16 %v2375
        %v2600 = vunpack.c.l.b16 %v2376
        %v2601 = vunpack.c.l.b16 %v2377
        %v2602 = vunpack.c.l.b16 %v2378
        %v2603 = vunpack.c.l.b16 %v2379
        %v2604 = vunpack.c.l.b16 %v2380
        %v2605 = vunpack.c.l.b16 %v2381
        %v2606 = vunpack.c.l.b16 %v2382
        %v2607 = vunpack.c.l.b16 %v2383
        %v2608 = vunpack.c.l.b16 %v2384
        %v2609 = vunpack.c.l.b16 %v2385
        %v2610 = vunpack.c.l.b16 %v2386
        %v2611 = vunpack.c.l.b16 %v2387
        %v2612 = vunpack.c.l.b16 %v2388
        %v2613 = vunpack.c.l.b16 %v2389
        %v2614 = vunpack.c.l.b16 %v2390
        %v2615 = vunpack.c.l.b16 %v2391
        %v2616 = vunpack.c.l.b16 %v2392
        %v2617 = vunpack.c.l.b16 %v2393
        %v2618 = vunpack.c.l.b16 %v2394
        %v2619 = vunpack.c.l.b16 %v2395
        %v2620 = vpack.c.b16 %v2589, %v2588
        %v2621 = vpack.c.b16 %v2591, %v2590
        %v2622 = vpack.c.b16 %v2593, %v2592
        %v2623 = vpack.c.b16 %v2595, %v2594
        %v2624 = vpack.c.b16 %v2597, %v2596
        %v2625 = vpack.c.b16 %v2599, %v2598
        %v2626 = vpack.c.b16 %v2601, %v2600
        %v2627 = vpack.c.b16 %v2603, %v2602
        %v2628 = vpack.c.b16 %v2605, %v2604
        %v2629 = vpack.c.b16 %v2607, %v2606
        %v2630 = vpack.c.b16 %v2609, %v2608
        %v2631 = vpack.c.b16 %v2611, %v2610
        %v2632 = vpack.c.b16 %v2613, %v2612
        %v2633 = vpack.c.b16 %v2615, %v2614
        %v2634 = vpack.c.b16 %v2617, %v2616
        %v2635 = vpack.c.b16 %v2619, %v2618
        %2652 = vmatprep.subr.bf16.mxu0 0
        %2653 = vmatpush1.bf16.msra.mxu0 %v2627
        %2654 = vmatprep.subr.bf16.mxu0 0
        %2655 = vmatpush1.bf16.msra.mxu0 %v2626
        %2656 = vmatprep.subr.bf16.mxu0 0
        %2657 = vmatpush1.bf16.msra.mxu0 %v2625
        %2658 = vmatprep.subr.bf16.mxu0 0
        %2659 = vmatpush1.bf16.msra.mxu0 %v2624
        %2660 = vmatprep.subr.bf16.mxu0 0
        %2661 = vmatpush1.bf16.msra.mxu0 %v2623
        %2662 = vmatprep.subr.bf16.mxu0 0
        %2663 = vmatpush1.bf16.msra.mxu0 %v2622
        %2664 = vmatprep.subr.bf16.mxu0 0
        %2665 = vmatpush1.bf16.msra.mxu0 %v2621
        %2666 = vmatprep.subr.bf16.mxu0 0
        %2667 = vmatpush1.bf16.msra.mxu0 %v2620
        %2668 = vmatprep.subr.bf16.mxu0 0
        %2669 = vmatpush2.bf16.msra.mxu0 %v2635
        %2670 = vmatprep.subr.bf16.mxu0 0
        %2671 = vmatpush2.bf16.msra.mxu0 %v2634
        %2672 = vmatprep.subr.bf16.mxu0 0
        %2673 = vmatpush2.bf16.msra.mxu0 %v2633
        %2674 = vmatprep.subr.bf16.mxu0 0
        %2675 = vmatpush2.bf16.msra.mxu0 %v2632
        %2676 = vmatprep.subr.bf16.mxu0 0
        %2677 = vmatpush2.bf16.msra.mxu0 %v2631
        %2678 = vmatprep.subr.bf16.mxu0 0
        %2679 = vmatpush2.bf16.msra.mxu0 %v2630
        %2680 = vmatprep.subr.bf16.mxu0 0
        %2681 = vmatpush2.bf16.msra.mxu0 %v2629
        %2682 = vmatprep.subr.bf16.mxu0 0
        %2683 = vmatpush2.bf16.msra.mxu0 %v2628
        %2684 = vmatprep.mubr.bf16.mxu0 %v2493
        %2685 = vmatmul.mubr.bf16.gmra.mxu0 %v2492
        %v2686 = vpop.f32.mrf.mxu0
        %v2687 = vadd.f32 0.0, %v2686
        %v2688 = vpop.f32.mrf.mxu0
        %v2689 = vpop.f32.mrf.mxu0
        %v2690 = vadd.f32 0.0, %v2689
        %v2691 = vpop.f32.mrf.mxu0
        %2692 = vmatprep.mubr.bf16.mxu0 %v2495
        %2693 = vmatmul.mubr.bf16.gmra.mxu0 %v2494
        %v2694 = vpop.f32.mrf.mxu0
        %v2695 = vadd.f32 0.0, %v2694
        %v2696 = vpop.f32.mrf.mxu0
        %v2697 = vpop.f32.mrf.mxu0
        %v2698 = vadd.f32 0.0, %v2697
        %v2699 = vpop.f32.mrf.mxu0
        %2700 = vmatprep.mubr.bf16.mxu0 %v2497
        %2701 = vmatmul.mubr.bf16.gmra.mxu0 %v2496
        %v2702 = vpop.f32.mrf.mxu0
        %v2703 = vadd.f32 0.0, %v2702
        %v2704 = vpop.f32.mrf.mxu0
        %v2705 = vpop.f32.mrf.mxu0
        %v2706 = vadd.f32 0.0, %v2705
        %v2707 = vpop.f32.mrf.mxu0
        %2708 = vmatprep.mubr.bf16.mxu0 %v2499
        %2709 = vmatmul.mubr.bf16.gmra.mxu0 %v2498
        %v2710 = vpop.f32.mrf.mxu0
        %v2711 = vadd.f32 0.0, %v2710
        %v2712 = vpop.f32.mrf.mxu0
        %v2713 = vpop.f32.mrf.mxu0
        %v2714 = vadd.f32 0.0, %v2713
        %v2715 = vpop.f32.mrf.mxu0
        %2716 = vmatprep.mubr.bf16.mxu0 %v2501
        %2717 = vmatmul.mubr.bf16.gmra.mxu0 %v2500
        %v2718 = vpop.f32.mrf.mxu0
        %v2719 = vadd.f32 0.0, %v2718
        %v2720 = vpop.f32.mrf.mxu0
        %v2721 = vpop.f32.mrf.mxu0
        %v2722 = vadd.f32 0.0, %v2721
        %v2723 = vpop.f32.mrf.mxu0
        %2724 = vmatprep.mubr.bf16.mxu0 %v2503
        %2725 = vmatmul.mubr.bf16.gmra.mxu0 %v2502
        %v2726 = vpop.f32.mrf.mxu0
        %v2727 = vadd.f32 0.0, %v2726
        %v2728 = vpop.f32.mrf.mxu0
        %v2729 = vpop.f32.mrf.mxu0
        %v2730 = vadd.f32 0.0, %v2729
        %v2731 = vpop.f32.mrf.mxu0
        %2732 = vmatprep.mubr.bf16.mxu0 %v2505
        %2733 = vmatmul.mubr.bf16.gmra.mxu0 %v2504
        %v2734 = vpop.f32.mrf.mxu0
        %v2735 = vadd.f32 0.0, %v2734
        %v2736 = vpop.f32.mrf.mxu0
        %v2737 = vpop.f32.mrf.mxu0
        %v2738 = vadd.f32 0.0, %v2737
        %v2739 = vpop.f32.mrf.mxu0
        %2740 = vmatprep.mubr.bf16.mxu0 %v2507
        %2741 = vmatmul.mubr.bf16.gmra.mxu0 %v2506
        %v2742 = vpop.f32.mrf.mxu0
        %v2743 = vadd.f32 0.0, %v2742
        %v2744 = vpop.f32.mrf.mxu0
        %v2745 = vpop.f32.mrf.mxu0
        %v2746 = vadd.f32 0.0, %v2745
        %v2747 = vpop.f32.mrf.mxu0
        %2748 = vmatprep.mubr.bf16.mxu0 %v2509
        %2749 = vmatmul.mubr.bf16.gmra.mxu0 %v2508
        %v2750 = vpop.f32.mrf.mxu0
        %v2751 = vadd.f32 0.0, %v2750
        %v2752 = vpop.f32.mrf.mxu0
        %v2753 = vpop.f32.mrf.mxu0
        %v2754 = vadd.f32 0.0, %v2753
        %v2755 = vpop.f32.mrf.mxu0
        %2756 = vmatprep.mubr.bf16.mxu0 %v2511
        %2757 = vmatmul.mubr.bf16.gmra.mxu0 %v2510
        %v2758 = vpop.f32.mrf.mxu0
        %v2759 = vadd.f32 0.0, %v2758
        %v2760 = vpop.f32.mrf.mxu0
        %v2761 = vpop.f32.mrf.mxu0
        %v2762 = vadd.f32 0.0, %v2761
        %v2763 = vpop.f32.mrf.mxu0
        %2764 = vmatprep.mubr.bf16.mxu0 %v2513
        %2765 = vmatmul.mubr.bf16.gmra.mxu0 %v2512
        %v2766 = vpop.f32.mrf.mxu0
        %v2767 = vadd.f32 0.0, %v2766
        %v2768 = vpop.f32.mrf.mxu0
        %v2769 = vpop.f32.mrf.mxu0
        %v2770 = vadd.f32 0.0, %v2769
        %v2771 = vpop.f32.mrf.mxu0
        %2772 = vmatprep.mubr.bf16.mxu0 %v2515
        %2773 = vmatmul.mubr.bf16.gmra.mxu0 %v2514
        %v2774 = vpop.f32.mrf.mxu0
        %v2775 = vadd.f32 0.0, %v2774
        %v2776 = vpop.f32.mrf.mxu0
        %v2777 = vpop.f32.mrf.mxu0
        %v2778 = vadd.f32 0.0, %v2777
        %v2779 = vpop.f32.mrf.mxu0
        %2780 = vmatprep.mubr.bf16.mxu0 %v2517
        %2781 = vmatmul.mubr.bf16.gmra.mxu0 %v2516
        %v2782 = vpop.f32.mrf.mxu0
        %v2783 = vadd.f32 0.0, %v2782
        %v2784 = vpop.f32.mrf.mxu0
        %v2785 = vpop.f32.mrf.mxu0
        %v2786 = vadd.f32 0.0, %v2785
        %v2787 = vpop.f32.mrf.mxu0
        %2788 = vmatprep.mubr.bf16.mxu0 %v2519
        %2789 = vmatmul.mubr.bf16.gmra.mxu0 %v2518
        %v2790 = vpop.f32.mrf.mxu0
        %v2791 = vadd.f32 0.0, %v2790
        %v2792 = vpop.f32.mrf.mxu0
        %v2793 = vpop.f32.mrf.mxu0
        %v2794 = vadd.f32 0.0, %v2793
        %v2795 = vpop.f32.mrf.mxu0
        %2796 = vmatprep.mubr.bf16.mxu0 %v2521
        %2797 = vmatmul.mubr.bf16.gmra.mxu0 %v2520
        %v2798 = vpop.f32.mrf.mxu0
        %v2799 = vadd.f32 0.0, %v2798
        %v2800 = vpop.f32.mrf.mxu0
        %v2801 = vpop.f32.mrf.mxu0
        %v2802 = vadd.f32 0.0, %v2801
        %v2803 = vpop.f32.mrf.mxu0
        %2804 = vmatprep.mubr.bf16.mxu0 %v2523
        %2805 = vmatmul.mubr.bf16.gmra.mxu0 %v2522
        %v2806 = vpop.f32.mrf.mxu0
        %v2807 = vadd.f32 0.0, %v2806
        %v2808 = vpop.f32.mrf.mxu0
        %v2809 = vpop.f32.mrf.mxu0
        %v2810 = vadd.f32 0.0, %v2809
        %v2811 = vpop.f32.mrf.mxu0
        %2812 = vdwg.mxu0
        %v2813 = vadd.f32 %v2295, %v2687
        %v2814 = vadd.f32 %v2296, %v2690
        %v2815 = vadd.f32 %v2297, %v2695
        %v2816 = vadd.f32 %v2298, %v2698
        %v2817 = vadd.f32 %v2299, %v2703
        %v2818 = vadd.f32 %v2300, %v2706
        %v2819 = vadd.f32 %v2301, %v2711
        %v2820 = vadd.f32 %v2302, %v2714
        %v2821 = vadd.f32 %v2303, %v2719
        %v2822 = vadd.f32 %v2304, %v2722
        %v2823 = vadd.f32 %v2305, %v2727
        %v2824 = vadd.f32 %v2306, %v2730
        %v2825 = vadd.f32 %v2307, %v2735
        %v2826 = vadd.f32 %v2308, %v2738
        %v2827 = vadd.f32 %v2309, %v2743
        %v2828 = vadd.f32 %v2310, %v2746
        %v2829 = vadd.f32 %v2311, %v2751
        %v2830 = vadd.f32 %v2312, %v2754
        %v2831 = vadd.f32 %v2313, %v2759
        %v2832 = vadd.f32 %v2314, %v2762
        %v2833 = vadd.f32 %v2315, %v2767
        %v2834 = vadd.f32 %v2316, %v2770
        %v2835 = vadd.f32 %v2317, %v2775
        %v2836 = vadd.f32 %v2318, %v2778
        %v2837 = vadd.f32 %v2319, %v2783
        %v2838 = vadd.f32 %v2320, %v2786
        %v2839 = vadd.f32 %v2321, %v2791
        %v2840 = vadd.f32 %v2322, %v2794
        %v2841 = vadd.f32 %v2323, %v2799
        %v2842 = vadd.f32 %v2324, %v2802
        %v2843 = vadd.f32 %v2325, %v2807
        %v2844 = vadd.f32 %v2326, %v2810
        %s2845 = sadd.s32 %s320, 5
        %s2846 = smul.u32 %s2845, 16
        %s2847 = smul.addr %s2846, 4
        %s2848 = scalar_lea.vmem %s284, %s2847 [#allocation3]
        %v2849 = vld [vmem:[%s2848] sm:$0xff]
        %v2850 = vld [vmem:[%s2848 + $0x8] sm:$0xff]
        %v2851 = vld [vmem:[%s2848 + $0x10] sm:$0xff]
        %v2852 = vld [vmem:[%s2848 + $0x18] sm:$0xff]
        %v2853 = vld [vmem:[%s2848 + $0x20] sm:$0xff]
        %v2854 = vld [vmem:[%s2848 + $0x28] sm:$0xff]
        %v2855 = vld [vmem:[%s2848 + $0x30] sm:$0xff]
        %v2856 = vld [vmem:[%s2848 + $0x38] sm:$0xff]
        %v2857 = vld [vmem:[%s2848 + $0x40] sm:$0xff]
        %v2858 = vld [vmem:[%s2848 + $0x48] sm:$0xff]
        %v2859 = vld [vmem:[%s2848 + $0x50] sm:$0xff]
        %v2860 = vld [vmem:[%s2848 + $0x58] sm:$0xff]
        %v2861 = vld [vmem:[%s2848 + $0x60] sm:$0xff]
        %v2862 = vld [vmem:[%s2848 + $0x68] sm:$0xff]
        %v2863 = vld [vmem:[%s2848 + $0x70] sm:$0xff]
        %v2864 = vld [vmem:[%s2848 + $0x78] sm:$0xff]
        %v2865 = vld [vmem:[%s2848 + $0x80] sm:$0xff]
        %v2866 = vld [vmem:[%s2848 + $0x88] sm:$0xff]
        %v2867 = vld [vmem:[%s2848 + $0x90] sm:$0xff]
        %v2868 = vld [vmem:[%s2848 + $0x98] sm:$0xff]
        %v2869 = vld [vmem:[%s2848 + $0xa0] sm:$0xff]
        %v2870 = vld [vmem:[%s2848 + $0xa8] sm:$0xff]
        %v2871 = vld [vmem:[%s2848 + $0xb0] sm:$0xff]
        %v2872 = vld [vmem:[%s2848 + $0xb8] sm:$0xff]
        %v2873 = vld [vmem:[%s2848 + $0xc0] sm:$0xff]
        %v2874 = vld [vmem:[%s2848 + $0xc8] sm:$0xff]
        %v2875 = vld [vmem:[%s2848 + $0xd0] sm:$0xff]
        %v2876 = vld [vmem:[%s2848 + $0xd8] sm:$0xff]
        %v2877 = vld [vmem:[%s2848 + $0xe0] sm:$0xff]
        %v2878 = vld [vmem:[%s2848 + $0xe8] sm:$0xff]
        %v2879 = vld [vmem:[%s2848 + $0xf0] sm:$0xff]
        %v2880 = vld [vmem:[%s2848 + $0xf8] sm:$0xff]
        %s2881 = scalar_lea.vmem %s1, 640
        %v2882 = vld [vmem:[%s2881] sm:$0xf]
        %v2883 = vld [vmem:[%s2881 + $0x4] sm:$0xf]
        %v2884 = vld [vmem:[%s2881 + $0x8] sm:$0xf]
        %v2885 = vld [vmem:[%s2881 + $0xc] sm:$0xf]
        %v2886 = vld [vmem:[%s2881 + $0x10] sm:$0xf]
        %v2887 = vld [vmem:[%s2881 + $0x14] sm:$0xf]
        %v2888 = vld [vmem:[%s2881 + $0x18] sm:$0xf]
        %v2889 = vld [vmem:[%s2881 + $0x1c] sm:$0xf]
        %v2890 = vld [vmem:[%s2881 + $0x20] sm:$0xf]
        %v2891 = vld [vmem:[%s2881 + $0x24] sm:$0xf]
        %v2892 = vld [vmem:[%s2881 + $0x28] sm:$0xf]
        %v2893 = vld [vmem:[%s2881 + $0x2c] sm:$0xf]
        %v2894 = vld [vmem:[%s2881 + $0x30] sm:$0xf]
        %v2895 = vld [vmem:[%s2881 + $0x34] sm:$0xf]
        %v2896 = vld [vmem:[%s2881 + $0x38] sm:$0xf]
        %v2897 = vld [vmem:[%s2881 + $0x3c] sm:$0xf]
        %v2898 = vld [vmem:[%s2881 + $0x40] sm:$0xf]
        %v2899 = vld [vmem:[%s2881 + $0x44] sm:$0xf]
        %v2900 = vld [vmem:[%s2881 + $0x48] sm:$0xf]
        %v2901 = vld [vmem:[%s2881 + $0x4c] sm:$0xf]
        %v2902 = vld [vmem:[%s2881 + $0x50] sm:$0xf]
        %v2903 = vld [vmem:[%s2881 + $0x54] sm:$0xf]
        %v2904 = vld [vmem:[%s2881 + $0x58] sm:$0xf]
        %v2905 = vld [vmem:[%s2881 + $0x5c] sm:$0xf]
        %v2906 = vld [vmem:[%s2881 + $0x60] sm:$0xf]
        %v2907 = vld [vmem:[%s2881 + $0x64] sm:$0xf]
        %v2908 = vld [vmem:[%s2881 + $0x68] sm:$0xf]
        %v2909 = vld [vmem:[%s2881 + $0x6c] sm:$0xf]
        %v2910 = vld [vmem:[%s2881 + $0x70] sm:$0xf]
        %v2911 = vld [vmem:[%s2881 + $0x74] sm:$0xf]
        %v2912 = vld [vmem:[%s2881 + $0x78] sm:$0xf]
        %v2913 = vld [vmem:[%s2881 + $0x7c] sm:$0xf]
        %v2946 = vunpack.c.l.b16 %v2849
        %v2947 = vunpack.c.h.b16 %v2849
        %v2948 = vunpack.c.l.b16 %v2850
        %v2949 = vunpack.c.h.b16 %v2850
        %v2950 = vunpack.c.l.b16 %v2851
        %v2951 = vunpack.c.h.b16 %v2851
        %v2952 = vunpack.c.l.b16 %v2852
        %v2953 = vunpack.c.h.b16 %v2852
        %v2954 = vunpack.c.l.b16 %v2853
        %v2955 = vunpack.c.h.b16 %v2853
        %v2956 = vunpack.c.l.b16 %v2854
        %v2957 = vunpack.c.h.b16 %v2854
        %v2958 = vunpack.c.l.b16 %v2855
        %v2959 = vunpack.c.h.b16 %v2855
        %v2960 = vunpack.c.l.b16 %v2856
        %v2961 = vunpack.c.h.b16 %v2856
        %v2962 = vunpack.c.l.b16 %v2857
        %v2963 = vunpack.c.h.b16 %v2857
        %v2964 = vunpack.c.l.b16 %v2858
        %v2965 = vunpack.c.h.b16 %v2858
        %v2966 = vunpack.c.l.b16 %v2859
        %v2967 = vunpack.c.h.b16 %v2859
        %v2968 = vunpack.c.l.b16 %v2860
        %v2969 = vunpack.c.h.b16 %v2860
        %v2970 = vunpack.c.l.b16 %v2861
        %v2971 = vunpack.c.h.b16 %v2861
        %v2972 = vunpack.c.l.b16 %v2862
        %v2973 = vunpack.c.h.b16 %v2862
        %v2974 = vunpack.c.l.b16 %v2863
        %v2975 = vunpack.c.h.b16 %v2863
        %v2976 = vunpack.c.l.b16 %v2864
        %v2977 = vunpack.c.h.b16 %v2864
        %v2978 = vunpack.c.l.b16 %v2865
        %v2979 = vunpack.c.h.b16 %v2865
        %v2980 = vunpack.c.l.b16 %v2866
        %v2981 = vunpack.c.h.b16 %v2866
        %v2982 = vunpack.c.l.b16 %v2867
        %v2983 = vunpack.c.h.b16 %v2867
        %v2984 = vunpack.c.l.b16 %v2868
        %v2985 = vunpack.c.h.b16 %v2868
        %v2986 = vunpack.c.l.b16 %v2869
        %v2987 = vunpack.c.h.b16 %v2869
        %v2988 = vunpack.c.l.b16 %v2870
        %v2989 = vunpack.c.h.b16 %v2870
        %v2990 = vunpack.c.l.b16 %v2871
        %v2991 = vunpack.c.h.b16 %v2871
        %v2992 = vunpack.c.l.b16 %v2872
        %v2993 = vunpack.c.h.b16 %v2872
        %v2994 = vunpack.c.l.b16 %v2873
        %v2995 = vunpack.c.h.b16 %v2873
        %v2996 = vunpack.c.l.b16 %v2874
        %v2997 = vunpack.c.h.b16 %v2874
        %v2998 = vunpack.c.l.b16 %v2875
        %v2999 = vunpack.c.h.b16 %v2875
        %v3000 = vunpack.c.l.b16 %v2876
        %v3001 = vunpack.c.h.b16 %v2876
        %v3002 = vunpack.c.l.b16 %v2877
        %v3003 = vunpack.c.h.b16 %v2877
        %v3004 = vunpack.c.l.b16 %v2878
        %v3005 = vunpack.c.h.b16 %v2878
        %v3006 = vunpack.c.l.b16 %v2879
        %v3007 = vunpack.c.h.b16 %v2879
        %v3008 = vunpack.c.l.b16 %v2880
        %v3009 = vunpack.c.h.b16 %v2880
        %v3010 = vpack.c.b16 %v2948, %v2946
        %v3011 = vpack.c.b16 %v2949, %v2947
        %v3012 = vpack.c.b16 %v2952, %v2950
        %v3013 = vpack.c.b16 %v2953, %v2951
        %v3014 = vpack.c.b16 %v2956, %v2954
        %v3015 = vpack.c.b16 %v2957, %v2955
        %v3016 = vpack.c.b16 %v2960, %v2958
        %v3017 = vpack.c.b16 %v2961, %v2959
        %v3018 = vpack.c.b16 %v2964, %v2962
        %v3019 = vpack.c.b16 %v2965, %v2963
        %v3020 = vpack.c.b16 %v2968, %v2966
        %v3021 = vpack.c.b16 %v2969, %v2967
        %v3022 = vpack.c.b16 %v2972, %v2970
        %v3023 = vpack.c.b16 %v2973, %v2971
        %v3024 = vpack.c.b16 %v2976, %v2974
        %v3025 = vpack.c.b16 %v2977, %v2975
        %v3026 = vpack.c.b16 %v2980, %v2978
        %v3027 = vpack.c.b16 %v2981, %v2979
        %v3028 = vpack.c.b16 %v2984, %v2982
        %v3029 = vpack.c.b16 %v2985, %v2983
        %v3030 = vpack.c.b16 %v2988, %v2986
        %v3031 = vpack.c.b16 %v2989, %v2987
        %v3032 = vpack.c.b16 %v2992, %v2990
        %v3033 = vpack.c.b16 %v2993, %v2991
        %v3034 = vpack.c.b16 %v2996, %v2994
        %v3035 = vpack.c.b16 %v2997, %v2995
        %v3036 = vpack.c.b16 %v3000, %v2998
        %v3037 = vpack.c.b16 %v3001, %v2999
        %v3038 = vpack.c.b16 %v3004, %v3002
        %v3039 = vpack.c.b16 %v3005, %v3003
        %v3040 = vpack.c.b16 %v3008, %v3006
        %v3041 = vpack.c.b16 %v3009, %v3007
        %v3106 = vunpack.c.l.b16 %v2882
        %v3107 = vunpack.c.l.b16 %v2883
        %v3108 = vunpack.c.l.b16 %v2884
        %v3109 = vunpack.c.l.b16 %v2885
        %v3110 = vunpack.c.l.b16 %v2886
        %v3111 = vunpack.c.l.b16 %v2887
        %v3112 = vunpack.c.l.b16 %v2888
        %v3113 = vunpack.c.l.b16 %v2889
        %v3114 = vunpack.c.l.b16 %v2890
        %v3115 = vunpack.c.l.b16 %v2891
        %v3116 = vunpack.c.l.b16 %v2892
        %v3117 = vunpack.c.l.b16 %v2893
        %v3118 = vunpack.c.l.b16 %v2894
        %v3119 = vunpack.c.l.b16 %v2895
        %v3120 = vunpack.c.l.b16 %v2896
        %v3121 = vunpack.c.l.b16 %v2897
        %v3122 = vunpack.c.l.b16 %v2898
        %v3123 = vunpack.c.l.b16 %v2899
        %v3124 = vunpack.c.l.b16 %v2900
        %v3125 = vunpack.c.l.b16 %v2901
        %v3126 = vunpack.c.l.b16 %v2902
        %v3127 = vunpack.c.l.b16 %v2903
        %v3128 = vunpack.c.l.b16 %v2904
        %v3129 = vunpack.c.l.b16 %v2905
        %v3130 = vunpack.c.l.b16 %v2906
        %v3131 = vunpack.c.l.b16 %v2907
        %v3132 = vunpack.c.l.b16 %v2908
        %v3133 = vunpack.c.l.b16 %v2909
        %v3134 = vunpack.c.l.b16 %v2910
        %v3135 = vunpack.c.l.b16 %v2911
        %v3136 = vunpack.c.l.b16 %v2912
        %v3137 = vunpack.c.l.b16 %v2913
        %v3138 = vpack.c.b16 %v3107, %v3106
        %v3139 = vpack.c.b16 %v3109, %v3108
        %v3140 = vpack.c.b16 %v3111, %v3110
        %v3141 = vpack.c.b16 %v3113, %v3112
        %v3142 = vpack.c.b16 %v3115, %v3114
        %v3143 = vpack.c.b16 %v3117, %v3116
        %v3144 = vpack.c.b16 %v3119, %v3118
        %v3145 = vpack.c.b16 %v3121, %v3120
        %v3146 = vpack.c.b16 %v3123, %v3122
        %v3147 = vpack.c.b16 %v3125, %v3124
        %v3148 = vpack.c.b16 %v3127, %v3126
        %v3149 = vpack.c.b16 %v3129, %v3128
        %v3150 = vpack.c.b16 %v3131, %v3130
        %v3151 = vpack.c.b16 %v3133, %v3132
        %v3152 = vpack.c.b16 %v3135, %v3134
        %v3153 = vpack.c.b16 %v3137, %v3136
        %3170 = vmatprep.subr.bf16.mxu0 0
        %3171 = vmatpush1.bf16.msra.mxu0 %v3145
        %3172 = vmatprep.subr.bf16.mxu0 0
        %3173 = vmatpush1.bf16.msra.mxu0 %v3144
        %3174 = vmatprep.subr.bf16.mxu0 0
        %3175 = vmatpush1.bf16.msra.mxu0 %v3143
        %3176 = vmatprep.subr.bf16.mxu0 0
        %3177 = vmatpush1.bf16.msra.mxu0 %v3142
        %3178 = vmatprep.subr.bf16.mxu0 0
        %3179 = vmatpush1.bf16.msra.mxu0 %v3141
        %3180 = vmatprep.subr.bf16.mxu0 0
        %3181 = vmatpush1.bf16.msra.mxu0 %v3140
        %3182 = vmatprep.subr.bf16.mxu0 0
        %3183 = vmatpush1.bf16.msra.mxu0 %v3139
        %3184 = vmatprep.subr.bf16.mxu0 0
        %3185 = vmatpush1.bf16.msra.mxu0 %v3138
        %3186 = vmatprep.subr.bf16.mxu0 0
        %3187 = vmatpush2.bf16.msra.mxu0 %v3153
        %3188 = vmatprep.subr.bf16.mxu0 0
        %3189 = vmatpush2.bf16.msra.mxu0 %v3152
        %3190 = vmatprep.subr.bf16.mxu0 0
        %3191 = vmatpush2.bf16.msra.mxu0 %v3151
        %3192 = vmatprep.subr.bf16.mxu0 0
        %3193 = vmatpush2.bf16.msra.mxu0 %v3150
        %3194 = vmatprep.subr.bf16.mxu0 0
        %3195 = vmatpush2.bf16.msra.mxu0 %v3149
        %3196 = vmatprep.subr.bf16.mxu0 0
        %3197 = vmatpush2.bf16.msra.mxu0 %v3148
        %3198 = vmatprep.subr.bf16.mxu0 0
        %3199 = vmatpush2.bf16.msra.mxu0 %v3147
        %3200 = vmatprep.subr.bf16.mxu0 0
        %3201 = vmatpush2.bf16.msra.mxu0 %v3146
        %3202 = vmatprep.mubr.bf16.mxu0 %v3011
        %3203 = vmatmul.mubr.bf16.gmra.mxu0 %v3010
        %v3204 = vpop.f32.mrf.mxu0
        %v3205 = vadd.f32 0.0, %v3204
        %v3206 = vpop.f32.mrf.mxu0
        %v3207 = vpop.f32.mrf.mxu0
        %v3208 = vadd.f32 0.0, %v3207
        %v3209 = vpop.f32.mrf.mxu0
        %3210 = vmatprep.mubr.bf16.mxu0 %v3013
        %3211 = vmatmul.mubr.bf16.gmra.mxu0 %v3012
        %v3212 = vpop.f32.mrf.mxu0
        %v3213 = vadd.f32 0.0, %v3212
        %v3214 = vpop.f32.mrf.mxu0
        %v3215 = vpop.f32.mrf.mxu0
        %v3216 = vadd.f32 0.0, %v3215
        %v3217 = vpop.f32.mrf.mxu0
        %3218 = vmatprep.mubr.bf16.mxu0 %v3015
        %3219 = vmatmul.mubr.bf16.gmra.mxu0 %v3014
        %v3220 = vpop.f32.mrf.mxu0
        %v3221 = vadd.f32 0.0, %v3220
        %v3222 = vpop.f32.mrf.mxu0
        %v3223 = vpop.f32.mrf.mxu0
        %v3224 = vadd.f32 0.0, %v3223
        %v3225 = vpop.f32.mrf.mxu0
        %3226 = vmatprep.mubr.bf16.mxu0 %v3017
        %3227 = vmatmul.mubr.bf16.gmra.mxu0 %v3016
        %v3228 = vpop.f32.mrf.mxu0
        %v3229 = vadd.f32 0.0, %v3228
        %v3230 = vpop.f32.mrf.mxu0
        %v3231 = vpop.f32.mrf.mxu0
        %v3232 = vadd.f32 0.0, %v3231
        %v3233 = vpop.f32.mrf.mxu0
        %3234 = vmatprep.mubr.bf16.mxu0 %v3019
        %3235 = vmatmul.mubr.bf16.gmra.mxu0 %v3018
        %v3236 = vpop.f32.mrf.mxu0
        %v3237 = vadd.f32 0.0, %v3236
        %v3238 = vpop.f32.mrf.mxu0
        %v3239 = vpop.f32.mrf.mxu0
        %v3240 = vadd.f32 0.0, %v3239
        %v3241 = vpop.f32.mrf.mxu0
        %3242 = vmatprep.mubr.bf16.mxu0 %v3021
        %3243 = vmatmul.mubr.bf16.gmra.mxu0 %v3020
        %v3244 = vpop.f32.mrf.mxu0
        %v3245 = vadd.f32 0.0, %v3244
        %v3246 = vpop.f32.mrf.mxu0
        %v3247 = vpop.f32.mrf.mxu0
        %v3248 = vadd.f32 0.0, %v3247
        %v3249 = vpop.f32.mrf.mxu0
        %3250 = vmatprep.mubr.bf16.mxu0 %v3023
        %3251 = vmatmul.mubr.bf16.gmra.mxu0 %v3022
        %v3252 = vpop.f32.mrf.mxu0
        %v3253 = vadd.f32 0.0, %v3252
        %v3254 = vpop.f32.mrf.mxu0
        %v3255 = vpop.f32.mrf.mxu0
        %v3256 = vadd.f32 0.0, %v3255
        %v3257 = vpop.f32.mrf.mxu0
        %3258 = vmatprep.mubr.bf16.mxu0 %v3025
        %3259 = vmatmul.mubr.bf16.gmra.mxu0 %v3024
        %v3260 = vpop.f32.mrf.mxu0
        %v3261 = vadd.f32 0.0, %v3260
        %v3262 = vpop.f32.mrf.mxu0
        %v3263 = vpop.f32.mrf.mxu0
        %v3264 = vadd.f32 0.0, %v3263
        %v3265 = vpop.f32.mrf.mxu0
        %3266 = vmatprep.mubr.bf16.mxu0 %v3027
        %3267 = vmatmul.mubr.bf16.gmra.mxu0 %v3026
        %v3268 = vpop.f32.mrf.mxu0
        %v3269 = vadd.f32 0.0, %v3268
        %v3270 = vpop.f32.mrf.mxu0
        %v3271 = vpop.f32.mrf.mxu0
        %v3272 = vadd.f32 0.0, %v3271
        %v3273 = vpop.f32.mrf.mxu0
        %3274 = vmatprep.mubr.bf16.mxu0 %v3029
        %3275 = vmatmul.mubr.bf16.gmra.mxu0 %v3028
        %v3276 = vpop.f32.mrf.mxu0
        %v3277 = vadd.f32 0.0, %v3276
        %v3278 = vpop.f32.mrf.mxu0
        %v3279 = vpop.f32.mrf.mxu0
        %v3280 = vadd.f32 0.0, %v3279
        %v3281 = vpop.f32.mrf.mxu0
        %3282 = vmatprep.mubr.bf16.mxu0 %v3031
        %3283 = vmatmul.mubr.bf16.gmra.mxu0 %v3030
        %v3284 = vpop.f32.mrf.mxu0
        %v3285 = vadd.f32 0.0, %v3284
        %v3286 = vpop.f32.mrf.mxu0
        %v3287 = vpop.f32.mrf.mxu0
        %v3288 = vadd.f32 0.0, %v3287
        %v3289 = vpop.f32.mrf.mxu0
        %3290 = vmatprep.mubr.bf16.mxu0 %v3033
        %3291 = vmatmul.mubr.bf16.gmra.mxu0 %v3032
        %v3292 = vpop.f32.mrf.mxu0
        %v3293 = vadd.f32 0.0, %v3292
        %v3294 = vpop.f32.mrf.mxu0
        %v3295 = vpop.f32.mrf.mxu0
        %v3296 = vadd.f32 0.0, %v3295
        %v3297 = vpop.f32.mrf.mxu0
        %3298 = vmatprep.mubr.bf16.mxu0 %v3035
        %3299 = vmatmul.mubr.bf16.gmra.mxu0 %v3034
        %v3300 = vpop.f32.mrf.mxu0
        %v3301 = vadd.f32 0.0, %v3300
        %v3302 = vpop.f32.mrf.mxu0
        %v3303 = vpop.f32.mrf.mxu0
        %v3304 = vadd.f32 0.0, %v3303
        %v3305 = vpop.f32.mrf.mxu0
        %3306 = vmatprep.mubr.bf16.mxu0 %v3037
        %3307 = vmatmul.mubr.bf16.gmra.mxu0 %v3036
        %v3308 = vpop.f32.mrf.mxu0
        %v3309 = vadd.f32 0.0, %v3308
        %v3310 = vpop.f32.mrf.mxu0
        %v3311 = vpop.f32.mrf.mxu0
        %v3312 = vadd.f32 0.0, %v3311
        %v3313 = vpop.f32.mrf.mxu0
        %3314 = vmatprep.mubr.bf16.mxu0 %v3039
        %3315 = vmatmul.mubr.bf16.gmra.mxu0 %v3038
        %v3316 = vpop.f32.mrf.mxu0
        %v3317 = vadd.f32 0.0, %v3316
        %v3318 = vpop.f32.mrf.mxu0
        %v3319 = vpop.f32.mrf.mxu0
        %v3320 = vadd.f32 0.0, %v3319
        %v3321 = vpop.f32.mrf.mxu0
        %3322 = vmatprep.mubr.bf16.mxu0 %v3041
        %3323 = vmatmul.mubr.bf16.gmra.mxu0 %v3040
        %v3324 = vpop.f32.mrf.mxu0
        %v3325 = vadd.f32 0.0, %v3324
        %v3326 = vpop.f32.mrf.mxu0
        %v3327 = vpop.f32.mrf.mxu0
        %v3328 = vadd.f32 0.0, %v3327
        %v3329 = vpop.f32.mrf.mxu0
        %3330 = vdwg.mxu0
        %v3331 = vadd.f32 %v2813, %v3205
        %v3332 = vadd.f32 %v2814, %v3208
        %v3333 = vadd.f32 %v2815, %v3213
        %v3334 = vadd.f32 %v2816, %v3216
        %v3335 = vadd.f32 %v2817, %v3221
        %v3336 = vadd.f32 %v2818, %v3224
        %v3337 = vadd.f32 %v2819, %v3229
        %v3338 = vadd.f32 %v2820, %v3232
        %v3339 = vadd.f32 %v2821, %v3237
        %v3340 = vadd.f32 %v2822, %v3240
        %v3341 = vadd.f32 %v2823, %v3245
        %v3342 = vadd.f32 %v2824, %v3248
        %v3343 = vadd.f32 %v2825, %v3253
        %v3344 = vadd.f32 %v2826, %v3256
        %v3345 = vadd.f32 %v2827, %v3261
        %v3346 = vadd.f32 %v2828, %v3264
        %v3347 = vadd.f32 %v2829, %v3269
        %v3348 = vadd.f32 %v2830, %v3272
        %v3349 = vadd.f32 %v2831, %v3277
        %v3350 = vadd.f32 %v2832, %v3280
        %v3351 = vadd.f32 %v2833, %v3285
        %v3352 = vadd.f32 %v2834, %v3288
        %v3353 = vadd.f32 %v2835, %v3293
        %v3354 = vadd.f32 %v2836, %v3296
        %v3355 = vadd.f32 %v2837, %v3301
        %v3356 = vadd.f32 %v2838, %v3304
        %v3357 = vadd.f32 %v2839, %v3309
        %v3358 = vadd.f32 %v2840, %v3312
        %v3359 = vadd.f32 %v2841, %v3317
        %v3360 = vadd.f32 %v2842, %v3320
        %v3361 = vadd.f32 %v2843, %v3325
        %v3362 = vadd.f32 %v2844, %v3328
        %s3363 = sadd.s32 %s320, 6
        %s3364 = smul.u32 %s3363, 16
        %s3365 = smul.addr %s3364, 4
        %s3366 = scalar_lea.vmem %s284, %s3365 [#allocation3]
        %v3367 = vld [vmem:[%s3366] sm:$0xff]
        %v3368 = vld [vmem:[%s3366 + $0x8] sm:$0xff]
        %v3369 = vld [vmem:[%s3366 + $0x10] sm:$0xff]
        %v3370 = vld [vmem:[%s3366 + $0x18] sm:$0xff]
        %v3371 = vld [vmem:[%s3366 + $0x20] sm:$0xff]
        %v3372 = vld [vmem:[%s3366 + $0x28] sm:$0xff]
        %v3373 = vld [vmem:[%s3366 + $0x30] sm:$0xff]
        %v3374 = vld [vmem:[%s3366 + $0x38] sm:$0xff]
        %v3375 = vld [vmem:[%s3366 + $0x40] sm:$0xff]
        %v3376 = vld [vmem:[%s3366 + $0x48] sm:$0xff]
        %v3377 = vld [vmem:[%s3366 + $0x50] sm:$0xff]
        %v3378 = vld [vmem:[%s3366 + $0x58] sm:$0xff]
        %v3379 = vld [vmem:[%s3366 + $0x60] sm:$0xff]
        %v3380 = vld [vmem:[%s3366 + $0x68] sm:$0xff]
        %v3381 = vld [vmem:[%s3366 + $0x70] sm:$0xff]
        %v3382 = vld [vmem:[%s3366 + $0x78] sm:$0xff]
        %v3383 = vld [vmem:[%s3366 + $0x80] sm:$0xff]
        %v3384 = vld [vmem:[%s3366 + $0x88] sm:$0xff]
        %v3385 = vld [vmem:[%s3366 + $0x90] sm:$0xff]
        %v3386 = vld [vmem:[%s3366 + $0x98] sm:$0xff]
        %v3387 = vld [vmem:[%s3366 + $0xa0] sm:$0xff]
        %v3388 = vld [vmem:[%s3366 + $0xa8] sm:$0xff]
        %v3389 = vld [vmem:[%s3366 + $0xb0] sm:$0xff]
        %v3390 = vld [vmem:[%s3366 + $0xb8] sm:$0xff]
        %v3391 = vld [vmem:[%s3366 + $0xc0] sm:$0xff]
        %v3392 = vld [vmem:[%s3366 + $0xc8] sm:$0xff]
        %v3393 = vld [vmem:[%s3366 + $0xd0] sm:$0xff]
        %v3394 = vld [vmem:[%s3366 + $0xd8] sm:$0xff]
        %v3395 = vld [vmem:[%s3366 + $0xe0] sm:$0xff]
        %v3396 = vld [vmem:[%s3366 + $0xe8] sm:$0xff]
        %v3397 = vld [vmem:[%s3366 + $0xf0] sm:$0xff]
        %v3398 = vld [vmem:[%s3366 + $0xf8] sm:$0xff]
        %s3399 = scalar_lea.vmem %s1, 768
        %v3400 = vld [vmem:[%s3399] sm:$0xf]
        %v3401 = vld [vmem:[%s3399 + $0x4] sm:$0xf]
        %v3402 = vld [vmem:[%s3399 + $0x8] sm:$0xf]
        %v3403 = vld [vmem:[%s3399 + $0xc] sm:$0xf]
        %v3404 = vld [vmem:[%s3399 + $0x10] sm:$0xf]
        %v3405 = vld [vmem:[%s3399 + $0x14] sm:$0xf]
        %v3406 = vld [vmem:[%s3399 + $0x18] sm:$0xf]
        %v3407 = vld [vmem:[%s3399 + $0x1c] sm:$0xf]
        %v3408 = vld [vmem:[%s3399 + $0x20] sm:$0xf]
        %v3409 = vld [vmem:[%s3399 + $0x24] sm:$0xf]
        %v3410 = vld [vmem:[%s3399 + $0x28] sm:$0xf]
        %v3411 = vld [vmem:[%s3399 + $0x2c] sm:$0xf]
        %v3412 = vld [vmem:[%s3399 + $0x30] sm:$0xf]
        %v3413 = vld [vmem:[%s3399 + $0x34] sm:$0xf]
        %v3414 = vld [vmem:[%s3399 + $0x38] sm:$0xf]
        %v3415 = vld [vmem:[%s3399 + $0x3c] sm:$0xf]
        %v3416 = vld [vmem:[%s3399 + $0x40] sm:$0xf]
        %v3417 = vld [vmem:[%s3399 + $0x44] sm:$0xf]
        %v3418 = vld [vmem:[%s3399 + $0x48] sm:$0xf]
        %v3419 = vld [vmem:[%s3399 + $0x4c] sm:$0xf]
        %v3420 = vld [vmem:[%s3399 + $0x50] sm:$0xf]
        %v3421 = vld [vmem:[%s3399 + $0x54] sm:$0xf]
        %v3422 = vld [vmem:[%s3399 + $0x58] sm:$0xf]
        %v3423 = vld [vmem:[%s3399 + $0x5c] sm:$0xf]
        %v3424 = vld [vmem:[%s3399 + $0x60] sm:$0xf]
        %v3425 = vld [vmem:[%s3399 + $0x64] sm:$0xf]
        %v3426 = vld [vmem:[%s3399 + $0x68] sm:$0xf]
        %v3427 = vld [vmem:[%s3399 + $0x6c] sm:$0xf]
        %v3428 = vld [vmem:[%s3399 + $0x70] sm:$0xf]
        %v3429 = vld [vmem:[%s3399 + $0x74] sm:$0xf]
        %v3430 = vld [vmem:[%s3399 + $0x78] sm:$0xf]
        %v3431 = vld [vmem:[%s3399 + $0x7c] sm:$0xf]
        %v3464 = vunpack.c.l.b16 %v3367
        %v3465 = vunpack.c.h.b16 %v3367
        %v3466 = vunpack.c.l.b16 %v3368
        %v3467 = vunpack.c.h.b16 %v3368
        %v3468 = vunpack.c.l.b16 %v3369
        %v3469 = vunpack.c.h.b16 %v3369
        %v3470 = vunpack.c.l.b16 %v3370
        %v3471 = vunpack.c.h.b16 %v3370
        %v3472 = vunpack.c.l.b16 %v3371
        %v3473 = vunpack.c.h.b16 %v3371
        %v3474 = vunpack.c.l.b16 %v3372
        %v3475 = vunpack.c.h.b16 %v3372
        %v3476 = vunpack.c.l.b16 %v3373
        %v3477 = vunpack.c.h.b16 %v3373
        %v3478 = vunpack.c.l.b16 %v3374
        %v3479 = vunpack.c.h.b16 %v3374
        %v3480 = vunpack.c.l.b16 %v3375
        %v3481 = vunpack.c.h.b16 %v3375
        %v3482 = vunpack.c.l.b16 %v3376
        %v3483 = vunpack.c.h.b16 %v3376
        %v3484 = vunpack.c.l.b16 %v3377
        %v3485 = vunpack.c.h.b16 %v3377
        %v3486 = vunpack.c.l.b16 %v3378
        %v3487 = vunpack.c.h.b16 %v3378
        %v3488 = vunpack.c.l.b16 %v3379
        %v3489 = vunpack.c.h.b16 %v3379
        %v3490 = vunpack.c.l.b16 %v3380
        %v3491 = vunpack.c.h.b16 %v3380
        %v3492 = vunpack.c.l.b16 %v3381
        %v3493 = vunpack.c.h.b16 %v3381
        %v3494 = vunpack.c.l.b16 %v3382
        %v3495 = vunpack.c.h.b16 %v3382
        %v3496 = vunpack.c.l.b16 %v3383
        %v3497 = vunpack.c.h.b16 %v3383
        %v3498 = vunpack.c.l.b16 %v3384
        %v3499 = vunpack.c.h.b16 %v3384
        %v3500 = vunpack.c.l.b16 %v3385
        %v3501 = vunpack.c.h.b16 %v3385
        %v3502 = vunpack.c.l.b16 %v3386
        %v3503 = vunpack.c.h.b16 %v3386
        %v3504 = vunpack.c.l.b16 %v3387
        %v3505 = vunpack.c.h.b16 %v3387
        %v3506 = vunpack.c.l.b16 %v3388
        %v3507 = vunpack.c.h.b16 %v3388
        %v3508 = vunpack.c.l.b16 %v3389
        %v3509 = vunpack.c.h.b16 %v3389
        %v3510 = vunpack.c.l.b16 %v3390
        %v3511 = vunpack.c.h.b16 %v3390
        %v3512 = vunpack.c.l.b16 %v3391
        %v3513 = vunpack.c.h.b16 %v3391
        %v3514 = vunpack.c.l.b16 %v3392
        %v3515 = vunpack.c.h.b16 %v3392
        %v3516 = vunpack.c.l.b16 %v3393
        %v3517 = vunpack.c.h.b16 %v3393
        %v3518 = vunpack.c.l.b16 %v3394
        %v3519 = vunpack.c.h.b16 %v3394
        %v3520 = vunpack.c.l.b16 %v3395
        %v3521 = vunpack.c.h.b16 %v3395
        %v3522 = vunpack.c.l.b16 %v3396
        %v3523 = vunpack.c.h.b16 %v3396
        %v3524 = vunpack.c.l.b16 %v3397
        %v3525 = vunpack.c.h.b16 %v3397
        %v3526 = vunpack.c.l.b16 %v3398
        %v3527 = vunpack.c.h.b16 %v3398
        %v3528 = vpack.c.b16 %v3466, %v3464
        %v3529 = vpack.c.b16 %v3467, %v3465
        %v3530 = vpack.c.b16 %v3470, %v3468
        %v3531 = vpack.c.b16 %v3471, %v3469
        %v3532 = vpack.c.b16 %v3474, %v3472
        %v3533 = vpack.c.b16 %v3475, %v3473
        %v3534 = vpack.c.b16 %v3478, %v3476
        %v3535 = vpack.c.b16 %v3479, %v3477
        %v3536 = vpack.c.b16 %v3482, %v3480
        %v3537 = vpack.c.b16 %v3483, %v3481
        %v3538 = vpack.c.b16 %v3486, %v3484
        %v3539 = vpack.c.b16 %v3487, %v3485
        %v3540 = vpack.c.b16 %v3490, %v3488
        %v3541 = vpack.c.b16 %v3491, %v3489
        %v3542 = vpack.c.b16 %v3494, %v3492
        %v3543 = vpack.c.b16 %v3495, %v3493
        %v3544 = vpack.c.b16 %v3498, %v3496
        %v3545 = vpack.c.b16 %v3499, %v3497
        %v3546 = vpack.c.b16 %v3502, %v3500
        %v3547 = vpack.c.b16 %v3503, %v3501
        %v3548 = vpack.c.b16 %v3506, %v3504
        %v3549 = vpack.c.b16 %v3507, %v3505
        %v3550 = vpack.c.b16 %v3510, %v3508
        %v3551 = vpack.c.b16 %v3511, %v3509
        %v3552 = vpack.c.b16 %v3514, %v3512
        %v3553 = vpack.c.b16 %v3515, %v3513
        %v3554 = vpack.c.b16 %v3518, %v3516
        %v3555 = vpack.c.b16 %v3519, %v3517
        %v3556 = vpack.c.b16 %v3522, %v3520
        %v3557 = vpack.c.b16 %v3523, %v3521
        %v3558 = vpack.c.b16 %v3526, %v3524
        %v3559 = vpack.c.b16 %v3527, %v3525
        %v3624 = vunpack.c.l.b16 %v3400
        %v3625 = vunpack.c.l.b16 %v3401
        %v3626 = vunpack.c.l.b16 %v3402
        %v3627 = vunpack.c.l.b16 %v3403
        %v3628 = vunpack.c.l.b16 %v3404
        %v3629 = vunpack.c.l.b16 %v3405
        %v3630 = vunpack.c.l.b16 %v3406
        %v3631 = vunpack.c.l.b16 %v3407
        %v3632 = vunpack.c.l.b16 %v3408
        %v3633 = vunpack.c.l.b16 %v3409
        %v3634 = vunpack.c.l.b16 %v3410
        %v3635 = vunpack.c.l.b16 %v3411
        %v3636 = vunpack.c.l.b16 %v3412
        %v3637 = vunpack.c.l.b16 %v3413
        %v3638 = vunpack.c.l.b16 %v3414
        %v3639 = vunpack.c.l.b16 %v3415
        %v3640 = vunpack.c.l.b16 %v3416
        %v3641 = vunpack.c.l.b16 %v3417
        %v3642 = vunpack.c.l.b16 %v3418
        %v3643 = vunpack.c.l.b16 %v3419
        %v3644 = vunpack.c.l.b16 %v3420
        %v3645 = vunpack.c.l.b16 %v3421
        %v3646 = vunpack.c.l.b16 %v3422
        %v3647 = vunpack.c.l.b16 %v3423
        %v3648 = vunpack.c.l.b16 %v3424
        %v3649 = vunpack.c.l.b16 %v3425
        %v3650 = vunpack.c.l.b16 %v3426
        %v3651 = vunpack.c.l.b16 %v3427
        %v3652 = vunpack.c.l.b16 %v3428
        %v3653 = vunpack.c.l.b16 %v3429
        %v3654 = vunpack.c.l.b16 %v3430
        %v3655 = vunpack.c.l.b16 %v3431
        %v3656 = vpack.c.b16 %v3625, %v3624
        %v3657 = vpack.c.b16 %v3627, %v3626
        %v3658 = vpack.c.b16 %v3629, %v3628
        %v3659 = vpack.c.b16 %v3631, %v3630
        %v3660 = vpack.c.b16 %v3633, %v3632
        %v3661 = vpack.c.b16 %v3635, %v3634
        %v3662 = vpack.c.b16 %v3637, %v3636
        %v3663 = vpack.c.b16 %v3639, %v3638
        %v3664 = vpack.c.b16 %v3641, %v3640
        %v3665 = vpack.c.b16 %v3643, %v3642
        %v3666 = vpack.c.b16 %v3645, %v3644
        %v3667 = vpack.c.b16 %v3647, %v3646
        %v3668 = vpack.c.b16 %v3649, %v3648
        %v3669 = vpack.c.b16 %v3651, %v3650
        %v3670 = vpack.c.b16 %v3653, %v3652
        %v3671 = vpack.c.b16 %v3655, %v3654
        %3688 = vmatprep.subr.bf16.mxu0 0
        %3689 = vmatpush1.bf16.msra.mxu0 %v3663
        %3690 = vmatprep.subr.bf16.mxu0 0
        %3691 = vmatpush1.bf16.msra.mxu0 %v3662
        %3692 = vmatprep.subr.bf16.mxu0 0
        %3693 = vmatpush1.bf16.msra.mxu0 %v3661
        %3694 = vmatprep.subr.bf16.mxu0 0
        %3695 = vmatpush1.bf16.msra.mxu0 %v3660
        %3696 = vmatprep.subr.bf16.mxu0 0
        %3697 = vmatpush1.bf16.msra.mxu0 %v3659
        %3698 = vmatprep.subr.bf16.mxu0 0
        %3699 = vmatpush1.bf16.msra.mxu0 %v3658
        %3700 = vmatprep.subr.bf16.mxu0 0
        %3701 = vmatpush1.bf16.msra.mxu0 %v3657
        %3702 = vmatprep.subr.bf16.mxu0 0
        %3703 = vmatpush1.bf16.msra.mxu0 %v3656
        %3704 = vmatprep.subr.bf16.mxu0 0
        %3705 = vmatpush2.bf16.msra.mxu0 %v3671
        %3706 = vmatprep.subr.bf16.mxu0 0
        %3707 = vmatpush2.bf16.msra.mxu0 %v3670
        %3708 = vmatprep.subr.bf16.mxu0 0
        %3709 = vmatpush2.bf16.msra.mxu0 %v3669
        %3710 = vmatprep.subr.bf16.mxu0 0
        %3711 = vmatpush2.bf16.msra.mxu0 %v3668
        %3712 = vmatprep.subr.bf16.mxu0 0
        %3713 = vmatpush2.bf16.msra.mxu0 %v3667
        %3714 = vmatprep.subr.bf16.mxu0 0
        %3715 = vmatpush2.bf16.msra.mxu0 %v3666
        %3716 = vmatprep.subr.bf16.mxu0 0
        %3717 = vmatpush2.bf16.msra.mxu0 %v3665
        %3718 = vmatprep.subr.bf16.mxu0 0
        %3719 = vmatpush2.bf16.msra.mxu0 %v3664
        %3720 = vmatprep.mubr.bf16.mxu0 %v3529
        %3721 = vmatmul.mubr.bf16.gmra.mxu0 %v3528
        %v3722 = vpop.f32.mrf.mxu0
        %v3723 = vadd.f32 0.0, %v3722
        %v3724 = vpop.f32.mrf.mxu0
        %v3725 = vpop.f32.mrf.mxu0
        %v3726 = vadd.f32 0.0, %v3725
        %v3727 = vpop.f32.mrf.mxu0
        %3728 = vmatprep.mubr.bf16.mxu0 %v3531
        %3729 = vmatmul.mubr.bf16.gmra.mxu0 %v3530
        %v3730 = vpop.f32.mrf.mxu0
        %v3731 = vadd.f32 0.0, %v3730
        %v3732 = vpop.f32.mrf.mxu0
        %v3733 = vpop.f32.mrf.mxu0
        %v3734 = vadd.f32 0.0, %v3733
        %v3735 = vpop.f32.mrf.mxu0
        %3736 = vmatprep.mubr.bf16.mxu0 %v3533
        %3737 = vmatmul.mubr.bf16.gmra.mxu0 %v3532
        %v3738 = vpop.f32.mrf.mxu0
        %v3739 = vadd.f32 0.0, %v3738
        %v3740 = vpop.f32.mrf.mxu0
        %v3741 = vpop.f32.mrf.mxu0
        %v3742 = vadd.f32 0.0, %v3741
        %v3743 = vpop.f32.mrf.mxu0
        %3744 = vmatprep.mubr.bf16.mxu0 %v3535
        %3745 = vmatmul.mubr.bf16.gmra.mxu0 %v3534
        %v3746 = vpop.f32.mrf.mxu0
        %v3747 = vadd.f32 0.0, %v3746
        %v3748 = vpop.f32.mrf.mxu0
        %v3749 = vpop.f32.mrf.mxu0
        %v3750 = vadd.f32 0.0, %v3749
        %v3751 = vpop.f32.mrf.mxu0
        %3752 = vmatprep.mubr.bf16.mxu0 %v3537
        %3753 = vmatmul.mubr.bf16.gmra.mxu0 %v3536
        %v3754 = vpop.f32.mrf.mxu0
        %v3755 = vadd.f32 0.0, %v3754
        %v3756 = vpop.f32.mrf.mxu0
        %v3757 = vpop.f32.mrf.mxu0
        %v3758 = vadd.f32 0.0, %v3757
        %v3759 = vpop.f32.mrf.mxu0
        %3760 = vmatprep.mubr.bf16.mxu0 %v3539
        %3761 = vmatmul.mubr.bf16.gmra.mxu0 %v3538
        %v3762 = vpop.f32.mrf.mxu0
        %v3763 = vadd.f32 0.0, %v3762
        %v3764 = vpop.f32.mrf.mxu0
        %v3765 = vpop.f32.mrf.mxu0
        %v3766 = vadd.f32 0.0, %v3765
        %v3767 = vpop.f32.mrf.mxu0
        %3768 = vmatprep.mubr.bf16.mxu0 %v3541
        %3769 = vmatmul.mubr.bf16.gmra.mxu0 %v3540
        %v3770 = vpop.f32.mrf.mxu0
        %v3771 = vadd.f32 0.0, %v3770
        %v3772 = vpop.f32.mrf.mxu0
        %v3773 = vpop.f32.mrf.mxu0
        %v3774 = vadd.f32 0.0, %v3773
        %v3775 = vpop.f32.mrf.mxu0
        %3776 = vmatprep.mubr.bf16.mxu0 %v3543
        %3777 = vmatmul.mubr.bf16.gmra.mxu0 %v3542
        %v3778 = vpop.f32.mrf.mxu0
        %v3779 = vadd.f32 0.0, %v3778
        %v3780 = vpop.f32.mrf.mxu0
        %v3781 = vpop.f32.mrf.mxu0
        %v3782 = vadd.f32 0.0, %v3781
        %v3783 = vpop.f32.mrf.mxu0
        %3784 = vmatprep.mubr.bf16.mxu0 %v3545
        %3785 = vmatmul.mubr.bf16.gmra.mxu0 %v3544
        %v3786 = vpop.f32.mrf.mxu0
        %v3787 = vadd.f32 0.0, %v3786
        %v3788 = vpop.f32.mrf.mxu0
        %v3789 = vpop.f32.mrf.mxu0
        %v3790 = vadd.f32 0.0, %v3789
        %v3791 = vpop.f32.mrf.mxu0
        %3792 = vmatprep.mubr.bf16.mxu0 %v3547
        %3793 = vmatmul.mubr.bf16.gmra.mxu0 %v3546
        %v3794 = vpop.f32.mrf.mxu0
        %v3795 = vadd.f32 0.0, %v3794
        %v3796 = vpop.f32.mrf.mxu0
        %v3797 = vpop.f32.mrf.mxu0
        %v3798 = vadd.f32 0.0, %v3797
        %v3799 = vpop.f32.mrf.mxu0
        %3800 = vmatprep.mubr.bf16.mxu0 %v3549
        %3801 = vmatmul.mubr.bf16.gmra.mxu0 %v3548
        %v3802 = vpop.f32.mrf.mxu0
        %v3803 = vadd.f32 0.0, %v3802
        %v3804 = vpop.f32.mrf.mxu0
        %v3805 = vpop.f32.mrf.mxu0
        %v3806 = vadd.f32 0.0, %v3805
        %v3807 = vpop.f32.mrf.mxu0
        %3808 = vmatprep.mubr.bf16.mxu0 %v3551
        %3809 = vmatmul.mubr.bf16.gmra.mxu0 %v3550
        %v3810 = vpop.f32.mrf.mxu0
        %v3811 = vadd.f32 0.0, %v3810
        %v3812 = vpop.f32.mrf.mxu0
        %v3813 = vpop.f32.mrf.mxu0
        %v3814 = vadd.f32 0.0, %v3813
        %v3815 = vpop.f32.mrf.mxu0
        %3816 = vmatprep.mubr.bf16.mxu0 %v3553
        %3817 = vmatmul.mubr.bf16.gmra.mxu0 %v3552
        %v3818 = vpop.f32.mrf.mxu0
        %v3819 = vadd.f32 0.0, %v3818
        %v3820 = vpop.f32.mrf.mxu0
        %v3821 = vpop.f32.mrf.mxu0
        %v3822 = vadd.f32 0.0, %v3821
        %v3823 = vpop.f32.mrf.mxu0
        %3824 = vmatprep.mubr.bf16.mxu0 %v3555
        %3825 = vmatmul.mubr.bf16.gmra.mxu0 %v3554
        %v3826 = vpop.f32.mrf.mxu0
        %v3827 = vadd.f32 0.0, %v3826
        %v3828 = vpop.f32.mrf.mxu0
        %v3829 = vpop.f32.mrf.mxu0
        %v3830 = vadd.f32 0.0, %v3829
        %v3831 = vpop.f32.mrf.mxu0
        %3832 = vmatprep.mubr.bf16.mxu0 %v3557
        %3833 = vmatmul.mubr.bf16.gmra.mxu0 %v3556
        %v3834 = vpop.f32.mrf.mxu0
        %v3835 = vadd.f32 0.0, %v3834
        %v3836 = vpop.f32.mrf.mxu0
        %v3837 = vpop.f32.mrf.mxu0
        %v3838 = vadd.f32 0.0, %v3837
        %v3839 = vpop.f32.mrf.mxu0
        %3840 = vmatprep.mubr.bf16.mxu0 %v3559
        %3841 = vmatmul.mubr.bf16.gmra.mxu0 %v3558
        %v3842 = vpop.f32.mrf.mxu0
        %v3843 = vadd.f32 0.0, %v3842
        %v3844 = vpop.f32.mrf.mxu0
        %v3845 = vpop.f32.mrf.mxu0
        %v3846 = vadd.f32 0.0, %v3845
        %v3847 = vpop.f32.mrf.mxu0
        %3848 = vdwg.mxu0
        %v3849 = vadd.f32 %v3331, %v3723
        %v3850 = vadd.f32 %v3332, %v3726
        %v3851 = vadd.f32 %v3333, %v3731
        %v3852 = vadd.f32 %v3334, %v3734
        %v3853 = vadd.f32 %v3335, %v3739
        %v3854 = vadd.f32 %v3336, %v3742
        %v3855 = vadd.f32 %v3337, %v3747
        %v3856 = vadd.f32 %v3338, %v3750
        %v3857 = vadd.f32 %v3339, %v3755
        %v3858 = vadd.f32 %v3340, %v3758
        %v3859 = vadd.f32 %v3341, %v3763
        %v3860 = vadd.f32 %v3342, %v3766
        %v3861 = vadd.f32 %v3343, %v3771
        %v3862 = vadd.f32 %v3344, %v3774
        %v3863 = vadd.f32 %v3345, %v3779
        %v3864 = vadd.f32 %v3346, %v3782
        %v3865 = vadd.f32 %v3347, %v3787
        %v3866 = vadd.f32 %v3348, %v3790
        %v3867 = vadd.f32 %v3349, %v3795
        %v3868 = vadd.f32 %v3350, %v3798
        %v3869 = vadd.f32 %v3351, %v3803
        %v3870 = vadd.f32 %v3352, %v3806
        %v3871 = vadd.f32 %v3353, %v3811
        %v3872 = vadd.f32 %v3354, %v3814
        %v3873 = vadd.f32 %v3355, %v3819
        %v3874 = vadd.f32 %v3356, %v3822
        %v3875 = vadd.f32 %v3357, %v3827
        %v3876 = vadd.f32 %v3358, %v3830
        %v3877 = vadd.f32 %v3359, %v3835
        %v3878 = vadd.f32 %v3360, %v3838
        %v3879 = vadd.f32 %v3361, %v3843
        %v3880 = vadd.f32 %v3362, %v3846
        %v3881 = vld [vmem:[%s2] sm:$0x1]
        %v3883 = vlaneseq
        %v3884 = vshrl.u32 %v3883, 7
        %v3885 = vsub.s32 0, %v3884
        %v3886 = vrot.slane %v3881, %v3885
        %v3888 = vmul.f32 %v3849, %v3886
        %v3889 = vmul.f32 %v3850, %v3886
        %v3890 = vmul.f32 %v3851, %v3886
        %v3891 = vmul.f32 %v3852, %v3886
        %v3892 = vmul.f32 %v3853, %v3886
        %v3893 = vmul.f32 %v3854, %v3886
        %v3894 = vmul.f32 %v3855, %v3886
        %v3895 = vmul.f32 %v3856, %v3886
        %v3896 = vmul.f32 %v3857, %v3886
        %v3897 = vmul.f32 %v3858, %v3886
        %v3898 = vmul.f32 %v3859, %v3886
        %v3899 = vmul.f32 %v3860, %v3886
        %v3900 = vmul.f32 %v3861, %v3886
        %v3901 = vmul.f32 %v3862, %v3886
        %v3902 = vmul.f32 %v3863, %v3886
        %v3903 = vmul.f32 %v3864, %v3886
        %v3904 = vmul.f32 %v3865, %v3886
        %v3905 = vmul.f32 %v3866, %v3886
        %v3906 = vmul.f32 %v3867, %v3886
        %v3907 = vmul.f32 %v3868, %v3886
        %v3908 = vmul.f32 %v3869, %v3886
        %v3909 = vmul.f32 %v3870, %v3886
        %v3910 = vmul.f32 %v3871, %v3886
        %v3911 = vmul.f32 %v3872, %v3886
        %v3912 = vmul.f32 %v3873, %v3886
        %v3913 = vmul.f32 %v3874, %v3886
        %v3914 = vmul.f32 %v3875, %v3886
        %v3915 = vmul.f32 %v3876, %v3886
        %v3916 = vmul.f32 %v3877, %v3886
        %v3917 = vmul.f32 %v3878, %v3886
        %v3918 = vmul.f32 %v3879, %v3886
        %v3919 = vmul.f32 %v3880, %v3886
        %v3920 = vld [vmem:[%s3] sm:$0x1]
        %v3922 = vlaneseq
        %v3923 = vshrl.u32 %v3922, 7
        %v3924 = vsub.s32 0, %v3923
        %v3925 = vrot.slane %v3920, %v3924
        %v3927 = vadd.f32 %v3888, %v3925
        %v3928 = vadd.f32 %v3889, %v3925
        %v3929 = vadd.f32 %v3890, %v3925
        %v3930 = vadd.f32 %v3891, %v3925
        %v3931 = vadd.f32 %v3892, %v3925
        %v3932 = vadd.f32 %v3893, %v3925
        %v3933 = vadd.f32 %v3894, %v3925
        %v3934 = vadd.f32 %v3895, %v3925
        %v3935 = vadd.f32 %v3896, %v3925
        %v3936 = vadd.f32 %v3897, %v3925
        %v3937 = vadd.f32 %v3898, %v3925
        %v3938 = vadd.f32 %v3899, %v3925
        %v3939 = vadd.f32 %v3900, %v3925
        %v3940 = vadd.f32 %v3901, %v3925
        %v3941 = vadd.f32 %v3902, %v3925
        %v3942 = vadd.f32 %v3903, %v3925
        %v3943 = vadd.f32 %v3904, %v3925
        %v3944 = vadd.f32 %v3905, %v3925
        %v3945 = vadd.f32 %v3906, %v3925
        %v3946 = vadd.f32 %v3907, %v3925
        %v3947 = vadd.f32 %v3908, %v3925
        %v3948 = vadd.f32 %v3909, %v3925
        %v3949 = vadd.f32 %v3910, %v3925
        %v3950 = vadd.f32 %v3911, %v3925
        %v3951 = vadd.f32 %v3912, %v3925
        %v3952 = vadd.f32 %v3913, %v3925
        %v3953 = vadd.f32 %v3914, %v3925
        %v3954 = vadd.f32 %v3915, %v3925
        %v3955 = vadd.f32 %v3916, %v3925
        %v3956 = vadd.f32 %v3917, %v3925
        %v3957 = vadd.f32 %v3918, %v3925
        %v3958 = vadd.f32 %v3919, %v3925
        %v3959 = vmax.f32 %v3927, 0.0
        %v3960 = vmax.f32 %v3928, 0.0
        %v3961 = vmax.f32 %v3929, 0.0
        %v3962 = vmax.f32 %v3930, 0.0
        %v3963 = vmax.f32 %v3931, 0.0
        %v3964 = vmax.f32 %v3932, 0.0
        %v3965 = vmax.f32 %v3933, 0.0
        %v3966 = vmax.f32 %v3934, 0.0
        %v3967 = vmax.f32 %v3935, 0.0
        %v3968 = vmax.f32 %v3936, 0.0
        %v3969 = vmax.f32 %v3937, 0.0
        %v3970 = vmax.f32 %v3938, 0.0
        %v3971 = vmax.f32 %v3939, 0.0
        %v3972 = vmax.f32 %v3940, 0.0
        %v3973 = vmax.f32 %v3941, 0.0
        %v3974 = vmax.f32 %v3942, 0.0
        %v3975 = vmax.f32 %v3943, 0.0
        %v3976 = vmax.f32 %v3944, 0.0
        %v3977 = vmax.f32 %v3945, 0.0
        %v3978 = vmax.f32 %v3946, 0.0
        %v3979 = vmax.f32 %v3947, 0.0
        %v3980 = vmax.f32 %v3948, 0.0
        %v3981 = vmax.f32 %v3949, 0.0
        %v3982 = vmax.f32 %v3950, 0.0
        %v3983 = vmax.f32 %v3951, 0.0
        %v3984 = vmax.f32 %v3952, 0.0
        %v3985 = vmax.f32 %v3953, 0.0
        %v3986 = vmax.f32 %v3954, 0.0
        %v3987 = vmax.f32 %v3955, 0.0
        %v3988 = vmax.f32 %v3956, 0.0
        %v3989 = vmax.f32 %v3957, 0.0
        %v3990 = vmax.f32 %v3958, 0.0
        %v3991 = vmax.f32 %v3959, %v3960
        %v3992 = vmax.f32 %v3967, %v3968
        %v3993 = vmax.f32 %v3975, %v3976
        %v3994 = vmax.f32 %v3983, %v3984
        %v3995 = vmax.f32 %v3960, %v3961
        %v3996 = vmax.f32 %v3968, %v3969
        %v3997 = vmax.f32 %v3976, %v3977
        %v3998 = vmax.f32 %v3984, %v3985
        %v3999 = vmax.f32 %v3995, %v3962
        %v4000 = vmax.f32 %v3996, %v3970
        %v4001 = vmax.f32 %v3997, %v3978
        %v4002 = vmax.f32 %v3998, %v3986
        %v4003 = vmax.f32 %v3962, %v3963
        %v4004 = vmax.f32 %v3970, %v3971
        %v4005 = vmax.f32 %v3978, %v3979
        %v4006 = vmax.f32 %v3986, %v3987
        %v4007 = vmax.f32 %v4003, %v3964
        %v4008 = vmax.f32 %v4004, %v3972
        %v4009 = vmax.f32 %v4005, %v3980
        %v4010 = vmax.f32 %v4006, %v3988
        %v4011 = vmax.f32 %v3964, %v3965
        %v4012 = vmax.f32 %v3972, %v3973
        %v4013 = vmax.f32 %v3980, %v3981
        %v4014 = vmax.f32 %v3988, %v3989
        %v4015 = vmax.f32 %v4011, %v3966
        %v4016 = vmax.f32 %v4012, %v3974
        %v4017 = vmax.f32 %v4013, %v3982
        %v4018 = vmax.f32 %v4014, %v3990
        %v4035 = vrot.slane %v3991, 1
        %v4036 = vrot.slane %v3999, 1
        %v4037 = vrot.slane %v4007, 1
        %v4038 = vrot.slane %v4015, 1
        %v4039 = vrot.slane %v3992, 1
        %v4040 = vrot.slane %v4000, 1
        %v4041 = vrot.slane %v4008, 1
        %v4042 = vrot.slane %v4016, 1
        %v4043 = vrot.slane %v3993, 1
        %v4044 = vrot.slane %v4001, 1
        %v4045 = vrot.slane %v4009, 1
        %v4046 = vrot.slane %v4017, 1
        %v4047 = vrot.slane %v3994, 1
        %v4048 = vrot.slane %v4002, 1
        %v4049 = vrot.slane %v4010, 1
        %v4050 = vrot.slane %v4018, 1
        %v4067 = vmax.f32 %v3991, %v4035
        %v4068 = vmax.f32 %v3999, %v4036
        %v4069 = vmax.f32 %v4007, %v4037
        %v4070 = vmax.f32 %v4015, %v4038
        %v4071 = vmax.f32 %v3992, %v4039
        %v4072 = vmax.f32 %v4000, %v4040
        %v4073 = vmax.f32 %v4008, %v4041
        %v4074 = vmax.f32 %v4016, %v4042
        %v4075 = vmax.f32 %v3993, %v4043
        %v4076 = vmax.f32 %v4001, %v4044
        %v4077 = vmax.f32 %v4009, %v4045
        %v4078 = vmax.f32 %v4017, %v4046
        %v4079 = vmax.f32 %v3994, %v4047
        %v4080 = vmax.f32 %v4002, %v4048
        %v4081 = vmax.f32 %v4010, %v4049
        %v4082 = vmax.f32 %v4018, %v4050
        %v4083 = vrot.slane %v3991, 2
        %v4084 = vrot.slane %v3999, 2
        %v4085 = vrot.slane %v4007, 2
        %v4086 = vrot.slane %v4015, 2
        %v4087 = vrot.slane %v3992, 2
        %v4088 = vrot.slane %v4000, 2
        %v4089 = vrot.slane %v4008, 2
        %v4090 = vrot.slane %v4016, 2
        %v4091 = vrot.slane %v3993, 2
        %v4092 = vrot.slane %v4001, 2
        %v4093 = vrot.slane %v4009, 2
        %v4094 = vrot.slane %v4017, 2
        %v4095 = vrot.slane %v3994, 2
        %v4096 = vrot.slane %v4002, 2
        %v4097 = vrot.slane %v4010, 2
        %v4098 = vrot.slane %v4018, 2
        %v4115 = vmax.f32 %v4067, %v4083
        %v4116 = vmax.f32 %v4068, %v4084
        %v4117 = vmax.f32 %v4069, %v4085
        %v4118 = vmax.f32 %v4070, %v4086
        %v4119 = vmax.f32 %v4071, %v4087
        %v4120 = vmax.f32 %v4072, %v4088
        %v4121 = vmax.f32 %v4073, %v4089
        %v4122 = vmax.f32 %v4074, %v4090
        %v4123 = vmax.f32 %v4075, %v4091
        %v4124 = vmax.f32 %v4076, %v4092
        %v4125 = vmax.f32 %v4077, %v4093
        %v4126 = vmax.f32 %v4078, %v4094
        %v4127 = vmax.f32 %v4079, %v4095
        %v4128 = vmax.f32 %v4080, %v4096
        %v4129 = vmax.f32 %v4081, %v4097
        %v4130 = vmax.f32 %v4082, %v4098
        %v4147 = vrot.slane %v4115, 1
        %v4148 = vrot.slane %v4116, 1
        %v4149 = vrot.slane %v4117, 1
        %v4150 = vrot.slane %v4118, 1
        %v4151 = vrot.slane %v4119, 1
        %v4152 = vrot.slane %v4120, 1
        %v4153 = vrot.slane %v4121, 1
        %v4154 = vrot.slane %v4122, 1
        %v4155 = vrot.slane %v4123, 1
        %v4156 = vrot.slane %v4124, 1
        %v4157 = vrot.slane %v4125, 1
        %v4158 = vrot.slane %v4126, 1
        %v4159 = vrot.slane %v4127, 1
        %v4160 = vrot.slane %v4128, 1
        %v4161 = vrot.slane %v4129, 1
        %v4162 = vrot.slane %v4130, 1
        %v4179 = vrot.slane %v4115, 2
        %v4180 = vrot.slane %v4116, 2
        %v4181 = vrot.slane %v4117, 2
        %v4182 = vrot.slane %v4118, 2
        %v4183 = vrot.slane %v4119, 2
        %v4184 = vrot.slane %v4120, 2
        %v4185 = vrot.slane %v4121, 2
        %v4186 = vrot.slane %v4122, 2
        %v4187 = vrot.slane %v4123, 2
        %v4188 = vrot.slane %v4124, 2
        %v4189 = vrot.slane %v4125, 2
        %v4190 = vrot.slane %v4126, 2
        %v4191 = vrot.slane %v4127, 2
        %v4192 = vrot.slane %v4128, 2
        %v4193 = vrot.slane %v4129, 2
        %v4194 = vrot.slane %v4130, 2
        %vm4211 = vcmask 1040384
        %v4212 = vsel %vm4211, %v4067, %v4115
        %v4213 = vsel %vm4211, %v4068, %v4116
        %v4214 = vsel %vm4211, %v4069, %v4117
        %v4215 = vsel %vm4211, %v4070, %v4118
        %v4216 = vsel %vm4211, %v4071, %v4119
        %v4217 = vsel %vm4211, %v4072, %v4120
        %v4218 = vsel %vm4211, %v4073, %v4121
        %v4219 = vsel %vm4211, %v4074, %v4122
        %v4220 = vsel %vm4211, %v4075, %v4123
        %v4221 = vsel %vm4211, %v4076, %v4124
        %v4222 = vsel %vm4211, %v4077, %v4125
        %v4223 = vsel %vm4211, %v4078, %v4126
        %v4224 = vsel %vm4211, %v4079, %v4127
        %v4225 = vsel %vm4211, %v4080, %v4128
        %v4226 = vsel %vm4211, %v4081, %v4129
        %v4227 = vsel %vm4211, %v4082, %v4130
        %vm4228 = vcmask 1041408
        %v4229 = vsel %vm4228, %v4212, %v4147
        %v4230 = vsel %vm4228, %v4213, %v4148
        %v4231 = vsel %vm4228, %v4214, %v4149
        %v4232 = vsel %vm4228, %v4215, %v4150
        %v4233 = vsel %vm4228, %v4216, %v4151
        %v4234 = vsel %vm4228, %v4217, %v4152
        %v4235 = vsel %vm4228, %v4218, %v4153
        %v4236 = vsel %vm4228, %v4219, %v4154
        %v4237 = vsel %vm4228, %v4220, %v4155
        %v4238 = vsel %vm4228, %v4221, %v4156
        %v4239 = vsel %vm4228, %v4222, %v4157
        %v4240 = vsel %vm4228, %v4223, %v4158
        %v4241 = vsel %vm4228, %v4224, %v4159
        %v4242 = vsel %vm4228, %v4225, %v4160
        %v4243 = vsel %vm4228, %v4226, %v4161
        %v4244 = vsel %vm4228, %v4227, %v4162
        %vm4245 = vcmask 1042432
        %v4246 = vsel %vm4245, %v4229, %v4179
        %v4247 = vsel %vm4245, %v4230, %v4180
        %v4248 = vsel %vm4245, %v4231, %v4181
        %v4249 = vsel %vm4245, %v4232, %v4182
        %v4250 = vsel %vm4245, %v4233, %v4183
        %v4251 = vsel %vm4245, %v4234, %v4184
        %v4252 = vsel %vm4245, %v4235, %v4185
        %v4253 = vsel %vm4245, %v4236, %v4186
        %v4254 = vsel %vm4245, %v4237, %v4187
        %v4255 = vsel %vm4245, %v4238, %v4188
        %v4256 = vsel %vm4245, %v4239, %v4189
        %v4257 = vsel %vm4245, %v4240, %v4190
        %v4258 = vsel %vm4245, %v4241, %v4191
        %v4259 = vsel %vm4245, %v4242, %v4192
        %v4260 = vsel %vm4245, %v4243, %v4193
        %v4261 = vsel %vm4245, %v4244, %v4194
        %s4262 = scalar_lea.vmem [#allocation2], %s321
        %vm4263 = vcmask 519168
        %4264 = vst.msk [vmem:[%s4262] sm:$0xf] %vm4263, %v4246
        %4265 = vst.msk [vmem:[%s4262 + $0x4] sm:$0xf] %vm4263, %v4247
        %4266 = vst.msk [vmem:[%s4262 + $0x8] sm:$0xf] %vm4263, %v4248
        %4267 = vst.msk [vmem:[%s4262 + $0xc] sm:$0xf] %vm4263, %v4249
        %4268 = vst.msk [vmem:[%s4262 + $0x10] sm:$0xf] %vm4263, %v4250
        %4269 = vst.msk [vmem:[%s4262 + $0x14] sm:$0xf] %vm4263, %v4251
        %4270 = vst.msk [vmem:[%s4262 + $0x18] sm:$0xf] %vm4263, %v4252
        %4271 = vst.msk [vmem:[%s4262 + $0x1c] sm:$0xf] %vm4263, %v4253
        %4272 = vst.msk [vmem:[%s4262 + $0x20] sm:$0xf] %vm4263, %v4254
        %4273 = vst.msk [vmem:[%s4262 + $0x24] sm:$0xf] %vm4263, %v4255
        %4274 = vst.msk [vmem:[%s4262 + $0x28] sm:$0xf] %vm4263, %v4256
        %4275 = vst.msk [vmem:[%s4262 + $0x2c] sm:$0xf] %vm4263, %v4257
        %4276 = vst.msk [vmem:[%s4262 + $0x30] sm:$0xf] %vm4263, %v4258
        %4277 = vst.msk [vmem:[%s4262 + $0x34] sm:$0xf] %vm4263, %v4259
        %4278 = vst.msk [vmem:[%s4262 + $0x38] sm:$0xf] %vm4263, %v4260
        %4279 = vst.msk [vmem:[%s4262 + $0x3c] sm:$0xf] %vm4263, %v4261
        %p4280 = scmp.eq.s32.totalorder %s33, 1
        // Predicated region
        $region49: #{tpu_custom_call.1} parent=43 // pred_check
          %p4281 = pneg %p4280
        $region50: #{tpu_custom_call.1} parent=43 // pred_check_branch
          %4283 = sbr.rel (%p4281) target = $region52
        $region51: #{tpu_custom_call.1} parent=43 // pred_region
          %v4284 = vld [vmem:[#allocation2] sm:$0xf]
          %v4285 = vld [vmem:[#allocation2 + $0x4] sm:$0xf]
          %v4286 = vld [vmem:[#allocation2 + $0x8] sm:$0xf]
          %v4287 = vld [vmem:[#allocation2 + $0xc] sm:$0xf]
          %v4288 = vld [vmem:[#allocation2 + $0x10] sm:$0xf]
          %v4289 = vld [vmem:[#allocation2 + $0x14] sm:$0xf]
          %v4290 = vld [vmem:[#allocation2 + $0x18] sm:$0xf]
          %v4291 = vld [vmem:[#allocation2 + $0x1c] sm:$0xf]
          %v4292 = vld [vmem:[#allocation2 + $0x20] sm:$0xf]
          %v4293 = vld [vmem:[#allocation2 + $0x24] sm:$0xf]
          %v4294 = vld [vmem:[#allocation2 + $0x28] sm:$0xf]
          %v4295 = vld [vmem:[#allocation2 + $0x2c] sm:$0xf]
          %v4296 = vld [vmem:[#allocation2 + $0x30] sm:$0xf]
          %v4297 = vld [vmem:[#allocation2 + $0x34] sm:$0xf]
          %v4298 = vld [vmem:[#allocation2 + $0x38] sm:$0xf]
          %v4299 = vld [vmem:[#allocation2 + $0x3c] sm:$0xf]
          %v4300 = vld [vmem:[#allocation2 + $0x40] sm:$0xf]
          %v4301 = vld [vmem:[#allocation2 + $0x44] sm:$0xf]
          %v4302 = vld [vmem:[#allocation2 + $0x48] sm:$0xf]
          %v4303 = vld [vmem:[#allocation2 + $0x4c] sm:$0xf]
          %v4304 = vld [vmem:[#allocation2 + $0x50] sm:$0xf]
          %v4305 = vld [vmem:[#allocation2 + $0x54] sm:$0xf]
          %v4306 = vld [vmem:[#allocation2 + $0x58] sm:$0xf]
          %v4307 = vld [vmem:[#allocation2 + $0x5c] sm:$0xf]
          %v4308 = vld [vmem:[#allocation2 + $0x60] sm:$0xf]
          %v4309 = vld [vmem:[#allocation2 + $0x64] sm:$0xf]
          %v4310 = vld [vmem:[#allocation2 + $0x68] sm:$0xf]
          %v4311 = vld [vmem:[#allocation2 + $0x6c] sm:$0xf]
          %v4312 = vld [vmem:[#allocation2 + $0x70] sm:$0xf]
          %v4313 = vld [vmem:[#allocation2 + $0x74] sm:$0xf]
          %v4314 = vld [vmem:[#allocation2 + $0x78] sm:$0xf]
          %v4315 = vld [vmem:[#allocation2 + $0x7c] sm:$0xf]
          %v4316 = vmax.f32 %v4284, %v4288
          %v4317 = vmax.f32 %v4285, %v4289
          %v4318 = vmax.f32 %v4286, %v4290
          %v4319 = vmax.f32 %v4287, %v4291
          %v4320 = vmax.f32 %v4288, %v4292
          %v4321 = vmax.f32 %v4289, %v4293
          %v4322 = vmax.f32 %v4290, %v4294
          %v4323 = vmax.f32 %v4291, %v4295
          %v4324 = vmax.f32 %v4320, %v4296
          %v4325 = vmax.f32 %v4321, %v4297
          %v4326 = vmax.f32 %v4322, %v4298
          %v4327 = vmax.f32 %v4323, %v4299
          %v4328 = vmax.f32 %v4296, %v4300
          %v4329 = vmax.f32 %v4297, %v4301
          %v4330 = vmax.f32 %v4298, %v4302
          %v4331 = vmax.f32 %v4299, %v4303
          %v4332 = vmax.f32 %v4328, %v4304
          %v4333 = vmax.f32 %v4329, %v4305
          %v4334 = vmax.f32 %v4330, %v4306
          %v4335 = vmax.f32 %v4331, %v4307
          %v4336 = vmax.f32 %v4304, %v4308
          %v4337 = vmax.f32 %v4305, %v4309
          %v4338 = vmax.f32 %v4306, %v4310
          %v4339 = vmax.f32 %v4307, %v4311
          %v4340 = vmax.f32 %v4336, %v4312
          %v4341 = vmax.f32 %v4337, %v4313
          %v4342 = vmax.f32 %v4338, %v4314
          %v4343 = vmax.f32 %v4339, %v4315
          %v4360 = vrot.slane %v4317, 7
          %vm4361 = vcmask 1041409
          %v4362 = vsel %vm4361, %v4360, %v4316
          %v4363 = vrot.slane %v4318, 6
          %vm4364 = vcmask 1042434
          %v4365 = vsel %vm4364, %v4363, %v4362
          %v4366 = vrot.slane %v4319, 5
          %vm4367 = vcmask 1043459
          %v4368 = vsel %vm4367, %v4366, %v4365
          %v4369 = vrot.slane %v4325, 7
          %v4370 = vsel %vm4361, %v4369, %v4324
          %v4371 = vrot.slane %v4326, 6
          %v4372 = vsel %vm4364, %v4371, %v4370
          %v4373 = vrot.slane %v4327, 5
          %v4374 = vsel %vm4367, %v4373, %v4372
          %v4375 = vrot.slane %v4333, 7
          %v4376 = vsel %vm4361, %v4375, %v4332
          %v4377 = vrot.slane %v4334, 6
          %v4378 = vsel %vm4364, %v4377, %v4376
          %v4379 = vrot.slane %v4335, 5
          %v4380 = vsel %vm4367, %v4379, %v4378
          %v4381 = vrot.slane %v4341, 7
          %v4382 = vsel %vm4361, %v4381, %v4340
          %v4383 = vrot.slane %v4342, 6
          %v4384 = vsel %vm4364, %v4383, %v4382
          %v4385 = vrot.slane %v4343, 5
          %v4386 = vsel %vm4367, %v4385, %v4384
          %v4391 = vrot.slane %v4316, 1
          %v4392 = vsel %vm4361, %v4317, %v4391
          %v4393 = vrot.slane %v4318, 7
          %v4394 = vsel %vm4364, %v4393, %v4392
          %v4395 = vrot.slane %v4319, 6
          %v4396 = vsel %vm4367, %v4395, %v4394
          %v4397 = vrot.slane %v4324, 1
          %v4398 = vsel %vm4361, %v4325, %v4397
          %v4399 = vrot.slane %v4326, 7
          %v4400 = vsel %vm4364, %v4399, %v4398
          %v4401 = vrot.slane %v4327, 6
          %v4402 = vsel %vm4367, %v4401, %v4400
          %v4403 = vrot.slane %v4332, 1
          %v4404 = vsel %vm4361, %v4333, %v4403
          %v4405 = vrot.slane %v4334, 7
          %v4406 = vsel %vm4364, %v4405, %v4404
          %v4407 = vrot.slane %v4335, 6
          %v4408 = vsel %vm4367, %v4407, %v4406
          %v4409 = vrot.slane %v4340, 1
          %v4410 = vsel %vm4361, %v4341, %v4409
          %v4411 = vrot.slane %v4342, 7
          %v4412 = vsel %vm4364, %v4411, %v4410
          %v4413 = vrot.slane %v4343, 6
          %v4414 = vsel %vm4367, %v4413, %v4412
          %4415 = vrot.lane.b32.xlu0 %v4396, 64
          %v4416 = vpop.permute.xlu0 %4415
          %4417 = vrot.lane.b32.xlu0 %v4402, 64
          %v4418 = vpop.permute.xlu0 %4417
          %4419 = vrot.lane.b32.xlu0 %v4408, 64
          %v4420 = vpop.permute.xlu0 %4419
          %4421 = vrot.lane.b32.xlu0 %v4414, 64
          %v4422 = vpop.permute.xlu0 %4421
          %v4427 = vrot.slane %v4316, 2
          %v4428 = vrot.slane %v4317, 1
          %v4429 = vsel %vm4361, %v4428, %v4427
          %v4430 = vsel %vm4364, %v4318, %v4429
          %v4431 = vrot.slane %v4319, 7
          %v4432 = vsel %vm4367, %v4431, %v4430
          %v4433 = vrot.slane %v4324, 2
          %v4434 = vrot.slane %v4325, 1
          %v4435 = vsel %vm4361, %v4434, %v4433
          %v4436 = vsel %vm4364, %v4326, %v4435
          %v4437 = vrot.slane %v4327, 7
          %v4438 = vsel %vm4367, %v4437, %v4436
          %v4439 = vrot.slane %v4332, 2
          %v4440 = vrot.slane %v4333, 1
          %v4441 = vsel %vm4361, %v4440, %v4439
          %v4442 = vsel %vm4364, %v4334, %v4441
          %v4443 = vrot.slane %v4335, 7
          %v4444 = vsel %vm4367, %v4443, %v4442
          %v4445 = vrot.slane %v4340, 2
          %v4446 = vrot.slane %v4341, 1
          %v4447 = vsel %vm4361, %v4446, %v4445
          %v4448 = vsel %vm4364, %v4342, %v4447
          %v4449 = vrot.slane %v4343, 7
          %v4450 = vsel %vm4367, %v4449, %v4448
          %v4455 = vrot.slane %v4316, 3
          %v4456 = vrot.slane %v4317, 2
          %v4457 = vsel %vm4361, %v4456, %v4455
          %v4458 = vrot.slane %v4318, 1
          %v4459 = vsel %vm4364, %v4458, %v4457
          %v4460 = vsel %vm4367, %v4319, %v4459
          %v4461 = vrot.slane %v4324, 3
          %v4462 = vrot.slane %v4325, 2
          %v4463 = vsel %vm4361, %v4462, %v4461
          %v4464 = vrot.slane %v4326, 1
          %v4465 = vsel %vm4364, %v4464, %v4463
          %v4466 = vsel %vm4367, %v4327, %v4465
          %v4467 = vrot.slane %v4332, 3
          %v4468 = vrot.slane %v4333, 2
          %v4469 = vsel %vm4361, %v4468, %v4467
          %v4470 = vrot.slane %v4334, 1
          %v4471 = vsel %vm4364, %v4470, %v4469
          %v4472 = vsel %vm4367, %v4335, %v4471
          %v4473 = vrot.slane %v4340, 3
          %v4474 = vrot.slane %v4341, 2
          %v4475 = vsel %vm4361, %v4474, %v4473
          %v4476 = vrot.slane %v4342, 1
          %v4477 = vsel %vm4364, %v4476, %v4475
          %v4478 = vsel %vm4367, %v4343, %v4477
          %4479 = vrot.lane.b32.xlu0 %v4460, 64
          %v4480 = vpop.permute.xlu0 %4479
          %4481 = vrot.lane.b32.xlu0 %v4466, 64
          %v4482 = vpop.permute.xlu0 %4481
          %4483 = vrot.lane.b32.xlu0 %v4472, 64
          %v4484 = vpop.permute.xlu0 %4483
          %4485 = vrot.lane.b32.xlu0 %v4478, 64
          %v4486 = vpop.permute.xlu0 %4485
          %vm4491 = vcmask 523264
          %v4492 = vsel %vm4491, %v4368, %v4416
          %v4493 = vsel %vm4491, %v4374, %v4418
          %v4494 = vsel %vm4491, %v4380, %v4420
          %v4495 = vsel %vm4491, %v4386, %v4422
          %v4496 = vsel %vm4491, %v4432, %v4480
          %v4497 = vsel %vm4491, %v4438, %v4482
          %v4498 = vsel %vm4491, %v4444, %v4484
          %v4499 = vsel %vm4491, %v4450, %v4486
          %v4508 = vcombine.low %v4492, %v4496
          %v4509 = vcombine.low %v4493, %v4497
          %v4510 = vcombine.low %v4494, %v4498
          %v4511 = vcombine.low %v4495, %v4499
          %4516 = vst [vmem:[%s312] sm:$0xff] %v4508
          %4517 = vst [vmem:[%s312 + $0x8] sm:$0xff] %v4509
          %4518 = vst [vmem:[%s312 + $0x10] sm:$0xff] %v4510
          %4519 = vst [vmem:[%s312 + $0x18] sm:$0xff] %v4511
          %v4520 = vsel %vm4263, %v4316, 0.0
          %v4521 = vsel %vm4263, %v4324, 0.0
          %v4522 = vadd.f32 %v4520, %v4521
          %v4523 = vsel %vm4263, %v4332, 0.0
          %v4524 = vadd.f32 %v4522, %v4523
          %v4525 = vsel %vm4263, %v4340, 0.0
          %v4526 = vadd.f32 %v4524, %v4525
          %v4527 = vsel %vm4263, %v4317, 0.0
          %v4528 = vsel %vm4263, %v4325, 0.0
          %v4529 = vadd.f32 %v4527, %v4528
          %v4530 = vsel %vm4263, %v4333, 0.0
          %v4531 = vadd.f32 %v4529, %v4530
          %v4532 = vsel %vm4263, %v4341, 0.0
          %v4533 = vadd.f32 %v4531, %v4532
          %v4534 = vsel %vm4263, %v4318, 0.0
          %v4535 = vsel %vm4263, %v4326, 0.0
          %v4536 = vadd.f32 %v4534, %v4535
          %v4537 = vsel %vm4263, %v4334, 0.0
          %v4538 = vadd.f32 %v4536, %v4537
          %v4539 = vsel %vm4263, %v4342, 0.0
          %v4540 = vadd.f32 %v4538, %v4539
          %v4541 = vsel %vm4263, %v4319, 0.0
          %v4542 = vsel %vm4263, %v4327, 0.0
          %v4543 = vadd.f32 %v4541, %v4542
          %v4544 = vsel %vm4263, %v4335, 0.0
          %v4545 = vadd.f32 %v4543, %v4544
          %v4546 = vsel %vm4263, %v4343, 0.0
          %v4547 = vadd.f32 %v4545, %v4546
          %v4548 = vrcp.pop 4.0
          %v4549 = vmul.f32 %v4526, %v4548
          %v4550 = vmul.f32 %v4533, %v4548
          %v4551 = vmul.f32 %v4540, %v4548
          %v4552 = vmul.f32 %v4547, %v4548
          %v4553 = vsel %vm4263, %v4549, 0.0
          %v4554 = vsel %vm4263, %v4550, 0.0
          %v4555 = vadd.f32 %v4553, %v4554
          %v4556 = vsel %vm4263, %v4551, 0.0
          %v4557 = vadd.f32 %v4555, %v4556
          %v4558 = vsel %vm4263, %v4552, 0.0
          %v4559 = vadd.f32 %v4557, %v4558
          %v4560 = vmul.f32 %v4559, %v4548
          %v4561 = vsel %vm4263, %v4560, 0.0
          %v4562 = vrot.slane %v4561, 4
          %v4563 = vadd.f32 %v4561, %v4562
          %v4564 = vrot.slane %v4563, 2
          %v4565 = vadd.f32 %v4563, %v4564
          %v4566 = vrot.slane %v4565, 1
          %v4567 = vadd.f32 %v4565, %v4566
          %v4568 = vmul.f32 %v4567, %v4548
          %v4569 = vld [vmem:[%s4] sm:$0xff]
          %v4570 = vld [vmem:[%s4 + $0x8] sm:$0xff]
          %v4571 = vld [vmem:[%s4 + $0x10] sm:$0xff]
          %v4572 = vld [vmem:[%s4 + $0x18] sm:$0xff]
          %v4573 = vld [vmem:[%s4 + $0x20] sm:$0xff]
          %v4574 = vld [vmem:[%s4 + $0x28] sm:$0xff]
          %v4575 = vld [vmem:[%s4 + $0x30] sm:$0xff]
          %v4576 = vld [vmem:[%s4 + $0x38] sm:$0xff]
          %v4577 = vld [vmem:[%s5] sm:$0x1]
          %v4579 = vsel %vm4491, %v4568, 0
          %4581 = vmatprep.subr.mxu0 0.0
          %4582 = vmatpush1.msra.mxu0 0.0
          %4583 = vmatprep.subr.mxu0 0.0
          %4584 = vmatpush1.msra.mxu0 0.0
          %4585 = vmatprep.subr.mxu0 0.0
          %4586 = vmatpush1.msra.mxu0 0.0
          %4587 = vmatprep.subr.mxu0 0.0
          %4588 = vmatpush1.msra.mxu0 0.0
          %4589 = vmatprep.subr.mxu0 0.0
          %4590 = vmatpush1.msra.mxu0 0.0
          %4591 = vmatprep.subr.mxu0 0.0
          %4592 = vmatpush1.msra.mxu0 0.0
          %4593 = vmatprep.subr.mxu0 0.0
          %4594 = vmatpush1.msra.mxu0 0.0
          %4595 = vmatprep.subr.mxu0 0.0
          %4596 = vmatpush1.msra.mxu0 0.0
          %4597 = vmatprep.subr.mxu0 0.0
          %4598 = vmatpush1.msra.mxu0 %v4576
          %4599 = vmatprep.subr.mxu0 0.0
          %4600 = vmatpush1.msra.mxu0 %v4575
          %4601 = vmatprep.subr.mxu0 0.0
          %4602 = vmatpush1.msra.mxu0 %v4574
          %4603 = vmatprep.subr.mxu0 0.0
          %4604 = vmatpush1.msra.mxu0 %v4573
          %4605 = vmatprep.subr.mxu0 0.0
          %4606 = vmatpush1.msra.mxu0 %v4572
          %4607 = vmatprep.subr.mxu0 0.0
          %4608 = vmatpush1.msra.mxu0 %v4571
          %4609 = vmatprep.subr.mxu0 0.0
          %4610 = vmatpush1.msra.mxu0 %v4570
          %4611 = vmatprep.subr.mxu0 0.0
          %4612 = vmatpush1.msra.mxu0 %v4569
          %4613 = vmatprep.subr.mxu0 0.0
          %4614 = vmatpush2.msra.mxu0 0.0
          %4615 = vmatprep.subr.mxu0 0.0
          %4616 = vmatpush2.msra.mxu0 0.0
          %4617 = vmatprep.subr.mxu0 0.0
          %4618 = vmatpush2.msra.mxu0 0.0
          %4619 = vmatprep.subr.mxu0 0.0
          %4620 = vmatpush2.msra.mxu0 0.0
          %4621 = vmatprep.subr.mxu0 0.0
          %4622 = vmatpush2.msra.mxu0 0.0
          %4623 = vmatprep.subr.mxu0 0.0
          %4624 = vmatpush2.msra.mxu0 0.0
          %4625 = vmatprep.subr.mxu0 0.0
          %4626 = vmatpush2.msra.mxu0 0.0
          %4627 = vmatprep.subr.mxu0 0.0
          %4628 = vmatpush2.msra.mxu0 0.0
          %4629 = vmatprep.subr.mxu0 0.0
          %4630 = vmatpush2.msra.mxu0 0.0
          %4631 = vmatprep.subr.mxu0 0.0
          %4632 = vmatpush2.msra.mxu0 0.0
          %4633 = vmatprep.subr.mxu0 0.0
          %4634 = vmatpush2.msra.mxu0 0.0
          %4635 = vmatprep.subr.mxu0 0.0
          %4636 = vmatpush2.msra.mxu0 0.0
          %4637 = vmatprep.subr.mxu0 0.0
          %4638 = vmatpush2.msra.mxu0 0.0
          %4639 = vmatprep.subr.mxu0 0.0
          %4640 = vmatpush2.msra.mxu0 0.0
          %4641 = vmatprep.subr.mxu0 0.0
          %4642 = vmatpush2.msra.mxu0 0.0
          %4643 = vmatprep.subr.mxu0 0.0
          %4644 = vmatpush2.msra.mxu0 0.0
          %4645 = vmatprep.mubr.f32.mxu0 0.0
          %4646 = vmatmul.mubr.f32.gmra.mxu0 %v4579
          %v4647 = vpop.f32.mrf.mxu0
          %v4648 = vadd.f32 %v4577, %v4647
          %v4649 = vpop.f32.mrf.mxu0
          %4650 = vdwg.mxu0
          %vm4651 = vcmask 73728
          %4652 = vst.msk [vmem:[%s318] sm:$0x1] %vm4651, %v4648
        $region52: #{tpu_custom_call.1} parent=43 // pred_fallthru
          _
        %s4653 = sand.u32 %s179, 1
        %s4654 = scalar_lea.sflag [#allocation5], %s4653
        %s4655 = sand.u32 %s179, 1
        %s4656 = smul.addr %s4655, 32
        %s4657 = scalar_lea.vmem [#allocation6], %s4656
        %s4658 = sand.u32 %s205, 1
        %s4659 = scalar_lea.sflag [#allocation8], %s4658
        %s4660 = sand.u32 %s205, 1
        %s4661 = scalar_lea.vmem [#allocation7], %s4660
        // Predicated region
        $region53: #{tpu_custom_call.1} parent=43 // pred_check
          %p4662 = pneg %p189
        $region54: #{tpu_custom_call.1} parent=43 // pred_check_branch
          %4664 = sbr.rel (%p4662) target = $region56
        $region55: #{tpu_custom_call.1} parent=43 // pred_region
          %s4666 = ssub.s32 512, 512
          %4667 = vsyncadd %s4654, %s4666
          %s4668 = smul.addr %s32, 8
          %s4669 = smul.addr %s4668, 64
          %s4670 = scalar_lea.hbm %s6, %s4669
          %s4671 = sshll.u32 %s4657, 4
          %s4672 = int_to_ptr.vmem [resolvable:$true] %s4671
          %4677 = dma.vmem_to_hbm [thread:$0]  %s4672, 512, %s4670, %s4654, 128, 128, 8
        $region56: #{tpu_custom_call.1} parent=43 // pred_fallthru
          _
        // Predicated region
        $region57: #{tpu_custom_call.1} parent=43 // pred_check
          %p4678 = pneg %p215
        $region58: #{tpu_custom_call.1} parent=43 // pred_check_branch
          %4680 = sbr.rel (%p4678) target = $region60
        $region59: #{tpu_custom_call.1} parent=43 // pred_region
          %s4682 = ssub.s32 16, 16
          %4683 = vsyncadd %s4659, %s4682
          %s4684 = smul.addr %s32, 16
          %s4685 = scalar_lea.hbm %s7, %s4684
          %s4687 = sshll.u32 %s4661, 4
          %s4688 = int_to_ptr.vmem [resolvable:$true] %s4687
          %4690 = dma.vmem_to_hbm [thread:$0]  %s4688, 16, %s4685, %s4659
        $region60: #{tpu_custom_call.1} parent=43 // pred_fallthru
          _
      $region44: #{tpu_custom_call.1} parent=5 // pred_fallthru
        _
      %p4691 = scmp.le.s32.totalorder 2, %s23
      // Predicated region
      $region61: #{tpu_custom_call.1} parent=5 // pred_check
        %p4692 = pneg %p4691
      $region62: #{tpu_custom_call.1} parent=5 // pred_check_branch
        %4694 = sbr.rel (%p4692) target = $region64
      $region63: #{tpu_custom_call.1} parent=5 // pred_region
        %s4695 = ssub.s32 %s23, 2
        // Predicated region
        $region65: #{tpu_custom_call.1} parent=63 // pred_check
          %p4696 = pneg %p195
        $region66: #{tpu_custom_call.1} parent=63 // pred_check_branch
          %4698 = sbr.rel (%p4696) target = $region68
        $region67: #{tpu_custom_call.1} parent=63 // pred_region
          %s4699 = sand.u32 %s180, 1
          %s4700 = scalar_lea.sflag [#allocation5], %s4699
          %s4701 = sand.u32 %s180, 1
          %s4702 = smul.addr %s4701, 32
          %s4703 = scalar_lea.vmem [#allocation6], %s4702
          %4704 = dma.done %s4700, 512
        $region68: #{tpu_custom_call.1} parent=63 // pred_fallthru
          _
        // Predicated region
        $region69: #{tpu_custom_call.1} parent=63 // pred_check
          %p4705 = pneg %p221
        $region70: #{tpu_custom_call.1} parent=63 // pred_check_branch
          %4707 = sbr.rel (%p4705) target = $region72
        $region71: #{tpu_custom_call.1} parent=63 // pred_region
          %s4708 = sand.u32 %s206, 1
          %s4709 = scalar_lea.sflag [#allocation8], %s4708
          %s4710 = sand.u32 %s206, 1
          %s4711 = scalar_lea.vmem [#allocation7], %s4710
          %4712 = dma.done %s4709, 16
        $region72: #{tpu_custom_call.1} parent=63 // pred_fallthru
          _
      $region64: #{tpu_custom_call.1} parent=5 // pred_fallthru
        _
    $region6: #{tpu_custom_call.1} parent=1 // loop_footer
      %s27 = sadd.s32 1, %s23
    $region7: #{tpu_custom_call.1} parent=1 // loop_footer_branch
      %22 = sbr.rel target = $region3
    $region8: #{tpu_custom_call.1} parent=1 // loop_exit
      _
    %4713 = vsyncpa [#allocation4], 1
    %s4714 = scalar_lea.sflag [#allocation4], 1
    %4715 = vsyncpa %s4714, 1
    %4716 = vsyncpa [#allocation5], 1
    %s4717 = scalar_lea.sflag [#allocation5], 1
    %4718 = vsyncpa %s4717, 1
    %4719 = vsyncpa [#allocation8], 1
    %s4720 = scalar_lea.sflag [#allocation8], 1
    %4721 = vsyncpa %s4720, 1

</llo_original>
